<compile_context>
chip_gen: v7x
topology: tpu7x:2x2x1
jax: 0.10.0
libtpu: 0.0.40
codegen_flags: <defaults>
</compile_context>

<pallas_src>
import functools

import jax
import jax.numpy as jnp
from jax.experimental import pallas as pl
from jax.experimental.pallas import tpu as pltpu


# Hidden-layer widths of DeeperNN
HIDDEN = (512, 256, 128, 64, 32, 1)


def _round_up(n, m):
    return -(-n // m) * m


def _mlp_kernel(x_ref, *refs):
    """Fused forward pass for one batch tile.

    x_ref : [tile_b, F]   bf16   (batch-major, exactly as stored in HBM)
    refs  : w1, b1, ..., w6, b6, o_ref
            w_i : [out_i, in_i]  bf16   (PyTorch layout, VMEM-resident)
            b_i : [out_i, 1]     f32
            o   : [1, tile_b]    f32    (lane-dense output row)
    """
    o_ref = refs[-1]
    wb = refs[:-1]
    n_layers = len(wb) // 2

    # Go feature-major (batch on the lane axis). The f32 round-trip uses the most mature
    # XLU transpose path; the casts are a handful of VPU cycles and effectively free.
    h = x_ref[...].astype(jnp.float32).T.astype(jnp.bfloat16)   # bf16 [F, tile_b]

    for li in range(n_layers):
        w_ref = wb[2 * li]
        b_ref = wb[2 * li + 1]
        acc = jnp.dot(w_ref[...], h,
                      preferred_element_type=jnp.float32) + b_ref[...]
        if li < n_layers - 1:
            # Linear -> ReLU (Dropout is identity in eval mode); back to bf16 for the MXU.
            h = jnp.maximum(acc, 0.0).astype(jnp.bfloat16)
        else:
            # Final Linear -> Sigmoid (exact; it's a single [1, tile_b] row).
            o_ref[...] = (1.0 / (1.0 + jnp.exp(-acc))).astype(o_ref.dtype)


def _choose_tile_b(batch):
    """Pick the batch tile from B: big enough to amortize the ~0.35us/step overhead
    (capped at 2048), but keep >=2 grid steps when possible so v7x's two TensorCores
    both get work; always a multiple of 128 (lane granularity)."""
    b128 = _round_up(batch, 128)
    if b128 <= 128:
        return 128
    return max(128, min(2048, _round_up(b128 // 2, 128)))


@functools.partial(jax.jit, static_argnames=("tile_b",))
def _forward_impl(x, params, tile_b):
    B, F = x.shape
    B_pad = _round_up(B, tile_b)
    num_tiles = B_pad // tile_b

    # Pad + bf16 cast fuse into a single pass under jit; x stays batch-major in HBM
    # (no standalone transpose pass over the input).
    x_p = x
    if B_pad != B:
        x_p = jnp.pad(x_p, ((0, B_pad - B), (0, 0)))
    x_p = x_p.astype(jnp.bfloat16)

    flat_params = []
    in_specs = [pl.BlockSpec((tile_b, F), lambda i: (i, 0))]
    for w, b in params:
        # Constant (0, 0) index maps -> weight/bias blocks are DMA'd once and stay
        # resident in VMEM across the whole grid.
        in_specs.append(pl.BlockSpec(w.shape, lambda i: (0, 0)))
        in_specs.append(pl.BlockSpec(b.shape, lambda i: (0, 0)))
        flat_params += [w, b]

    # Lane-dense output: one [1, tile_b] row per grid step into a [1, B_pad] slab.
    out_spec = pl.BlockSpec((1, tile_b), lambda i: (0, i))

    out_row = pl.pallas_call(
        _mlp_kernel,
        out_shape=jax.ShapeDtypeStruct((1, B_pad), jnp.float32),
        grid_spec=pltpu.PrefetchScalarGridSpec(
            num_scalar_prefetch=0,
            grid=(num_tiles,),
            in_specs=in_specs,
            out_specs=out_spec,
        ),
        compiler_params=pltpu.CompilerParams(
            # Batch axis is embarrassingly parallel (sharded across TCs on megacore/v7x).
            dimension_semantics=("parallel",),
            # Matches the v6e/v7x scoped default and lifts v5e's 16 MiB; working set at
            # tile_b=2048 is well under this, so no need to push the limit further.
            vmem_limit_bytes=32 * 1024 * 1024,
        ),
    )(x_p, *flat_params)

    # [1, B_pad] -> [B, 1]
    return out_row.reshape(B_pad, 1)[:B]


def deeper_nn_forward(x, params, tile_b=None):
    """x: [B, input_shape] f32.  params: prepared (W[out,in] bf16, b[out,1] f32) pairs.

    Returns [B, 1] float32 sigmoid probabilities (eval-mode forward).
    """
    if tile_b is None:
        tile_b = _choose_tile_b(x.shape[0])
    assert tile_b % 128 == 0, "tile_b must be a multiple of 128 (lane-dense tiles)"
    return _forward_impl(x, params, tile_b)


def prepare_params(params):
    """One-time cast out of the per-call path: bf16 weights (halves DMA + VMEM),
    biases kept in f32 for the accumulator add."""
    return tuple((w.astype(jnp.bfloat16), b.astype(jnp.float32)) for w, b in params)


def init_params(key, input_shape):
    """Deterministic init mimicking nn.Linear defaults (U[-1/sqrt(fan_in), +...]).

    Weights in PyTorch's [out_features, in_features] layout; biases as [out, 1]; all f32.
    """
    dims = (input_shape,) + HIDDEN
    params = []
    for i in range(len(HIDDEN)):
        fan_in, fan_out = dims[i], dims[i + 1]
        key, kw, kb = jax.random.split(key, 3)
        bound = 1.0 / float(fan_in) ** 0.5
        w = jax.random.uniform(kw, (fan_out, fan_in), jnp.float32, -bound, bound)
        b = jax.random.uniform(kb, (fan_out, 1), jnp.float32, -bound, bound)
        params.append((w, b))
    return params


def reference_forward(x, params):
    """Plain-JAX f32 reference (eval-mode: Dropout is identity)."""
    h = x
    for i, (w, b) in enumerate(params):
        h = h @ w.T + b[:, 0]
        if i < len(params) - 1:
            h = jnp.maximum(h, 0.0)
        else:
            h = jax.nn.sigmoid(h)
    return h


if __name__ == "__main__":
    INPUT_SHAPE = 64   # feature dim fed to the first Linear
    BATCH = 300        # not a multiple of 128 -> exercises padding; tile_b=256, grid=(2,)

    key = jax.random.PRNGKey(0)
    key, kx = jax.random.split(key)
    x = jax.random.normal(kx, (BATCH, INPUT_SHAPE), jnp.float32)
    params = init_params(key, INPUT_SHAPE)
    fast_params = prepare_params(params)   # one-time bf16 cast, outside the call path

    out = deeper_nn_forward(x, fast_params)
    out = jax.block_until_ready(out)

    ref = reference_forward(x, params)
    assert out.shape == (BATCH, 1)
    max_err = float(jnp.max(jnp.abs(out - ref)))
    # Tolerance reflects bf16 weights/activations (f32 accumulation, exact sigmoid head).
    assert jnp.allclose(out, ref, atol=2e-2, rtol=2e-2), (
        f"mismatch vs reference, max abs err={max_err}")

    print("KERNEL_OK")
</pallas_src>

<mosaic_0001>
module attributes {stable_mosaic.version = 11 : i64} {
  func.func @_mlp_kernel(%arg0: i32, %arg1: memref<256x64xbf16, #tpu.memory_space<vmem>>, %arg2: memref<512x64xbf16, #tpu.memory_space<vmem>>, %arg3: memref<512x1xf32, #tpu.memory_space<vmem>>, %arg4: memref<256x512xbf16, #tpu.memory_space<vmem>>, %arg5: memref<256x1xf32, #tpu.memory_space<vmem>>, %arg6: memref<128x256xbf16, #tpu.memory_space<vmem>>, %arg7: memref<128x1xf32, #tpu.memory_space<vmem>>, %arg8: memref<64x128xbf16, #tpu.memory_space<vmem>>, %arg9: memref<64x1xf32, #tpu.memory_space<vmem>>, %arg10: memref<32x64xbf16, #tpu.memory_space<vmem>>, %arg11: memref<32x1xf32, #tpu.memory_space<vmem>>, %arg12: memref<1x32xbf16, #tpu.memory_space<vmem>>, %arg13: memref<1x1xf32, #tpu.memory_space<vmem>>, %arg14: memref<1x256xf32, #tpu.memory_space<vmem>>) attributes {dimension_semantics = [#tpu.dimension_semantics<parallel>], iteration_bounds = array<i64: 2>, scalar_prefetch = 0 : i64, scratch_operands = 0 : i64, tpu.core_type = #tpu.core_type<tc>, window_params = [{transform_indices = @transform_0, window_bounds = array<i64: 256, 64>}, {pipeline_mode = #tpu.pipeline_mode<synchronous>, transform_indices = @transform_1, window_bounds = array<i64: 512, 64>}, {pipeline_mode = #tpu.pipeline_mode<synchronous>, transform_indices = @transform_2, window_bounds = array<i64: 512, 1>}, {pipeline_mode = #tpu.pipeline_mode<synchronous>, transform_indices = @transform_3, window_bounds = array<i64: 256, 512>}, {pipeline_mode = #tpu.pipeline_mode<synchronous>, transform_indices = @transform_4, window_bounds = array<i64: 256, 1>}, {pipeline_mode = #tpu.pipeline_mode<synchronous>, transform_indices = @transform_5, window_bounds = array<i64: 128, 256>}, {pipeline_mode = #tpu.pipeline_mode<synchronous>, transform_indices = @transform_6, window_bounds = array<i64: 128, 1>}, {pipeline_mode = #tpu.pipeline_mode<synchronous>, transform_indices = @transform_7, window_bounds = array<i64: 64, 128>}, {pipeline_mode = #tpu.pipeline_mode<synchronous>, transform_indices = @transform_8, window_bounds = array<i64: 64, 1>}, {pipeline_mode = #tpu.pipeline_mode<synchronous>, transform_indices = @transform_9, window_bounds = array<i64: 32, 64>}, {pipeline_mode = #tpu.pipeline_mode<synchronous>, transform_indices = @transform_10, window_bounds = array<i64: 32, 1>}, {pipeline_mode = #tpu.pipeline_mode<synchronous>, transform_indices = @transform_11, window_bounds = array<i64: 1, 32>}, {pipeline_mode = #tpu.pipeline_mode<synchronous>, transform_indices = @transform_12, window_bounds = array<i64: 1, 1>}, {transform_indices = @transform_13, window_bounds = array<i64: 1, 256>}]} {
    %c0 = arith.constant 0 : index
    %c0_0 = arith.constant 0 : index
    %0 = vector.load %arg1[%c0, %c0_0] : memref<256x64xbf16, #tpu.memory_space<vmem>>, vector<256x64xbf16>
    %1 = arith.extf %0 : vector<256x64xbf16> to vector<256x64xf32>
    %2 = tpu.transpose %1, [1, 0] : vector<256x64xf32> -> vector<64x256xf32>
    %3 = arith.truncf %2 : vector<64x256xf32> to vector<64x256xbf16>
    %c0_1 = arith.constant 0 : index
    %c0_2 = arith.constant 0 : index
    %4 = vector.load %arg2[%c0_1, %c0_2] : memref<512x64xbf16, #tpu.memory_space<vmem>>, vector<512x64xbf16>
    %cst = arith.constant dense<0.000000e+00> : vector<512x256xf32>
    %5 = tpu.matmul %4, %3, %cst {dimension_numbers = #tpu.dot_dimension_numbers<[1], [0], [0], [1], [0, 0, 1, 1], [], []>} : vector<512x64xbf16>, vector<64x256xbf16>, vector<512x256xf32> -> vector<512x256xf32>
    %c0_3 = arith.constant 0 : index
    %c0_4 = arith.constant 0 : index
    %6 = vector.load %arg3[%c0_3, %c0_4] : memref<512x1xf32, #tpu.memory_space<vmem>>, vector<512x1xf32>
    %7 = vector.broadcast %6 : vector<512x1xf32> to vector<512x256xf32>
    %8 = arith.addf %5, %7 : vector<512x256xf32>
    %cst_5 = arith.constant 0.000000e+00 : f32
    %9 = vector.broadcast %cst_5 : f32 to vector<512x256xf32>
    %10 = arith.maximumf %8, %9 : vector<512x256xf32>
    %11 = arith.truncf %10 : vector<512x256xf32> to vector<512x256xbf16>
    %c0_6 = arith.constant 0 : index
    %c0_7 = arith.constant 0 : index
    %12 = vector.load %arg4[%c0_6, %c0_7] : memref<256x512xbf16, #tpu.memory_space<vmem>>, vector<256x512xbf16>
    %cst_8 = arith.constant dense<0.000000e+00> : vector<256x256xf32>
    %13 = tpu.matmul %12, %11, %cst_8 {dimension_numbers = #tpu.dot_dimension_numbers<[1], [0], [0], [1], [0, 0, 1, 1], [], []>} : vector<256x512xbf16>, vector<512x256xbf16>, vector<256x256xf32> -> vector<256x256xf32>
    %c0_9 = arith.constant 0 : index
    %c0_10 = arith.constant 0 : index
    %14 = vector.load %arg5[%c0_9, %c0_10] : memref<256x1xf32, #tpu.memory_space<vmem>>, vector<256x1xf32>
    %15 = vector.broadcast %14 : vector<256x1xf32> to vector<256x256xf32>
    %16 = arith.addf %13, %15 : vector<256x256xf32>
    %cst_11 = arith.constant 0.000000e+00 : f32
    %17 = vector.broadcast %cst_11 : f32 to vector<256x256xf32>
    %18 = arith.maximumf %16, %17 : vector<256x256xf32>
    %19 = arith.truncf %18 : vector<256x256xf32> to vector<256x256xbf16>
    %c0_12 = arith.constant 0 : index
    %c0_13 = arith.constant 0 : index
    %20 = vector.load %arg6[%c0_12, %c0_13] : memref<128x256xbf16, #tpu.memory_space<vmem>>, vector<128x256xbf16>
    %cst_14 = arith.constant dense<0.000000e+00> : vector<128x256xf32>
    %21 = tpu.matmul %20, %19, %cst_14 {dimension_numbers = #tpu.dot_dimension_numbers<[1], [0], [0], [1], [0, 0, 1, 1], [], []>} : vector<128x256xbf16>, vector<256x256xbf16>, vector<128x256xf32> -> vector<128x256xf32>
    %c0_15 = arith.constant 0 : index
    %c0_16 = arith.constant 0 : index
    %22 = vector.load %arg7[%c0_15, %c0_16] : memref<128x1xf32, #tpu.memory_space<vmem>>, vector<128x1xf32>
    %23 = vector.broadcast %22 : vector<128x1xf32> to vector<128x256xf32>
    %24 = arith.addf %21, %23 : vector<128x256xf32>
    %cst_17 = arith.constant 0.000000e+00 : f32
    %25 = vector.broadcast %cst_17 : f32 to vector<128x256xf32>
    %26 = arith.maximumf %24, %25 : vector<128x256xf32>
    %27 = arith.truncf %26 : vector<128x256xf32> to vector<128x256xbf16>
    %c0_18 = arith.constant 0 : index
    %c0_19 = arith.constant 0 : index
    %28 = vector.load %arg8[%c0_18, %c0_19] : memref<64x128xbf16, #tpu.memory_space<vmem>>, vector<64x128xbf16>
    %cst_20 = arith.constant dense<0.000000e+00> : vector<64x256xf32>
    %29 = tpu.matmul %28, %27, %cst_20 {dimension_numbers = #tpu.dot_dimension_numbers<[1], [0], [0], [1], [0, 0, 1, 1], [], []>} : vector<64x128xbf16>, vector<128x256xbf16>, vector<64x256xf32> -> vector<64x256xf32>
    %c0_21 = arith.constant 0 : index
    %c0_22 = arith.constant 0 : index
    %30 = vector.load %arg9[%c0_21, %c0_22] : memref<64x1xf32, #tpu.memory_space<vmem>>, vector<64x1xf32>
    %31 = vector.broadcast %30 : vector<64x1xf32> to vector<64x256xf32>
    %32 = arith.addf %29, %31 : vector<64x256xf32>
    %cst_23 = arith.constant 0.000000e+00 : f32
    %33 = vector.broadcast %cst_23 : f32 to vector<64x256xf32>
    %34 = arith.maximumf %32, %33 : vector<64x256xf32>
    %35 = arith.truncf %34 : vector<64x256xf32> to vector<64x256xbf16>
    %c0_24 = arith.constant 0 : index
    %c0_25 = arith.constant 0 : index
    %36 = vector.load %arg10[%c0_24, %c0_25] : memref<32x64xbf16, #tpu.memory_space<vmem>>, vector<32x64xbf16>
    %cst_26 = arith.constant dense<0.000000e+00> : vector<32x256xf32>
    %37 = tpu.matmul %36, %35, %cst_26 {dimension_numbers = #tpu.dot_dimension_numbers<[1], [0], [0], [1], [0, 0, 1, 1], [], []>} : vector<32x64xbf16>, vector<64x256xbf16>, vector<32x256xf32> -> vector<32x256xf32>
    %c0_27 = arith.constant 0 : index
    %c0_28 = arith.constant 0 : index
    %38 = vector.load %arg11[%c0_27, %c0_28] : memref<32x1xf32, #tpu.memory_space<vmem>>, vector<32x1xf32>
    %39 = vector.broadcast %38 : vector<32x1xf32> to vector<32x256xf32>
    %40 = arith.addf %37, %39 : vector<32x256xf32>
    %cst_29 = arith.constant 0.000000e+00 : f32
    %41 = vector.broadcast %cst_29 : f32 to vector<32x256xf32>
    %42 = arith.maximumf %40, %41 : vector<32x256xf32>
    %43 = arith.truncf %42 : vector<32x256xf32> to vector<32x256xbf16>
    %c0_30 = arith.constant 0 : index
    %c0_31 = arith.constant 0 : index
    %44 = vector.load %arg12[%c0_30, %c0_31] : memref<1x32xbf16, #tpu.memory_space<vmem>>, vector<1x32xbf16>
    %cst_32 = arith.constant dense<0.000000e+00> : vector<1x256xf32>
    %45 = tpu.matmul %44, %43, %cst_32 {dimension_numbers = #tpu.dot_dimension_numbers<[1], [0], [0], [1], [0, 0, 1, 1], [], []>} : vector<1x32xbf16>, vector<32x256xbf16>, vector<1x256xf32> -> vector<1x256xf32>
    %c0_33 = arith.constant 0 : index
    %c0_34 = arith.constant 0 : index
    %46 = vector.load %arg13[%c0_33, %c0_34] : memref<1x1xf32, #tpu.memory_space<vmem>>, vector<1x1xf32>
    %47 = vector.broadcast %46 : vector<1x1xf32> to vector<1x256xf32>
    %48 = arith.addf %45, %47 : vector<1x256xf32>
    %cst_35 = arith.constant 0.000000e+00 : f32
    %49 = vector.broadcast %cst_35 : f32 to vector<1x256xf32>
    %50 = arith.subf %49, %48 : vector<1x256xf32>
    %51 = math.exp %50 : vector<1x256xf32>
    %cst_36 = arith.constant 1.000000e+00 : f32
    %52 = vector.broadcast %cst_36 : f32 to vector<1x256xf32>
    %53 = arith.addf %52, %51 : vector<1x256xf32>
    %cst_37 = arith.constant 1.000000e+00 : f32
    %54 = vector.broadcast %cst_37 : f32 to vector<1x256xf32>
    %55 = arith.divf %54, %53 : vector<1x256xf32>
    %c0_38 = arith.constant 0 : index
    %c0_39 = arith.constant 0 : index
    %56 = vector.load %arg14[%c0_38, %c0_39] : memref<1x256xf32, #tpu.memory_space<vmem>>, vector<1x256xf32>
    tpu.vector_store %arg14[%c0_38, %c0_39], %55 {strides = array<i32>} : memref<1x256xf32, #tpu.memory_space<vmem>>, vector<1x256xf32>,
    return
  }
  func.func @transform_0(%arg0: i32) -> (i32, i32) {
    %c0_i32 = arith.constant 0 : i32
    %c0_i32_0 = arith.constant 0 : i32
    return %arg0, %c0_i32 : i32, i32
  }
  func.func @transform_1(%arg0: i32) -> (i32, i32) {
    %c0_i32 = arith.constant 0 : i32
    %c0_i32_0 = arith.constant 0 : i32
    %c0_i32_1 = arith.constant 0 : i32
    return %c0_i32, %c0_i32_0 : i32, i32
  }
  func.func @transform_2(%arg0: i32) -> (i32, i32) {
    %c0_i32 = arith.constant 0 : i32
    %c0_i32_0 = arith.constant 0 : i32
    %c0_i32_1 = arith.constant 0 : i32
    return %c0_i32, %c0_i32_0 : i32, i32
  }
  func.func @transform_3(%arg0: i32) -> (i32, i32) {
    %c0_i32 = arith.constant 0 : i32
    %c0_i32_0 = arith.constant 0 : i32
    %c0_i32_1 = arith.constant 0 : i32
    return %c0_i32, %c0_i32_0 : i32, i32
  }
  func.func @transform_4(%arg0: i32) -> (i32, i32) {
    %c0_i32 = arith.constant 0 : i32
    %c0_i32_0 = arith.constant 0 : i32
    %c0_i32_1 = arith.constant 0 : i32
    return %c0_i32, %c0_i32_0 : i32, i32
  }
  func.func @transform_5(%arg0: i32) -> (i32, i32) {
    %c0_i32 = arith.constant 0 : i32
    %c0_i32_0 = arith.constant 0 : i32
    %c0_i32_1 = arith.constant 0 : i32
    return %c0_i32, %c0_i32_0 : i32, i32
  }
  func.func @transform_6(%arg0: i32) -> (i32, i32) {
    %c0_i32 = arith.constant 0 : i32
    %c0_i32_0 = arith.constant 0 : i32
    %c0_i32_1 = arith.constant 0 : i32
    return %c0_i32, %c0_i32_0 : i32, i32
  }
  func.func @transform_7(%arg0: i32) -> (i32, i32) {
    %c0_i32 = arith.constant 0 : i32
    %c0_i32_0 = arith.constant 0 : i32
    %c0_i32_1 = arith.constant 0 : i32
    return %c0_i32, %c0_i32_0 : i32, i32
  }
  func.func @transform_8(%arg0: i32) -> (i32, i32) {
    %c0_i32 = arith.constant 0 : i32
    %c0_i32_0 = arith.constant 0 : i32
    %c0_i32_1 = arith.constant 0 : i32
    return %c0_i32, %c0_i32_0 : i32, i32
  }
  func.func @transform_9(%arg0: i32) -> (i32, i32) {
    %c0_i32 = arith.constant 0 : i32
    %c0_i32_0 = arith.constant 0 : i32
    %c0_i32_1 = arith.constant 0 : i32
    return %c0_i32, %c0_i32_0 : i32, i32
  }
  func.func @transform_10(%arg0: i32) -> (i32, i32) {
    %c0_i32 = arith.constant 0 : i32
    %c0_i32_0 = arith.constant 0 : i32
    %c0_i32_1 = arith.constant 0 : i32
    return %c0_i32, %c0_i32_0 : i32, i32
  }
  func.func @transform_11(%arg0: i32) -> (i32, i32) {
    %c0_i32 = arith.constant 0 : i32
    %c0_i32_0 = arith.constant 0 : i32
    %c0_i32_1 = arith.constant 0 : i32
    return %c0_i32, %c0_i32_0 : i32, i32
  }
  func.func @transform_12(%arg0: i32) -> (i32, i32) {
    %c0_i32 = arith.constant 0 : i32
    %c0_i32_0 = arith.constant 0 : i32
    %c0_i32_1 = arith.constant 0 : i32
    return %c0_i32, %c0_i32_0 : i32, i32
  }
  func.func @transform_13(%arg0: i32) -> (i32, i32) {
    %c0_i32 = arith.constant 0 : i32
    %c0_i32_0 = arith.constant 0 : i32
    return %c0_i32, %arg0 : i32, i32
  }
}

</mosaic_0001>

<llo_original>
// kernel: _forward_impl.1
$region0: #{_forward_impl.1}
  #allocation0 [shape = 'u32[]', space=smem, size = 0x4, offset = 0x4, fixed_abs, tag = 'smem constant byte address 0x4 - core index']
  #allocation1 [shape = 'u32[144,128]{1,0:T(1,128)}', space=vmem, size = 0x12000, scoped, tag = 'internal scratch']
  #allocation2 [shape = 'f32[1,1]{1,0:T(1,128)S(1)}', space=vmem, size = 0x200, scoped, tag = 'scoped memory for _forward_impl.1']
  %s0 = inlined_call_operand.vmem [shape: bf16[512,64], index: 0, kind: input, shape index: {}]
  %s1 = inlined_call_operand.vmem [shape: bf16[512,64], index: 1, kind: input, shape index: {}]
  %s2 = inlined_call_operand.vmem [shape: f32[512,1], index: 2, kind: input, shape index: {}]
  %s3 = inlined_call_operand.vmem [shape: bf16[256,512], index: 3, kind: input, shape index: {}]
  %s4 = inlined_call_operand.vmem [shape: f32[256,1], index: 4, kind: input, shape index: {}]
  %s5 = inlined_call_operand.vmem [shape: bf16[128,256], index: 5, kind: input, shape index: {}]
  %s6 = inlined_call_operand.vmem [shape: f32[128,1], index: 6, kind: input, shape index: {}]
  %s7 = inlined_call_operand.vmem [shape: bf16[64,128], index: 7, kind: input, shape index: {}]
  %s8 = inlined_call_operand.vmem [shape: f32[64,1], index: 8, kind: input, shape index: {}]
  %s9 = inlined_call_operand.vmem [shape: bf16[32,64], index: 9, kind: input, shape index: {}]
  %s10 = inlined_call_operand.vmem [shape: f32[32,1], index: 10, kind: input, shape index: {}]
  %s11 = inlined_call_operand.vmem [shape: bf16[1,32], index: 11, kind: input, shape index: {}]
  %s12 = inlined_call_operand.<no memory space> [shape: f32[1,1], index: 12, kind: input, shape index: {}]
  %s13 = inlined_call_operand.vmem [shape: f32[1,512], index: 13, kind: output, shape index: {}]
  %s14 = sld [smem:[#allocation0]]
  $region85: #{_forward_impl.1} parent=0
    _
  %s16 = ssub.s32 1, %s14
  %s17 = scalar_select 0, %s16, %s14
  %v18 = vstv %s12
  %19 = vst [vmem:[#allocation2] sm:$0x1] %v18
  loop: start=0, step=1, limit=4
  $region2: #{_forward_impl.1} parent=0 // loop_pre_header
    _
  $region3: #{_forward_impl.1} parent=0 // loop_header
    %s21 = sphi 0, %s25
    %p22 = scmp.ge.s32.totalorder %s21, 4
    %s31 = sphi 0, %s33
    %s34 = sphi 0, %s31
    %s35 = sphi 0, %s34
    %s51 = sphi 0, %s35
    %s55 = sphi 0, %s55
    %s57 = sphi 0, %s55
    %s58 = sphi 0, %s57
    %s72 = sphi 0, %s58
    %s76 = sphi 0, %s76
    %s78 = sphi 0, %s76
    %s79 = sphi 0, %s78
    %s93 = sphi 0, %s79
    %s97 = sphi 0, %s97
    %s99 = sphi 0, %s97
    %s100 = sphi 0, %s99
    %s114 = sphi 0, %s100
    %s118 = sphi 0, %s118
    %s120 = sphi 0, %s118
    %s121 = sphi 0, %s120
    %s135 = sphi 0, %s121
    %s139 = sphi 0, %s139
    %s141 = sphi 0, %s139
    %s142 = sphi 0, %s141
    %s156 = sphi 0, %s142
    %s160 = sphi 0, %s160
    %s162 = sphi 0, %s160
    %s163 = sphi 0, %s162
    %s177 = sphi 0, %s163
    %s181 = sphi 0, %s181
    %s183 = sphi 0, %s181
    %s184 = sphi 0, %s183
    %s198 = sphi 0, %s184
    %s202 = sphi 0, %s202
    %s204 = sphi 0, %s202
    %s205 = sphi 0, %s204
    %s219 = sphi 0, %s205
    %s223 = sphi 0, %s223
    %s225 = sphi 0, %s223
    %s226 = sphi 0, %s225
    %s240 = sphi 0, %s226
    %s244 = sphi 0, %s244
    %s246 = sphi 0, %s244
    %s247 = sphi 0, %s246
    %s261 = sphi 0, %s247
    %s265 = sphi 0, %s265
    %s267 = sphi 0, %s265
    %s268 = sphi 0, %s267
    %s282 = sphi 0, %s268
    %s286 = sphi 0, %s286
    %s288 = sphi 0, %s286
    %s289 = sphi 0, %s288
    %s303 = sphi 0, %s289
    %s309 = sphi 0, %s311
    %s312 = sphi 0, %s309
    %s313 = sphi 0, %s312
    %s329 = sphi 0, %s313
  $region4: #{_forward_impl.1} parent=0 // loop_header_branch
    %24 = sbr.rel (%p22) target = $region8
  $region5: #{_forward_impl.1} parent=0 // loop_body
    %s26 = ssub.s32 %s21, 1
    %s27 = ssub.s32 %s21, 2
    %s28 = sadd.s32 %s21, 1
    %s29 = ssub.s32 %s21, %s28
    %p30 = scmp.eq.s32.totalorder %s29, 0
    %s32 = sadd.s32 %s31, 1
    %s33 = scalar_select %p30, %s31, %s32
    %p36 = pneg %p30
    %p37 = scmp.eq.s32.totalorder %s21, 1
    %p38 = por %p36, %p37
    %p39 = scmp.ne.s32.totalorder %s31, %s34
    %p40 = scmp.eq.s32.totalorder %s21, 0
    %p41 = por %p39, %p40
    %p42 = scmp.ne.s32.totalorder %s31, %s34
    %p43 = scmp.eq.s32.totalorder %s26, 1
    %p44 = por %p42, %p43
    %p45 = scmp.ne.s32.totalorder %s34, %s35
    %p46 = scmp.eq.s32.totalorder %s26, 0
    %p47 = por %p45, %p46
    %p48 = scmp.ne.s32.totalorder %s34, %s35
    %p49 = scmp.eq.s32.totalorder %s27, 1
    %p50 = por %p48, %p49
    %p52 = scmp.ne.s32.totalorder %s35, %s51
    %p53 = scmp.eq.s32.totalorder %s27, 0
    %p54 = por %p52, %p53
    %s56 = sadd.s32 %s55, 1
    %p59 = scmp.eq.s32.totalorder %s21, 1
    %p60 = scmp.ne.s32.totalorder %s55, %s57
    %p61 = scmp.eq.s32.totalorder %s21, 0
    %p62 = por %p60, %p61
    %p63 = scmp.ne.s32.totalorder %s55, %s57
    %p64 = scmp.eq.s32.totalorder %s26, 1
    %p65 = por %p63, %p64
    %p66 = scmp.ne.s32.totalorder %s57, %s58
    %p67 = scmp.eq.s32.totalorder %s26, 0
    %p68 = por %p66, %p67
    %p69 = scmp.ne.s32.totalorder %s57, %s58
    %p70 = scmp.eq.s32.totalorder %s27, 1
    %p71 = por %p69, %p70
    %p73 = scmp.ne.s32.totalorder %s58, %s72
    %p74 = scmp.eq.s32.totalorder %s27, 0
    %p75 = por %p73, %p74
    %s77 = sadd.s32 %s76, 1
    %p80 = scmp.eq.s32.totalorder %s21, 1
    %p81 = scmp.ne.s32.totalorder %s76, %s78
    %p82 = scmp.eq.s32.totalorder %s21, 0
    %p83 = por %p81, %p82
    %p84 = scmp.ne.s32.totalorder %s76, %s78
    %p85 = scmp.eq.s32.totalorder %s26, 1
    %p86 = por %p84, %p85
    %p87 = scmp.ne.s32.totalorder %s78, %s79
    %p88 = scmp.eq.s32.totalorder %s26, 0
    %p89 = por %p87, %p88
    %p90 = scmp.ne.s32.totalorder %s78, %s79
    %p91 = scmp.eq.s32.totalorder %s27, 1
    %p92 = por %p90, %p91
    %p94 = scmp.ne.s32.totalorder %s79, %s93
    %p95 = scmp.eq.s32.totalorder %s27, 0
    %p96 = por %p94, %p95
    %s98 = sadd.s32 %s97, 1
    %p101 = scmp.eq.s32.totalorder %s21, 1
    %p102 = scmp.ne.s32.totalorder %s97, %s99
    %p103 = scmp.eq.s32.totalorder %s21, 0
    %p104 = por %p102, %p103
    %p105 = scmp.ne.s32.totalorder %s97, %s99
    %p106 = scmp.eq.s32.totalorder %s26, 1
    %p107 = por %p105, %p106
    %p108 = scmp.ne.s32.totalorder %s99, %s100
    %p109 = scmp.eq.s32.totalorder %s26, 0
    %p110 = por %p108, %p109
    %p111 = scmp.ne.s32.totalorder %s99, %s100
    %p112 = scmp.eq.s32.totalorder %s27, 1
    %p113 = por %p111, %p112
    %p115 = scmp.ne.s32.totalorder %s100, %s114
    %p116 = scmp.eq.s32.totalorder %s27, 0
    %p117 = por %p115, %p116
    %s119 = sadd.s32 %s118, 1
    %p122 = scmp.eq.s32.totalorder %s21, 1
    %p123 = scmp.ne.s32.totalorder %s118, %s120
    %p124 = scmp.eq.s32.totalorder %s21, 0
    %p125 = por %p123, %p124
    %p126 = scmp.ne.s32.totalorder %s118, %s120
    %p127 = scmp.eq.s32.totalorder %s26, 1
    %p128 = por %p126, %p127
    %p129 = scmp.ne.s32.totalorder %s120, %s121
    %p130 = scmp.eq.s32.totalorder %s26, 0
    %p131 = por %p129, %p130
    %p132 = scmp.ne.s32.totalorder %s120, %s121
    %p133 = scmp.eq.s32.totalorder %s27, 1
    %p134 = por %p132, %p133
    %p136 = scmp.ne.s32.totalorder %s121, %s135
    %p137 = scmp.eq.s32.totalorder %s27, 0
    %p138 = por %p136, %p137
    %s140 = sadd.s32 %s139, 1
    %p143 = scmp.eq.s32.totalorder %s21, 1
    %p144 = scmp.ne.s32.totalorder %s139, %s141
    %p145 = scmp.eq.s32.totalorder %s21, 0
    %p146 = por %p144, %p145
    %p147 = scmp.ne.s32.totalorder %s139, %s141
    %p148 = scmp.eq.s32.totalorder %s26, 1
    %p149 = por %p147, %p148
    %p150 = scmp.ne.s32.totalorder %s141, %s142
    %p151 = scmp.eq.s32.totalorder %s26, 0
    %p152 = por %p150, %p151
    %p153 = scmp.ne.s32.totalorder %s141, %s142
    %p154 = scmp.eq.s32.totalorder %s27, 1
    %p155 = por %p153, %p154
    %p157 = scmp.ne.s32.totalorder %s142, %s156
    %p158 = scmp.eq.s32.totalorder %s27, 0
    %p159 = por %p157, %p158
    %s161 = sadd.s32 %s160, 1
    %p164 = scmp.eq.s32.totalorder %s21, 1
    %p165 = scmp.ne.s32.totalorder %s160, %s162
    %p166 = scmp.eq.s32.totalorder %s21, 0
    %p167 = por %p165, %p166
    %p168 = scmp.ne.s32.totalorder %s160, %s162
    %p169 = scmp.eq.s32.totalorder %s26, 1
    %p170 = por %p168, %p169
    %p171 = scmp.ne.s32.totalorder %s162, %s163
    %p172 = scmp.eq.s32.totalorder %s26, 0
    %p173 = por %p171, %p172
    %p174 = scmp.ne.s32.totalorder %s162, %s163
    %p175 = scmp.eq.s32.totalorder %s27, 1
    %p176 = por %p174, %p175
    %p178 = scmp.ne.s32.totalorder %s163, %s177
    %p179 = scmp.eq.s32.totalorder %s27, 0
    %p180 = por %p178, %p179
    %s182 = sadd.s32 %s181, 1
    %p185 = scmp.eq.s32.totalorder %s21, 1
    %p186 = scmp.ne.s32.totalorder %s181, %s183
    %p187 = scmp.eq.s32.totalorder %s21, 0
    %p188 = por %p186, %p187
    %p189 = scmp.ne.s32.totalorder %s181, %s183
    %p190 = scmp.eq.s32.totalorder %s26, 1
    %p191 = por %p189, %p190
    %p192 = scmp.ne.s32.totalorder %s183, %s184
    %p193 = scmp.eq.s32.totalorder %s26, 0
    %p194 = por %p192, %p193
    %p195 = scmp.ne.s32.totalorder %s183, %s184
    %p196 = scmp.eq.s32.totalorder %s27, 1
    %p197 = por %p195, %p196
    %p199 = scmp.ne.s32.totalorder %s184, %s198
    %p200 = scmp.eq.s32.totalorder %s27, 0
    %p201 = por %p199, %p200
    %s203 = sadd.s32 %s202, 1
    %p206 = scmp.eq.s32.totalorder %s21, 1
    %p207 = scmp.ne.s32.totalorder %s202, %s204
    %p208 = scmp.eq.s32.totalorder %s21, 0
    %p209 = por %p207, %p208
    %p210 = scmp.ne.s32.totalorder %s202, %s204
    %p211 = scmp.eq.s32.totalorder %s26, 1
    %p212 = por %p210, %p211
    %p213 = scmp.ne.s32.totalorder %s204, %s205
    %p214 = scmp.eq.s32.totalorder %s26, 0
    %p215 = por %p213, %p214
    %p216 = scmp.ne.s32.totalorder %s204, %s205
    %p217 = scmp.eq.s32.totalorder %s27, 1
    %p218 = por %p216, %p217
    %p220 = scmp.ne.s32.totalorder %s205, %s219
    %p221 = scmp.eq.s32.totalorder %s27, 0
    %p222 = por %p220, %p221
    %s224 = sadd.s32 %s223, 1
    %p227 = scmp.eq.s32.totalorder %s21, 1
    %p228 = scmp.ne.s32.totalorder %s223, %s225
    %p229 = scmp.eq.s32.totalorder %s21, 0
    %p230 = por %p228, %p229
    %p231 = scmp.ne.s32.totalorder %s223, %s225
    %p232 = scmp.eq.s32.totalorder %s26, 1
    %p233 = por %p231, %p232
    %p234 = scmp.ne.s32.totalorder %s225, %s226
    %p235 = scmp.eq.s32.totalorder %s26, 0
    %p236 = por %p234, %p235
    %p237 = scmp.ne.s32.totalorder %s225, %s226
    %p238 = scmp.eq.s32.totalorder %s27, 1
    %p239 = por %p237, %p238
    %p241 = scmp.ne.s32.totalorder %s226, %s240
    %p242 = scmp.eq.s32.totalorder %s27, 0
    %p243 = por %p241, %p242
    %s245 = sadd.s32 %s244, 1
    %p248 = scmp.eq.s32.totalorder %s21, 1
    %p249 = scmp.ne.s32.totalorder %s244, %s246
    %p250 = scmp.eq.s32.totalorder %s21, 0
    %p251 = por %p249, %p250
    %p252 = scmp.ne.s32.totalorder %s244, %s246
    %p253 = scmp.eq.s32.totalorder %s26, 1
    %p254 = por %p252, %p253
    %p255 = scmp.ne.s32.totalorder %s246, %s247
    %p256 = scmp.eq.s32.totalorder %s26, 0
    %p257 = por %p255, %p256
    %p258 = scmp.ne.s32.totalorder %s246, %s247
    %p259 = scmp.eq.s32.totalorder %s27, 1
    %p260 = por %p258, %p259
    %p262 = scmp.ne.s32.totalorder %s247, %s261
    %p263 = scmp.eq.s32.totalorder %s27, 0
    %p264 = por %p262, %p263
    %s266 = sadd.s32 %s265, 1
    %p269 = scmp.eq.s32.totalorder %s21, 1
    %p270 = scmp.ne.s32.totalorder %s265, %s267
    %p271 = scmp.eq.s32.totalorder %s21, 0
    %p272 = por %p270, %p271
    %p273 = scmp.ne.s32.totalorder %s265, %s267
    %p274 = scmp.eq.s32.totalorder %s26, 1
    %p275 = por %p273, %p274
    %p276 = scmp.ne.s32.totalorder %s267, %s268
    %p277 = scmp.eq.s32.totalorder %s26, 0
    %p278 = por %p276, %p277
    %p279 = scmp.ne.s32.totalorder %s267, %s268
    %p280 = scmp.eq.s32.totalorder %s27, 1
    %p281 = por %p279, %p280
    %p283 = scmp.ne.s32.totalorder %s268, %s282
    %p284 = scmp.eq.s32.totalorder %s27, 0
    %p285 = por %p283, %p284
    %s287 = sadd.s32 %s286, 1
    %p290 = scmp.eq.s32.totalorder %s21, 1
    %p291 = scmp.ne.s32.totalorder %s286, %s288
    %p292 = scmp.eq.s32.totalorder %s21, 0
    %p293 = por %p291, %p292
    %p294 = scmp.ne.s32.totalorder %s286, %s288
    %p295 = scmp.eq.s32.totalorder %s26, 1
    %p296 = por %p294, %p295
    %p297 = scmp.ne.s32.totalorder %s288, %s289
    %p298 = scmp.eq.s32.totalorder %s26, 0
    %p299 = por %p297, %p298
    %p300 = scmp.ne.s32.totalorder %s288, %s289
    %p301 = scmp.eq.s32.totalorder %s27, 1
    %p302 = por %p300, %p301
    %p304 = scmp.ne.s32.totalorder %s289, %s303
    %p305 = scmp.eq.s32.totalorder %s27, 0
    %p306 = por %p304, %p305
    %s307 = ssub.s32 %s21, %s28
    %p308 = scmp.eq.s32.totalorder %s307, 0
    %s310 = sadd.s32 %s309, 1
    %s311 = scalar_select %p308, %s309, %s310
    %p314 = pneg %p308
    %p315 = scmp.eq.s32.totalorder %s21, 1
    %p316 = por %p314, %p315
    %p317 = scmp.ne.s32.totalorder %s309, %s312
    %p318 = scmp.eq.s32.totalorder %s21, 0
    %p319 = por %p317, %p318
    %p320 = scmp.ne.s32.totalorder %s309, %s312
    %p321 = scmp.eq.s32.totalorder %s26, 1
    %p322 = por %p320, %p321
    %p323 = scmp.ne.s32.totalorder %s312, %s313
    %p324 = scmp.eq.s32.totalorder %s26, 0
    %p325 = por %p323, %p324
    %p326 = scmp.ne.s32.totalorder %s312, %s313
    %p327 = scmp.eq.s32.totalorder %s27, 1
    %p328 = por %p326, %p327
    %p330 = scmp.ne.s32.totalorder %s313, %s329
    %p331 = scmp.eq.s32.totalorder %s27, 0
    %p332 = por %p330, %p331
    %p333 = scmp.le.s32.totalorder 1, %s21
    %p334 = scmp.lt.s32.totalorder %s21, 3
    %p335 = pnand %p333, %p334
    %p336 = pneg %p335
    // Predicated region
    $region9: #{_forward_impl.1} parent=5 // pred_check
      _
    $region10: #{_forward_impl.1} parent=5 // pred_check_branch
      %338 = sbr.rel (%p335) target = $region12
    $region11: #{_forward_impl.1} parent=5 // pred_region
      %s339 = ssub.s32 %s21, 1
      // Predicated region
      $region13: #{_forward_impl.1} parent=11 // pred_check
        %p340 = pneg %p68
      $region14: #{_forward_impl.1} parent=11 // pred_check_branch
        %342 = sbr.rel (%p340) target = $region16
      $region15: #{_forward_impl.1} parent=11 // pred_region
        _
      $region16: #{_forward_impl.1} parent=11 // pred_fallthru
        _
      // Predicated region
      $region17: #{_forward_impl.1} parent=11 // pred_check
        %p343 = pneg %p89
      $region18: #{_forward_impl.1} parent=11 // pred_check_branch
        %345 = sbr.rel (%p343) target = $region20
      $region19: #{_forward_impl.1} parent=11 // pred_region
        _
      $region20: #{_forward_impl.1} parent=11 // pred_fallthru
        _
      // Predicated region
      $region21: #{_forward_impl.1} parent=11 // pred_check
        %p346 = pneg %p110
      $region22: #{_forward_impl.1} parent=11 // pred_check_branch
        %348 = sbr.rel (%p346) target = $region24
      $region23: #{_forward_impl.1} parent=11 // pred_region
        _
      $region24: #{_forward_impl.1} parent=11 // pred_fallthru
        _
      // Predicated region
      $region25: #{_forward_impl.1} parent=11 // pred_check
        %p349 = pneg %p131
      $region26: #{_forward_impl.1} parent=11 // pred_check_branch
        %351 = sbr.rel (%p349) target = $region28
      $region27: #{_forward_impl.1} parent=11 // pred_region
        _
      $region28: #{_forward_impl.1} parent=11 // pred_fallthru
        _
      // Predicated region
      $region29: #{_forward_impl.1} parent=11 // pred_check
        %p352 = pneg %p152
      $region30: #{_forward_impl.1} parent=11 // pred_check_branch
        %354 = sbr.rel (%p352) target = $region32
      $region31: #{_forward_impl.1} parent=11 // pred_region
        _
      $region32: #{_forward_impl.1} parent=11 // pred_fallthru
        _
      // Predicated region
      $region33: #{_forward_impl.1} parent=11 // pred_check
        %p355 = pneg %p173
      $region34: #{_forward_impl.1} parent=11 // pred_check_branch
        %357 = sbr.rel (%p355) target = $region36
      $region35: #{_forward_impl.1} parent=11 // pred_region
        _
      $region36: #{_forward_impl.1} parent=11 // pred_fallthru
        _
      // Predicated region
      $region37: #{_forward_impl.1} parent=11 // pred_check
        %p358 = pneg %p194
      $region38: #{_forward_impl.1} parent=11 // pred_check_branch
        %360 = sbr.rel (%p358) target = $region40
      $region39: #{_forward_impl.1} parent=11 // pred_region
        _
      $region40: #{_forward_impl.1} parent=11 // pred_fallthru
        _
      // Predicated region
      $region41: #{_forward_impl.1} parent=11 // pred_check
        %p361 = pneg %p215
      $region42: #{_forward_impl.1} parent=11 // pred_check_branch
        %363 = sbr.rel (%p361) target = $region44
      $region43: #{_forward_impl.1} parent=11 // pred_region
        _
      $region44: #{_forward_impl.1} parent=11 // pred_fallthru
        _
      // Predicated region
      $region45: #{_forward_impl.1} parent=11 // pred_check
        %p364 = pneg %p236
      $region46: #{_forward_impl.1} parent=11 // pred_check_branch
        %366 = sbr.rel (%p364) target = $region48
      $region47: #{_forward_impl.1} parent=11 // pred_region
        _
      $region48: #{_forward_impl.1} parent=11 // pred_fallthru
        _
      // Predicated region
      $region49: #{_forward_impl.1} parent=11 // pred_check
        %p367 = pneg %p257
      $region50: #{_forward_impl.1} parent=11 // pred_check_branch
        %369 = sbr.rel (%p367) target = $region52
      $region51: #{_forward_impl.1} parent=11 // pred_region
        _
      $region52: #{_forward_impl.1} parent=11 // pred_fallthru
        _
      // Predicated region
      $region53: #{_forward_impl.1} parent=11 // pred_check
        %p370 = pneg %p278
      $region54: #{_forward_impl.1} parent=11 // pred_check_branch
        %372 = sbr.rel (%p370) target = $region56
      $region55: #{_forward_impl.1} parent=11 // pred_region
        _
      $region56: #{_forward_impl.1} parent=11 // pred_fallthru
        _
      // Predicated region
      $region57: #{_forward_impl.1} parent=11 // pred_check
        %p373 = pneg %p299
      $region58: #{_forward_impl.1} parent=11 // pred_check_branch
        %375 = sbr.rel (%p373) target = $region60
      $region59: #{_forward_impl.1} parent=11 // pred_region
        _
      $region60: #{_forward_impl.1} parent=11 // pred_fallthru
        _
    $region12: #{_forward_impl.1} parent=5 // pred_fallthru
      _
    %p376 = scmp.lt.s32.totalorder %s21, 2
    // Predicated region
    $region61: #{_forward_impl.1} parent=5 // pred_check
      %p377 = pneg %p376
    $region62: #{_forward_impl.1} parent=5 // pred_check_branch
      %379 = sbr.rel (%p377) target = $region64
    $region63: #{_forward_impl.1} parent=5 // pred_region
      // Predicated region
      $region65: #{_forward_impl.1} parent=63 // pred_check
        %p380 = pneg %p41
      $region66: #{_forward_impl.1} parent=63 // pred_check_branch
        %382 = sbr.rel (%p380) target = $region68
      $region67: #{_forward_impl.1} parent=63 // pred_region
        %s383 = smul.u32 32, %s21
        %p384 = scmp.lt.s32.totalorder %s383, 63
        %s385 = scalar_select %p384, %s383, 63
        %s386 = smul.addr %s385, 4
        %s387 = scalar_lea.vmem %s0, %s386
        %s388 = smul.u32 32, %s21
      $region68: #{_forward_impl.1} parent=63 // pred_fallthru
        _
    $region64: #{_forward_impl.1} parent=5 // pred_fallthru
      _
    %p389 = scmp.le.s32.totalorder 1, %s21
    %p390 = scmp.lt.s32.totalorder %s21, 3
    %p391 = pnand %p389, %p390
    %p392 = pneg %p391
    // Predicated region
    $region69: #{_forward_impl.1} parent=5 // pred_check
      _
    $region70: #{_forward_impl.1} parent=5 // pred_check_branch
      %394 = sbr.rel (%p391) target = $region72
    $region71: #{_forward_impl.1} parent=5 // pred_region
      %s395 = ssub.s32 %s21, 1
      %s396 = smul.u32 32, %s26
      %p397 = scmp.lt.s32.totalorder %s396, 63
      %s398 = scalar_select %p397, %s396, 63
      %s399 = smul.addr %s398, 4
      %s400 = scalar_lea.vmem %s0, %s399
      %p401 = pneg %p47
      %p402 = pneg %p44
      %p403 = pneg %p68
      %p404 = pneg %p65
      %p405 = pneg %p89
      %p406 = pneg %p86
      %p407 = pneg %p110
      %p408 = pneg %p107
      %p409 = pneg %p131
      %p410 = pneg %p128
      %p411 = pneg %p152
      %p412 = pneg %p149
      %p413 = pneg %p173
      %p414 = pneg %p170
      %p415 = pneg %p194
      %p416 = pneg %p191
      %p417 = pneg %p215
      %p418 = pneg %p212
      %p419 = pneg %p236
      %p420 = pneg %p233
      %p421 = pneg %p257
      %p422 = pneg %p254
      %p423 = pneg %p278
      %p424 = pneg %p275
      %p425 = pneg %p299
      %p426 = pneg %p296
      %p427 = pneg %p325
      %p428 = pneg %p322
      %s429 = smul.u32 2, %s26
      %p430 = scmp.lt.s32.totalorder %s429, 3
      %s431 = scalar_select %p430, %s429, 3
      %s432 = scalar_lea.vmem %s13, %s431
      %s433 = smul.u32 32, %s26
      %p434 = scmp.lt.s32.totalorder %s433, 63
      %s435 = scalar_select %p434, %s433, 63
      %s436 = smul.addr %s435, 4
      %s437 = scalar_lea.vmem %s0, %s436
      %s438 = smul.u32 32, %s26
      %s439 = smul.u32 2, %s26
      %p440 = scmp.lt.s32.totalorder %s439, 3
      %s441 = scalar_select %p440, %s439, 3
      %s442 = scalar_lea.vmem %s13, %s441
      %s443 = smul.u32 2, %s26
      %v445 = vld [vmem:[%s437] sm:$0xf]
      %v446 = vld [vmem:[%s437 + $0x4] sm:$0xf]
      %v447 = vld [vmem:[%s437 + $0x8] sm:$0xf]
      %v448 = vld [vmem:[%s437 + $0xc] sm:$0xf]
      %v449 = vld [vmem:[%s437 + $0x10] sm:$0xf]
      %v450 = vld [vmem:[%s437 + $0x14] sm:$0xf]
      %v451 = vld [vmem:[%s437 + $0x18] sm:$0xf]
      %v452 = vld [vmem:[%s437 + $0x1c] sm:$0xf]
      %v453 = vld [vmem:[%s437 + $0x20] sm:$0xf]
      %v454 = vld [vmem:[%s437 + $0x24] sm:$0xf]
      %v455 = vld [vmem:[%s437 + $0x28] sm:$0xf]
      %v456 = vld [vmem:[%s437 + $0x2c] sm:$0xf]
      %v457 = vld [vmem:[%s437 + $0x30] sm:$0xf]
      %v458 = vld [vmem:[%s437 + $0x34] sm:$0xf]
      %v459 = vld [vmem:[%s437 + $0x38] sm:$0xf]
      %v460 = vld [vmem:[%s437 + $0x3c] sm:$0xf]
      %v461 = vld [vmem:[%s437 + $0x40] sm:$0xf]
      %v462 = vld [vmem:[%s437 + $0x44] sm:$0xf]
      %v463 = vld [vmem:[%s437 + $0x48] sm:$0xf]
      %v464 = vld [vmem:[%s437 + $0x4c] sm:$0xf]
      %v465 = vld [vmem:[%s437 + $0x50] sm:$0xf]
      %v466 = vld [vmem:[%s437 + $0x54] sm:$0xf]
      %v467 = vld [vmem:[%s437 + $0x58] sm:$0xf]
      %v468 = vld [vmem:[%s437 + $0x5c] sm:$0xf]
      %v469 = vld [vmem:[%s437 + $0x60] sm:$0xf]
      %v470 = vld [vmem:[%s437 + $0x64] sm:$0xf]
      %v471 = vld [vmem:[%s437 + $0x68] sm:$0xf]
      %v472 = vld [vmem:[%s437 + $0x6c] sm:$0xf]
      %v473 = vld [vmem:[%s437 + $0x70] sm:$0xf]
      %v474 = vld [vmem:[%s437 + $0x74] sm:$0xf]
      %v475 = vld [vmem:[%s437 + $0x78] sm:$0xf]
      %v476 = vld [vmem:[%s437 + $0x7c] sm:$0xf]
      %v477 = vunpack.c.l.bf16 %v445
      %v478 = vunpack.c.l.bf16 %v446
      %v479 = vunpack.c.l.bf16 %v447
      %v480 = vunpack.c.l.bf16 %v448
      %v481 = vunpack.c.l.bf16 %v449
      %v482 = vunpack.c.l.bf16 %v450
      %v483 = vunpack.c.l.bf16 %v451
      %v484 = vunpack.c.l.bf16 %v452
      %v485 = vunpack.c.l.bf16 %v453
      %v486 = vunpack.c.l.bf16 %v454
      %v487 = vunpack.c.l.bf16 %v455
      %v488 = vunpack.c.l.bf16 %v456
      %v489 = vunpack.c.l.bf16 %v457
      %v490 = vunpack.c.l.bf16 %v458
      %v491 = vunpack.c.l.bf16 %v459
      %v492 = vunpack.c.l.bf16 %v460
      %v493 = vunpack.c.l.bf16 %v461
      %v494 = vunpack.c.l.bf16 %v462
      %v495 = vunpack.c.l.bf16 %v463
      %v496 = vunpack.c.l.bf16 %v464
      %v497 = vunpack.c.l.bf16 %v465
      %v498 = vunpack.c.l.bf16 %v466
      %v499 = vunpack.c.l.bf16 %v467
      %v500 = vunpack.c.l.bf16 %v468
      %v501 = vunpack.c.l.bf16 %v469
      %v502 = vunpack.c.l.bf16 %v470
      %v503 = vunpack.c.l.bf16 %v471
      %v504 = vunpack.c.l.bf16 %v472
      %v505 = vunpack.c.l.bf16 %v473
      %v506 = vunpack.c.l.bf16 %v474
      %v507 = vunpack.c.l.bf16 %v475
      %v508 = vunpack.c.l.bf16 %v476
      %509 = vxpose.xlu0.b32.start [1/16] %v477, 128
      %510 = vxpose.xlu0.b32.cont [2/16] %v478, 128
      %511 = vxpose.xlu0.b32.cont [3/16] %v479, 128
      %512 = vxpose.xlu0.b32.cont [4/16] %v480, 128
      %513 = vxpose.xlu0.b32.cont [5/16] %v481, 128
      %514 = vxpose.xlu0.b32.cont [6/16] %v482, 128
      %515 = vxpose.xlu0.b32.cont [7/16] %v483, 128
      %516 = vxpose.xlu0.b32.cont [8/16] %v484, 128
      %517 = vxpose.xlu0.b32.cont [9/16] %v485, 128
      %518 = vxpose.xlu0.b32.cont [10/16] %v486, 128
      %519 = vxpose.xlu0.b32.cont [11/16] %v487, 128
      %520 = vxpose.xlu0.b32.cont [12/16] %v488, 128
      %521 = vxpose.xlu0.b32.cont [13/16] %v489, 128
      %522 = vxpose.xlu0.b32.cont [14/16] %v490, 128
      %523 = vxpose.xlu0.b32.cont [15/16] %v491, 128
      %524 = vxpose.xlu0.b32.end [16/16] %v492, 128
      %v525 = vpop.trf.xlu0
      %v526 = vpop.trf.xlu0
      %v527 = vpop.trf.xlu0
      %v528 = vpop.trf.xlu0
      %v529 = vpop.trf.xlu0
      %v530 = vpop.trf.xlu0
      %v531 = vpop.trf.xlu0
      %v532 = vpop.trf.xlu0
      %v533 = vpop.trf.xlu0
      %v534 = vpop.trf.xlu0
      %v535 = vpop.trf.xlu0
      %v536 = vpop.trf.xlu0
      %v537 = vpop.trf.xlu0
      %v538 = vpop.trf.xlu0
      %v539 = vpop.trf.xlu0
      %v540 = vpop.trf.xlu0
      %541 = vxpose.xlu0.b32.start [1/16] %v493, 128
      %542 = vxpose.xlu0.b32.cont [2/16] %v494, 128
      %543 = vxpose.xlu0.b32.cont [3/16] %v495, 128
      %544 = vxpose.xlu0.b32.cont [4/16] %v496, 128
      %545 = vxpose.xlu0.b32.cont [5/16] %v497, 128
      %546 = vxpose.xlu0.b32.cont [6/16] %v498, 128
      %547 = vxpose.xlu0.b32.cont [7/16] %v499, 128
      %548 = vxpose.xlu0.b32.cont [8/16] %v500, 128
      %549 = vxpose.xlu0.b32.cont [9/16] %v501, 128
      %550 = vxpose.xlu0.b32.cont [10/16] %v502, 128
      %551 = vxpose.xlu0.b32.cont [11/16] %v503, 128
      %552 = vxpose.xlu0.b32.cont [12/16] %v504, 128
      %553 = vxpose.xlu0.b32.cont [13/16] %v505, 128
      %554 = vxpose.xlu0.b32.cont [14/16] %v506, 128
      %555 = vxpose.xlu0.b32.cont [15/16] %v507, 128
      %556 = vxpose.xlu0.b32.end [16/16] %v508, 128
      %v557 = vpop.trf.xlu0
      %v558 = vpop.trf.xlu0
      %v559 = vpop.trf.xlu0
      %v560 = vpop.trf.xlu0
      %v561 = vpop.trf.xlu0
      %v562 = vpop.trf.xlu0
      %v563 = vpop.trf.xlu0
      %v564 = vpop.trf.xlu0
      %v565 = vpop.trf.xlu0
      %v566 = vpop.trf.xlu0
      %v567 = vpop.trf.xlu0
      %v568 = vpop.trf.xlu0
      %v569 = vpop.trf.xlu0
      %v570 = vpop.trf.xlu0
      %v571 = vpop.trf.xlu0
      %v572 = vpop.trf.xlu0
      %v573 = vpack.c.bf16 %v526, %v525
      %v574 = vpack.c.bf16 %v558, %v557
      %v575 = vpack.c.bf16 %v528, %v527
      %v576 = vpack.c.bf16 %v560, %v559
      %v577 = vpack.c.bf16 %v530, %v529
      %v578 = vpack.c.bf16 %v562, %v561
      %v579 = vpack.c.bf16 %v532, %v531
      %v580 = vpack.c.bf16 %v564, %v563
      %v581 = vld [vmem:[%s1] sm:$0xf]
      %v582 = vld [vmem:[%s1 + $0x4] sm:$0xf]
      %v583 = vld [vmem:[%s1 + $0x8] sm:$0xf]
      %v584 = vld [vmem:[%s1 + $0xc] sm:$0xf]
      %v585 = vld [vmem:[%s1 + $0x10] sm:$0xf]
      %v586 = vld [vmem:[%s1 + $0x14] sm:$0xf]
      %v587 = vld [vmem:[%s1 + $0x18] sm:$0xf]
      %v588 = vld [vmem:[%s1 + $0x1c] sm:$0xf]
      %v589 = vld [vmem:[%s1 + $0x20] sm:$0xf]
      %v590 = vld [vmem:[%s1 + $0x24] sm:$0xf]
      %v591 = vld [vmem:[%s1 + $0x28] sm:$0xf]
      %v592 = vld [vmem:[%s1 + $0x2c] sm:$0xf]
      %v593 = vld [vmem:[%s1 + $0x30] sm:$0xf]
      %v594 = vld [vmem:[%s1 + $0x34] sm:$0xf]
      %v595 = vld [vmem:[%s1 + $0x38] sm:$0xf]
      %v596 = vld [vmem:[%s1 + $0x3c] sm:$0xf]
      %v597 = vld [vmem:[%s1 + $0x40] sm:$0xf]
      %v598 = vld [vmem:[%s1 + $0x44] sm:$0xf]
      %v599 = vld [vmem:[%s1 + $0x48] sm:$0xf]
      %v600 = vld [vmem:[%s1 + $0x4c] sm:$0xf]
      %v601 = vld [vmem:[%s1 + $0x50] sm:$0xf]
      %v602 = vld [vmem:[%s1 + $0x54] sm:$0xf]
      %v603 = vld [vmem:[%s1 + $0x58] sm:$0xf]
      %v604 = vld [vmem:[%s1 + $0x5c] sm:$0xf]
      %v605 = vld [vmem:[%s1 + $0x60] sm:$0xf]
      %v606 = vld [vmem:[%s1 + $0x64] sm:$0xf]
      %v607 = vld [vmem:[%s1 + $0x68] sm:$0xf]
      %v608 = vld [vmem:[%s1 + $0x6c] sm:$0xf]
      %v609 = vld [vmem:[%s1 + $0x70] sm:$0xf]
      %v610 = vld [vmem:[%s1 + $0x74] sm:$0xf]
      %v611 = vld [vmem:[%s1 + $0x78] sm:$0xf]
      %v612 = vld [vmem:[%s1 + $0x7c] sm:$0xf]
      %v613 = vld [vmem:[%s1 + $0x80] sm:$0xf]
      %v614 = vld [vmem:[%s1 + $0x84] sm:$0xf]
      %v615 = vld [vmem:[%s1 + $0x88] sm:$0xf]
      %v616 = vld [vmem:[%s1 + $0x8c] sm:$0xf]
      %v617 = vld [vmem:[%s1 + $0x90] sm:$0xf]
      %v618 = vld [vmem:[%s1 + $0x94] sm:$0xf]
      %v619 = vld [vmem:[%s1 + $0x98] sm:$0xf]
      %v620 = vld [vmem:[%s1 + $0x9c] sm:$0xf]
      %v621 = vld [vmem:[%s1 + $0xa0] sm:$0xf]
      %v622 = vld [vmem:[%s1 + $0xa4] sm:$0xf]
      %v623 = vld [vmem:[%s1 + $0xa8] sm:$0xf]
      %v624 = vld [vmem:[%s1 + $0xac] sm:$0xf]
      %v625 = vld [vmem:[%s1 + $0xb0] sm:$0xf]
      %v626 = vld [vmem:[%s1 + $0xb4] sm:$0xf]
      %v627 = vld [vmem:[%s1 + $0xb8] sm:$0xf]
      %v628 = vld [vmem:[%s1 + $0xbc] sm:$0xf]
      %v629 = vld [vmem:[%s1 + $0xc0] sm:$0xf]
      %v630 = vld [vmem:[%s1 + $0xc4] sm:$0xf]
      %v631 = vld [vmem:[%s1 + $0xc8] sm:$0xf]
      %v632 = vld [vmem:[%s1 + $0xcc] sm:$0xf]
      %v633 = vld [vmem:[%s1 + $0xd0] sm:$0xf]
      %v634 = vld [vmem:[%s1 + $0xd4] sm:$0xf]
      %v635 = vld [vmem:[%s1 + $0xd8] sm:$0xf]
      %v636 = vld [vmem:[%s1 + $0xdc] sm:$0xf]
      %v637 = vld [vmem:[%s1 + $0xe0] sm:$0xf]
      %v638 = vld [vmem:[%s1 + $0xe4] sm:$0xf]
      %v639 = vld [vmem:[%s1 + $0xe8] sm:$0xf]
      %v640 = vld [vmem:[%s1 + $0xec] sm:$0xf]
      %v641 = vld [vmem:[%s1 + $0xf0] sm:$0xf]
      %v642 = vld [vmem:[%s1 + $0xf4] sm:$0xf]
      %v643 = vld [vmem:[%s1 + $0xf8] sm:$0xf]
      %v644 = vld [vmem:[%s1 + $0xfc] sm:$0xf]
      %v645 = vld [vmem:[%s2] sm:$0xff]
      %v646 = vld [vmem:[%s2 + $0x8] sm:$0xff]
      %v647 = vld [vmem:[%s2 + $0x10] sm:$0xff]
      %v648 = vld [vmem:[%s2 + $0x18] sm:$0xff]
      %v649 = vld [vmem:[%s2 + $0x20] sm:$0xff]
      %v650 = vld [vmem:[%s2 + $0x28] sm:$0xff]
      %v651 = vld [vmem:[%s2 + $0x30] sm:$0xff]
      %v652 = vld [vmem:[%s2 + $0x38] sm:$0xff]
      %v653 = vld [vmem:[%s2 + $0x40] sm:$0xff]
      %v654 = vld [vmem:[%s2 + $0x48] sm:$0xff]
      %v655 = vld [vmem:[%s2 + $0x50] sm:$0xff]
      %v656 = vld [vmem:[%s2 + $0x58] sm:$0xff]
      %v657 = vld [vmem:[%s2 + $0x60] sm:$0xff]
      %v658 = vld [vmem:[%s2 + $0x68] sm:$0xff]
      %v659 = vld [vmem:[%s2 + $0x70] sm:$0xff]
      %v660 = vld [vmem:[%s2 + $0x78] sm:$0xff]
      %v661 = vld [vmem:[%s2 + $0x80] sm:$0xff]
      %v662 = vld [vmem:[%s2 + $0x88] sm:$0xff]
      %v663 = vld [vmem:[%s2 + $0x90] sm:$0xff]
      %v664 = vld [vmem:[%s2 + $0x98] sm:$0xff]
      %v665 = vld [vmem:[%s2 + $0xa0] sm:$0xff]
      %v666 = vld [vmem:[%s2 + $0xa8] sm:$0xff]
      %v667 = vld [vmem:[%s2 + $0xb0] sm:$0xff]
      %v668 = vld [vmem:[%s2 + $0xb8] sm:$0xff]
      %v669 = vld [vmem:[%s2 + $0xc0] sm:$0xff]
      %v670 = vld [vmem:[%s2 + $0xc8] sm:$0xff]
      %v671 = vld [vmem:[%s2 + $0xd0] sm:$0xff]
      %v672 = vld [vmem:[%s2 + $0xd8] sm:$0xff]
      %v673 = vld [vmem:[%s2 + $0xe0] sm:$0xff]
      %v674 = vld [vmem:[%s2 + $0xe8] sm:$0xff]
      %v675 = vld [vmem:[%s2 + $0xf0] sm:$0xff]
      %v676 = vld [vmem:[%s2 + $0xf8] sm:$0xff]
      %v677 = vld [vmem:[%s2 + $0x100] sm:$0xff]
      %v678 = vld [vmem:[%s2 + $0x108] sm:$0xff]
      %v679 = vld [vmem:[%s2 + $0x110] sm:$0xff]
      %v680 = vld [vmem:[%s2 + $0x118] sm:$0xff]
      %v681 = vld [vmem:[%s2 + $0x120] sm:$0xff]
      %v682 = vld [vmem:[%s2 + $0x128] sm:$0xff]
      %v683 = vld [vmem:[%s2 + $0x130] sm:$0xff]
      %v684 = vld [vmem:[%s2 + $0x138] sm:$0xff]
      %v685 = vld [vmem:[%s2 + $0x140] sm:$0xff]
      %v686 = vld [vmem:[%s2 + $0x148] sm:$0xff]
      %v687 = vld [vmem:[%s2 + $0x150] sm:$0xff]
      %v688 = vld [vmem:[%s2 + $0x158] sm:$0xff]
      %v689 = vld [vmem:[%s2 + $0x160] sm:$0xff]
      %v690 = vld [vmem:[%s2 + $0x168] sm:$0xff]
      %v691 = vld [vmem:[%s2 + $0x170] sm:$0xff]
      %v692 = vld [vmem:[%s2 + $0x178] sm:$0xff]
      %v693 = vld [vmem:[%s2 + $0x180] sm:$0xff]
      %v694 = vld [vmem:[%s2 + $0x188] sm:$0xff]
      %v695 = vld [vmem:[%s2 + $0x190] sm:$0xff]
      %v696 = vld [vmem:[%s2 + $0x198] sm:$0xff]
      %v697 = vld [vmem:[%s2 + $0x1a0] sm:$0xff]
      %v698 = vld [vmem:[%s2 + $0x1a8] sm:$0xff]
      %v699 = vld [vmem:[%s2 + $0x1b0] sm:$0xff]
      %v700 = vld [vmem:[%s2 + $0x1b8] sm:$0xff]
      %v701 = vld [vmem:[%s2 + $0x1c0] sm:$0xff]
      %v702 = vld [vmem:[%s2 + $0x1c8] sm:$0xff]
      %v703 = vld [vmem:[%s2 + $0x1d0] sm:$0xff]
      %v704 = vld [vmem:[%s2 + $0x1d8] sm:$0xff]
      %v705 = vld [vmem:[%s2 + $0x1e0] sm:$0xff]
      %v706 = vld [vmem:[%s2 + $0x1e8] sm:$0xff]
      %v707 = vld [vmem:[%s2 + $0x1f0] sm:$0xff]
      %v708 = vld [vmem:[%s2 + $0x1f8] sm:$0xff]
      %710 = vset.pattern.permute.xlu0 0
      %711 = vperm.xlu0 %710, %v645
      %v712 = vpop.permute.xlu0 %711
      %715 = vset.pattern.permute.xlu0 0
      %716 = vperm.xlu0 %715, %v646
      %v717 = vpop.permute.xlu0 %716
      %720 = vset.pattern.permute.xlu0 0
      %721 = vperm.xlu0 %720, %v647
      %v722 = vpop.permute.xlu0 %721
      %725 = vset.pattern.permute.xlu0 0
      %726 = vperm.xlu0 %725, %v648
      %v727 = vpop.permute.xlu0 %726
      %730 = vset.pattern.permute.xlu0 0
      %731 = vperm.xlu0 %730, %v649
      %v732 = vpop.permute.xlu0 %731
      %735 = vset.pattern.permute.xlu0 0
      %736 = vperm.xlu0 %735, %v650
      %v737 = vpop.permute.xlu0 %736
      %740 = vset.pattern.permute.xlu0 0
      %741 = vperm.xlu0 %740, %v651
      %v742 = vpop.permute.xlu0 %741
      %745 = vset.pattern.permute.xlu0 0
      %746 = vperm.xlu0 %745, %v652
      %v747 = vpop.permute.xlu0 %746
      %750 = vset.pattern.permute.xlu0 0
      %751 = vperm.xlu0 %750, %v653
      %v752 = vpop.permute.xlu0 %751
      %755 = vset.pattern.permute.xlu0 0
      %756 = vperm.xlu0 %755, %v654
      %v757 = vpop.permute.xlu0 %756
      %760 = vset.pattern.permute.xlu0 0
      %761 = vperm.xlu0 %760, %v655
      %v762 = vpop.permute.xlu0 %761
      %765 = vset.pattern.permute.xlu0 0
      %766 = vperm.xlu0 %765, %v656
      %v767 = vpop.permute.xlu0 %766
      %770 = vset.pattern.permute.xlu0 0
      %771 = vperm.xlu0 %770, %v657
      %v772 = vpop.permute.xlu0 %771
      %775 = vset.pattern.permute.xlu0 0
      %776 = vperm.xlu0 %775, %v658
      %v777 = vpop.permute.xlu0 %776
      %780 = vset.pattern.permute.xlu0 0
      %781 = vperm.xlu0 %780, %v659
      %v782 = vpop.permute.xlu0 %781
      %785 = vset.pattern.permute.xlu0 0
      %786 = vperm.xlu0 %785, %v660
      %v787 = vpop.permute.xlu0 %786
      %790 = vset.pattern.permute.xlu0 0
      %791 = vperm.xlu0 %790, %v661
      %v792 = vpop.permute.xlu0 %791
      %795 = vset.pattern.permute.xlu0 0
      %796 = vperm.xlu0 %795, %v662
      %v797 = vpop.permute.xlu0 %796
      %800 = vset.pattern.permute.xlu0 0
      %801 = vperm.xlu0 %800, %v663
      %v802 = vpop.permute.xlu0 %801
      %805 = vset.pattern.permute.xlu0 0
      %806 = vperm.xlu0 %805, %v664
      %v807 = vpop.permute.xlu0 %806
      %810 = vset.pattern.permute.xlu0 0
      %811 = vperm.xlu0 %810, %v665
      %v812 = vpop.permute.xlu0 %811
      %815 = vset.pattern.permute.xlu0 0
      %816 = vperm.xlu0 %815, %v666
      %v817 = vpop.permute.xlu0 %816
      %820 = vset.pattern.permute.xlu0 0
      %821 = vperm.xlu0 %820, %v667
      %v822 = vpop.permute.xlu0 %821
      %825 = vset.pattern.permute.xlu0 0
      %826 = vperm.xlu0 %825, %v668
      %v827 = vpop.permute.xlu0 %826
      %830 = vset.pattern.permute.xlu0 0
      %831 = vperm.xlu0 %830, %v669
      %v832 = vpop.permute.xlu0 %831
      %835 = vset.pattern.permute.xlu0 0
      %836 = vperm.xlu0 %835, %v670
      %v837 = vpop.permute.xlu0 %836
      %840 = vset.pattern.permute.xlu0 0
      %841 = vperm.xlu0 %840, %v671
      %v842 = vpop.permute.xlu0 %841
      %845 = vset.pattern.permute.xlu0 0
      %846 = vperm.xlu0 %845, %v672
      %v847 = vpop.permute.xlu0 %846
      %850 = vset.pattern.permute.xlu0 0
      %851 = vperm.xlu0 %850, %v673
      %v852 = vpop.permute.xlu0 %851
      %855 = vset.pattern.permute.xlu0 0
      %856 = vperm.xlu0 %855, %v674
      %v857 = vpop.permute.xlu0 %856
      %860 = vset.pattern.permute.xlu0 0
      %861 = vperm.xlu0 %860, %v675
      %v862 = vpop.permute.xlu0 %861
      %865 = vset.pattern.permute.xlu0 0
      %866 = vperm.xlu0 %865, %v676
      %v867 = vpop.permute.xlu0 %866
      %870 = vset.pattern.permute.xlu0 0
      %871 = vperm.xlu0 %870, %v677
      %v872 = vpop.permute.xlu0 %871
      %875 = vset.pattern.permute.xlu0 0
      %876 = vperm.xlu0 %875, %v678
      %v877 = vpop.permute.xlu0 %876
      %880 = vset.pattern.permute.xlu0 0
      %881 = vperm.xlu0 %880, %v679
      %v882 = vpop.permute.xlu0 %881
      %885 = vset.pattern.permute.xlu0 0
      %886 = vperm.xlu0 %885, %v680
      %v887 = vpop.permute.xlu0 %886
      %890 = vset.pattern.permute.xlu0 0
      %891 = vperm.xlu0 %890, %v681
      %v892 = vpop.permute.xlu0 %891
      %895 = vset.pattern.permute.xlu0 0
      %896 = vperm.xlu0 %895, %v682
      %v897 = vpop.permute.xlu0 %896
      %900 = vset.pattern.permute.xlu0 0
      %901 = vperm.xlu0 %900, %v683
      %v902 = vpop.permute.xlu0 %901
      %905 = vset.pattern.permute.xlu0 0
      %906 = vperm.xlu0 %905, %v684
      %v907 = vpop.permute.xlu0 %906
      %910 = vset.pattern.permute.xlu0 0
      %911 = vperm.xlu0 %910, %v685
      %v912 = vpop.permute.xlu0 %911
      %915 = vset.pattern.permute.xlu0 0
      %916 = vperm.xlu0 %915, %v686
      %v917 = vpop.permute.xlu0 %916
      %920 = vset.pattern.permute.xlu0 0
      %921 = vperm.xlu0 %920, %v687
      %v922 = vpop.permute.xlu0 %921
      %925 = vset.pattern.permute.xlu0 0
      %926 = vperm.xlu0 %925, %v688
      %v927 = vpop.permute.xlu0 %926
      %930 = vset.pattern.permute.xlu0 0
      %931 = vperm.xlu0 %930, %v689
      %v932 = vpop.permute.xlu0 %931
      %935 = vset.pattern.permute.xlu0 0
      %936 = vperm.xlu0 %935, %v690
      %v937 = vpop.permute.xlu0 %936
      %940 = vset.pattern.permute.xlu0 0
      %941 = vperm.xlu0 %940, %v691
      %v942 = vpop.permute.xlu0 %941
      %945 = vset.pattern.permute.xlu0 0
      %946 = vperm.xlu0 %945, %v692
      %v947 = vpop.permute.xlu0 %946
      %950 = vset.pattern.permute.xlu0 0
      %951 = vperm.xlu0 %950, %v693
      %v952 = vpop.permute.xlu0 %951
      %955 = vset.pattern.permute.xlu0 0
      %956 = vperm.xlu0 %955, %v694
      %v957 = vpop.permute.xlu0 %956
      %960 = vset.pattern.permute.xlu0 0
      %961 = vperm.xlu0 %960, %v695
      %v962 = vpop.permute.xlu0 %961
      %965 = vset.pattern.permute.xlu0 0
      %966 = vperm.xlu0 %965, %v696
      %v967 = vpop.permute.xlu0 %966
      %970 = vset.pattern.permute.xlu0 0
      %971 = vperm.xlu0 %970, %v697
      %v972 = vpop.permute.xlu0 %971
      %975 = vset.pattern.permute.xlu0 0
      %976 = vperm.xlu0 %975, %v698
      %v977 = vpop.permute.xlu0 %976
      %980 = vset.pattern.permute.xlu0 0
      %981 = vperm.xlu0 %980, %v699
      %v982 = vpop.permute.xlu0 %981
      %985 = vset.pattern.permute.xlu0 0
      %986 = vperm.xlu0 %985, %v700
      %v987 = vpop.permute.xlu0 %986
      %990 = vset.pattern.permute.xlu0 0
      %991 = vperm.xlu0 %990, %v701
      %v992 = vpop.permute.xlu0 %991
      %995 = vset.pattern.permute.xlu0 0
      %996 = vperm.xlu0 %995, %v702
      %v997 = vpop.permute.xlu0 %996
      %1000 = vset.pattern.permute.xlu0 0
      %1001 = vperm.xlu0 %1000, %v703
      %v1002 = vpop.permute.xlu0 %1001
      %1005 = vset.pattern.permute.xlu0 0
      %1006 = vperm.xlu0 %1005, %v704
      %v1007 = vpop.permute.xlu0 %1006
      %1010 = vset.pattern.permute.xlu0 0
      %1011 = vperm.xlu0 %1010, %v705
      %v1012 = vpop.permute.xlu0 %1011
      %1015 = vset.pattern.permute.xlu0 0
      %1016 = vperm.xlu0 %1015, %v706
      %v1017 = vpop.permute.xlu0 %1016
      %1020 = vset.pattern.permute.xlu0 0
      %1021 = vperm.xlu0 %1020, %v707
      %v1022 = vpop.permute.xlu0 %1021
      %1025 = vset.pattern.permute.xlu0 0
      %1026 = vperm.xlu0 %1025, %v708
      %v1027 = vpop.permute.xlu0 %1026
      %v1093 = vunpack.c.l.b16 %v581
      %v1094 = vunpack.c.l.b16 %v582
      %v1095 = vunpack.c.l.b16 %v583
      %v1096 = vunpack.c.l.b16 %v584
      %v1097 = vunpack.c.l.b16 %v585
      %v1098 = vunpack.c.l.b16 %v586
      %v1099 = vunpack.c.l.b16 %v587
      %v1100 = vunpack.c.l.b16 %v588
      %v1101 = vunpack.c.l.b16 %v589
      %v1102 = vunpack.c.l.b16 %v590
      %v1103 = vunpack.c.l.b16 %v591
      %v1104 = vunpack.c.l.b16 %v592
      %v1105 = vunpack.c.l.b16 %v593
      %v1106 = vunpack.c.l.b16 %v594
      %v1107 = vunpack.c.l.b16 %v595
      %v1108 = vunpack.c.l.b16 %v596
      %v1109 = vunpack.c.l.b16 %v597
      %v1110 = vunpack.c.l.b16 %v598
      %v1111 = vunpack.c.l.b16 %v599
      %v1112 = vunpack.c.l.b16 %v600
      %v1113 = vunpack.c.l.b16 %v601
      %v1114 = vunpack.c.l.b16 %v602
      %v1115 = vunpack.c.l.b16 %v603
      %v1116 = vunpack.c.l.b16 %v604
      %v1117 = vunpack.c.l.b16 %v605
      %v1118 = vunpack.c.l.b16 %v606
      %v1119 = vunpack.c.l.b16 %v607
      %v1120 = vunpack.c.l.b16 %v608
      %v1121 = vunpack.c.l.b16 %v609
      %v1122 = vunpack.c.l.b16 %v610
      %v1123 = vunpack.c.l.b16 %v611
      %v1124 = vunpack.c.l.b16 %v612
      %v1125 = vunpack.c.l.b16 %v613
      %v1126 = vunpack.c.l.b16 %v614
      %v1127 = vunpack.c.l.b16 %v615
      %v1128 = vunpack.c.l.b16 %v616
      %v1129 = vunpack.c.l.b16 %v617
      %v1130 = vunpack.c.l.b16 %v618
      %v1131 = vunpack.c.l.b16 %v619
      %v1132 = vunpack.c.l.b16 %v620
      %v1133 = vunpack.c.l.b16 %v621
      %v1134 = vunpack.c.l.b16 %v622
      %v1135 = vunpack.c.l.b16 %v623
      %v1136 = vunpack.c.l.b16 %v624
      %v1137 = vunpack.c.l.b16 %v625
      %v1138 = vunpack.c.l.b16 %v626
      %v1139 = vunpack.c.l.b16 %v627
      %v1140 = vunpack.c.l.b16 %v628
      %v1141 = vunpack.c.l.b16 %v629
      %v1142 = vunpack.c.l.b16 %v630
      %v1143 = vunpack.c.l.b16 %v631
      %v1144 = vunpack.c.l.b16 %v632
      %v1145 = vunpack.c.l.b16 %v633
      %v1146 = vunpack.c.l.b16 %v634
      %v1147 = vunpack.c.l.b16 %v635
      %v1148 = vunpack.c.l.b16 %v636
      %v1149 = vunpack.c.l.b16 %v637
      %v1150 = vunpack.c.l.b16 %v638
      %v1151 = vunpack.c.l.b16 %v639
      %v1152 = vunpack.c.l.b16 %v640
      %v1153 = vunpack.c.l.b16 %v641
      %v1154 = vunpack.c.l.b16 %v642
      %v1155 = vunpack.c.l.b16 %v643
      %v1156 = vunpack.c.l.b16 %v644
      %v1157 = vpack.c.b16 %v1094, %v1093
      %v1158 = vpack.c.b16 %v1096, %v1095
      %v1159 = vpack.c.b16 %v1098, %v1097
      %v1160 = vpack.c.b16 %v1100, %v1099
      %v1161 = vpack.c.b16 %v1102, %v1101
      %v1162 = vpack.c.b16 %v1104, %v1103
      %v1163 = vpack.c.b16 %v1106, %v1105
      %v1164 = vpack.c.b16 %v1108, %v1107
      %v1165 = vpack.c.b16 %v1110, %v1109
      %v1166 = vpack.c.b16 %v1112, %v1111
      %v1167 = vpack.c.b16 %v1114, %v1113
      %v1168 = vpack.c.b16 %v1116, %v1115
      %v1169 = vpack.c.b16 %v1118, %v1117
      %v1170 = vpack.c.b16 %v1120, %v1119
      %v1171 = vpack.c.b16 %v1122, %v1121
      %v1172 = vpack.c.b16 %v1124, %v1123
      %v1173 = vpack.c.b16 %v1126, %v1125
      %v1174 = vpack.c.b16 %v1128, %v1127
      %v1175 = vpack.c.b16 %v1130, %v1129
      %v1176 = vpack.c.b16 %v1132, %v1131
      %v1177 = vpack.c.b16 %v1134, %v1133
      %v1178 = vpack.c.b16 %v1136, %v1135
      %v1179 = vpack.c.b16 %v1138, %v1137
      %v1180 = vpack.c.b16 %v1140, %v1139
      %v1181 = vpack.c.b16 %v1142, %v1141
      %v1182 = vpack.c.b16 %v1144, %v1143
      %v1183 = vpack.c.b16 %v1146, %v1145
      %v1184 = vpack.c.b16 %v1148, %v1147
      %v1185 = vpack.c.b16 %v1150, %v1149
      %v1186 = vpack.c.b16 %v1152, %v1151
      %v1187 = vpack.c.b16 %v1154, %v1153
      %v1188 = vpack.c.b16 %v1156, %v1155
      %vm1189 = vcmask 523264
      %v1191 = vsel %vm1189, %v1157, 0
      %v1194 = vsel %vm1189, %v1158, 0
      %v1197 = vsel %vm1189, %v1159, 0
      %v1200 = vsel %vm1189, %v1160, 0
      %v1203 = vsel %vm1189, %v1161, 0
      %v1206 = vsel %vm1189, %v1162, 0
      %v1209 = vsel %vm1189, %v1163, 0
      %v1212 = vsel %vm1189, %v1164, 0
      %v1215 = vsel %vm1189, %v1165, 0
      %v1218 = vsel %vm1189, %v1166, 0
      %v1221 = vsel %vm1189, %v1167, 0
      %v1224 = vsel %vm1189, %v1168, 0
      %v1227 = vsel %vm1189, %v1169, 0
      %v1230 = vsel %vm1189, %v1170, 0
      %v1233 = vsel %vm1189, %v1171, 0
      %v1236 = vsel %vm1189, %v1172, 0
      %v1239 = vsel %vm1189, %v1173, 0
      %v1242 = vsel %vm1189, %v1174, 0
      %v1245 = vsel %vm1189, %v1175, 0
      %v1248 = vsel %vm1189, %v1176, 0
      %v1251 = vsel %vm1189, %v1177, 0
      %v1254 = vsel %vm1189, %v1178, 0
      %v1257 = vsel %vm1189, %v1179, 0
      %v1260 = vsel %vm1189, %v1180, 0
      %v1263 = vsel %vm1189, %v1181, 0
      %v1266 = vsel %vm1189, %v1182, 0
      %v1269 = vsel %vm1189, %v1183, 0
      %v1272 = vsel %vm1189, %v1184, 0
      %v1275 = vsel %vm1189, %v1185, 0
      %v1278 = vsel %vm1189, %v1186, 0
      %v1281 = vsel %vm1189, %v1187, 0
      %v1284 = vsel %vm1189, %v1188, 0
      %1286 = vmatprep.subr.bf16.mxu0 %v574
      %1287 = vmatpush1.bf16.msra.mxu0 %v573
      %1288 = vmatprep.subr.bf16.mxu0 %v576
      %1289 = vmatpush1.bf16.msra.mxu0 %v575
      %1290 = vmatprep.subr.bf16.mxu0 %v578
      %1291 = vmatpush1.bf16.msra.mxu0 %v577
      %1292 = vmatprep.subr.bf16.mxu0 %v580
      %1293 = vmatpush1.bf16.msra.mxu0 %v579
      %1294 = vmatprep.subr.bf16.mxu0 0
      %1295 = vmatpush1.bf16.msra.mxu0 0
      %1296 = vmatprep.subr.bf16.mxu0 0
      %1297 = vmatpush1.bf16.msra.mxu0 0
      %1298 = vmatprep.subr.bf16.mxu0 0
      %1299 = vmatpush1.bf16.msra.mxu0 0
      %1300 = vmatprep.subr.bf16.mxu0 0
      %1301 = vmatpush1.bf16.msra.mxu0 0
      %1302 = vmatprep.subr.bf16.mxu0 0
      %1303 = vmatpush1.bf16.msra.mxu0 0
      %1304 = vmatprep.subr.bf16.mxu0 0
      %1305 = vmatpush1.bf16.msra.mxu0 0
      %1306 = vmatprep.subr.bf16.mxu0 0
      %1307 = vmatpush1.bf16.msra.mxu0 0
      %1308 = vmatprep.subr.bf16.mxu0 0
      %1309 = vmatpush1.bf16.msra.mxu0 0
      %1310 = vmatprep.subr.bf16.mxu0 0
      %1311 = vmatpush1.bf16.msra.mxu0 0
      %1312 = vmatprep.subr.bf16.mxu0 0
      %1313 = vmatpush1.bf16.msra.mxu0 0
      %1314 = vmatprep.subr.bf16.mxu0 0
      %1315 = vmatpush1.bf16.msra.mxu0 0
      %1316 = vmatprep.subr.bf16.mxu0 0
      %1317 = vmatpush1.bf16.msra.mxu0 0
      %1318 = vmatprep.mubr.bf16.mxu0 0
      %1319 = vmatmul.mubr.bf16.gmra.mrb[0].mxu0 %v1191
      %v1320 = vpop.f32.mrb[0].mxu0
      %v1321 = vadd.f32 %v712, %v1320
      %v1322 = vpop.f32.mrb[0].mxu0
      %v1323 = vadd.f32 %v712, %v1322
      %v1324 = vpop.f32.mrb[0].mxu0
      %v1325 = vadd.f32 %v717, %v1324
      %v1326 = vpop.f32.mrb[0].mxu0
      %v1327 = vadd.f32 %v717, %v1326
      %1328 = vmatprep.mubr.bf16.mxu0 0
      %1329 = vmatmul.mubr.bf16.gmra.mrb[0].mxu0 %v1194
      %v1330 = vpop.f32.mrb[0].mxu0
      %v1331 = vadd.f32 %v722, %v1330
      %v1332 = vpop.f32.mrb[0].mxu0
      %v1333 = vadd.f32 %v722, %v1332
      %v1334 = vpop.f32.mrb[0].mxu0
      %v1335 = vadd.f32 %v727, %v1334
      %v1336 = vpop.f32.mrb[0].mxu0
      %v1337 = vadd.f32 %v727, %v1336
      %1338 = vmatprep.mubr.bf16.mxu0 0
      %1339 = vmatmul.mubr.bf16.gmra.mrb[0].mxu0 %v1197
      %v1340 = vpop.f32.mrb[0].mxu0
      %v1341 = vadd.f32 %v732, %v1340
      %v1342 = vpop.f32.mrb[0].mxu0
      %v1343 = vadd.f32 %v732, %v1342
      %v1344 = vpop.f32.mrb[0].mxu0
      %v1345 = vadd.f32 %v737, %v1344
      %v1346 = vpop.f32.mrb[0].mxu0
      %v1347 = vadd.f32 %v737, %v1346
      %1348 = vmatprep.mubr.bf16.mxu0 0
      %1349 = vmatmul.mubr.bf16.gmra.mrb[0].mxu0 %v1200
      %v1350 = vpop.f32.mrb[0].mxu0
      %v1351 = vadd.f32 %v742, %v1350
      %v1352 = vpop.f32.mrb[0].mxu0
      %v1353 = vadd.f32 %v742, %v1352
      %v1354 = vpop.f32.mrb[0].mxu0
      %v1355 = vadd.f32 %v747, %v1354
      %v1356 = vpop.f32.mrb[0].mxu0
      %v1357 = vadd.f32 %v747, %v1356
      %1358 = vmatprep.mubr.bf16.mxu0 0
      %1359 = vmatmul.mubr.bf16.gmra.mrb[0].mxu0 %v1203
      %v1360 = vpop.f32.mrb[0].mxu0
      %v1361 = vadd.f32 %v752, %v1360
      %v1362 = vpop.f32.mrb[0].mxu0
      %v1363 = vadd.f32 %v752, %v1362
      %v1364 = vpop.f32.mrb[0].mxu0
      %v1365 = vadd.f32 %v757, %v1364
      %v1366 = vpop.f32.mrb[0].mxu0
      %v1367 = vadd.f32 %v757, %v1366
      %1368 = vmatprep.mubr.bf16.mxu0 0
      %1369 = vmatmul.mubr.bf16.gmra.mrb[0].mxu0 %v1206
      %v1370 = vpop.f32.mrb[0].mxu0
      %v1371 = vadd.f32 %v762, %v1370
      %v1372 = vpop.f32.mrb[0].mxu0
      %v1373 = vadd.f32 %v762, %v1372
      %v1374 = vpop.f32.mrb[0].mxu0
      %v1375 = vadd.f32 %v767, %v1374
      %v1376 = vpop.f32.mrb[0].mxu0
      %v1377 = vadd.f32 %v767, %v1376
      %1378 = vmatprep.mubr.bf16.mxu0 0
      %1379 = vmatmul.mubr.bf16.gmra.mrb[0].mxu0 %v1209
      %v1380 = vpop.f32.mrb[0].mxu0
      %v1381 = vadd.f32 %v772, %v1380
      %v1382 = vpop.f32.mrb[0].mxu0
      %v1383 = vadd.f32 %v772, %v1382
      %v1384 = vpop.f32.mrb[0].mxu0
      %v1385 = vadd.f32 %v777, %v1384
      %v1386 = vpop.f32.mrb[0].mxu0
      %v1387 = vadd.f32 %v777, %v1386
      %1388 = vmatprep.mubr.bf16.mxu0 0
      %1389 = vmatmul.mubr.bf16.gmra.mrb[0].mxu0 %v1212
      %v1390 = vpop.f32.mrb[0].mxu0
      %v1391 = vadd.f32 %v782, %v1390
      %v1392 = vpop.f32.mrb[0].mxu0
      %v1393 = vadd.f32 %v782, %v1392
      %v1394 = vpop.f32.mrb[0].mxu0
      %v1395 = vadd.f32 %v787, %v1394
      %v1396 = vpop.f32.mrb[0].mxu0
      %v1397 = vadd.f32 %v787, %v1396
      %1398 = vmatprep.mubr.bf16.mxu0 0
      %1399 = vmatmul.mubr.bf16.gmra.mrb[0].mxu0 %v1215
      %v1400 = vpop.f32.mrb[0].mxu0
      %v1401 = vadd.f32 %v792, %v1400
      %v1402 = vpop.f32.mrb[0].mxu0
      %v1403 = vadd.f32 %v792, %v1402
      %v1404 = vpop.f32.mrb[0].mxu0
      %v1405 = vadd.f32 %v797, %v1404
      %v1406 = vpop.f32.mrb[0].mxu0
      %v1407 = vadd.f32 %v797, %v1406
      %1408 = vmatprep.mubr.bf16.mxu0 0
      %1409 = vmatmul.mubr.bf16.gmra.mrb[0].mxu0 %v1218
      %v1410 = vpop.f32.mrb[0].mxu0
      %v1411 = vadd.f32 %v802, %v1410
      %v1412 = vpop.f32.mrb[0].mxu0
      %v1413 = vadd.f32 %v802, %v1412
      %v1414 = vpop.f32.mrb[0].mxu0
      %v1415 = vadd.f32 %v807, %v1414
      %v1416 = vpop.f32.mrb[0].mxu0
      %v1417 = vadd.f32 %v807, %v1416
      %1418 = vmatprep.mubr.bf16.mxu0 0
      %1419 = vmatmul.mubr.bf16.gmra.mrb[0].mxu0 %v1221
      %v1420 = vpop.f32.mrb[0].mxu0
      %v1421 = vadd.f32 %v812, %v1420
      %v1422 = vpop.f32.mrb[0].mxu0
      %v1423 = vadd.f32 %v812, %v1422
      %v1424 = vpop.f32.mrb[0].mxu0
      %v1425 = vadd.f32 %v817, %v1424
      %v1426 = vpop.f32.mrb[0].mxu0
      %v1427 = vadd.f32 %v817, %v1426
      %1428 = vmatprep.mubr.bf16.mxu0 0
      %1429 = vmatmul.mubr.bf16.gmra.mrb[0].mxu0 %v1224
      %v1430 = vpop.f32.mrb[0].mxu0
      %v1431 = vadd.f32 %v822, %v1430
      %v1432 = vpop.f32.mrb[0].mxu0
      %v1433 = vadd.f32 %v822, %v1432
      %v1434 = vpop.f32.mrb[0].mxu0
      %v1435 = vadd.f32 %v827, %v1434
      %v1436 = vpop.f32.mrb[0].mxu0
      %v1437 = vadd.f32 %v827, %v1436
      %1438 = vmatprep.mubr.bf16.mxu0 0
      %1439 = vmatmul.mubr.bf16.gmra.mrb[0].mxu0 %v1227
      %v1440 = vpop.f32.mrb[0].mxu0
      %v1441 = vadd.f32 %v832, %v1440
      %v1442 = vpop.f32.mrb[0].mxu0
      %v1443 = vadd.f32 %v832, %v1442
      %v1444 = vpop.f32.mrb[0].mxu0
      %v1445 = vadd.f32 %v837, %v1444
      %v1446 = vpop.f32.mrb[0].mxu0
      %v1447 = vadd.f32 %v837, %v1446
      %1448 = vmatprep.mubr.bf16.mxu0 0
      %1449 = vmatmul.mubr.bf16.gmra.mrb[0].mxu0 %v1230
      %v1450 = vpop.f32.mrb[0].mxu0
      %v1451 = vadd.f32 %v842, %v1450
      %v1452 = vpop.f32.mrb[0].mxu0
      %v1453 = vadd.f32 %v842, %v1452
      %v1454 = vpop.f32.mrb[0].mxu0
      %v1455 = vadd.f32 %v847, %v1454
      %v1456 = vpop.f32.mrb[0].mxu0
      %v1457 = vadd.f32 %v847, %v1456
      %1458 = vmatprep.mubr.bf16.mxu0 0
      %1459 = vmatmul.mubr.bf16.gmra.mrb[0].mxu0 %v1233
      %v1460 = vpop.f32.mrb[0].mxu0
      %v1461 = vadd.f32 %v852, %v1460
      %v1462 = vpop.f32.mrb[0].mxu0
      %v1463 = vadd.f32 %v852, %v1462
      %v1464 = vpop.f32.mrb[0].mxu0
      %v1465 = vadd.f32 %v857, %v1464
      %v1466 = vpop.f32.mrb[0].mxu0
      %v1467 = vadd.f32 %v857, %v1466
      %1468 = vmatprep.mubr.bf16.mxu0 0
      %1469 = vmatmul.mubr.bf16.gmra.mrb[0].mxu0 %v1236
      %v1470 = vpop.f32.mrb[0].mxu0
      %v1471 = vadd.f32 %v862, %v1470
      %v1472 = vpop.f32.mrb[0].mxu0
      %v1473 = vadd.f32 %v862, %v1472
      %v1474 = vpop.f32.mrb[0].mxu0
      %v1475 = vadd.f32 %v867, %v1474
      %v1476 = vpop.f32.mrb[0].mxu0
      %v1477 = vadd.f32 %v867, %v1476
      %1478 = vmatprep.mubr.bf16.mxu0 0
      %1479 = vmatmul.mubr.bf16.gmra.mrb[0].mxu0 %v1239
      %v1480 = vpop.f32.mrb[0].mxu0
      %v1481 = vadd.f32 %v872, %v1480
      %v1482 = vpop.f32.mrb[0].mxu0
      %v1483 = vadd.f32 %v872, %v1482
      %v1484 = vpop.f32.mrb[0].mxu0
      %v1485 = vadd.f32 %v877, %v1484
      %v1486 = vpop.f32.mrb[0].mxu0
      %v1487 = vadd.f32 %v877, %v1486
      %1488 = vmatprep.mubr.bf16.mxu0 0
      %1489 = vmatmul.mubr.bf16.gmra.mrb[0].mxu0 %v1242
      %v1490 = vpop.f32.mrb[0].mxu0
      %v1491 = vadd.f32 %v882, %v1490
      %v1492 = vpop.f32.mrb[0].mxu0
      %v1493 = vadd.f32 %v882, %v1492
      %v1494 = vpop.f32.mrb[0].mxu0
      %v1495 = vadd.f32 %v887, %v1494
      %v1496 = vpop.f32.mrb[0].mxu0
      %v1497 = vadd.f32 %v887, %v1496
      %1498 = vmatprep.mubr.bf16.mxu0 0
      %1499 = vmatmul.mubr.bf16.gmra.mrb[0].mxu0 %v1245
      %v1500 = vpop.f32.mrb[0].mxu0
      %v1501 = vadd.f32 %v892, %v1500
      %v1502 = vpop.f32.mrb[0].mxu0
      %v1503 = vadd.f32 %v892, %v1502
      %v1504 = vpop.f32.mrb[0].mxu0
      %v1505 = vadd.f32 %v897, %v1504
      %v1506 = vpop.f32.mrb[0].mxu0
      %v1507 = vadd.f32 %v897, %v1506
      %1508 = vmatprep.mubr.bf16.mxu0 0
      %1509 = vmatmul.mubr.bf16.gmra.mrb[0].mxu0 %v1248
      %v1510 = vpop.f32.mrb[0].mxu0
      %v1511 = vadd.f32 %v902, %v1510
      %v1512 = vpop.f32.mrb[0].mxu0
      %v1513 = vadd.f32 %v902, %v1512
      %v1514 = vpop.f32.mrb[0].mxu0
      %v1515 = vadd.f32 %v907, %v1514
      %v1516 = vpop.f32.mrb[0].mxu0
      %v1517 = vadd.f32 %v907, %v1516
      %1518 = vmatprep.mubr.bf16.mxu0 0
      %1519 = vmatmul.mubr.bf16.gmra.mrb[0].mxu0 %v1251
      %v1520 = vpop.f32.mrb[0].mxu0
      %v1521 = vadd.f32 %v912, %v1520
      %v1522 = vpop.f32.mrb[0].mxu0
      %v1523 = vadd.f32 %v912, %v1522
      %v1524 = vpop.f32.mrb[0].mxu0
      %v1525 = vadd.f32 %v917, %v1524
      %v1526 = vpop.f32.mrb[0].mxu0
      %v1527 = vadd.f32 %v917, %v1526
      %1528 = vmatprep.mubr.bf16.mxu0 0
      %1529 = vmatmul.mubr.bf16.gmra.mrb[0].mxu0 %v1254
      %v1530 = vpop.f32.mrb[0].mxu0
      %v1531 = vadd.f32 %v922, %v1530
      %v1532 = vpop.f32.mrb[0].mxu0
      %v1533 = vadd.f32 %v922, %v1532
      %v1534 = vpop.f32.mrb[0].mxu0
      %v1535 = vadd.f32 %v927, %v1534
      %v1536 = vpop.f32.mrb[0].mxu0
      %v1537 = vadd.f32 %v927, %v1536
      %1538 = vmatprep.mubr.bf16.mxu0 0
      %1539 = vmatmul.mubr.bf16.gmra.mrb[0].mxu0 %v1257
      %v1540 = vpop.f32.mrb[0].mxu0
      %v1541 = vadd.f32 %v932, %v1540
      %v1542 = vpop.f32.mrb[0].mxu0
      %v1543 = vadd.f32 %v932, %v1542
      %v1544 = vpop.f32.mrb[0].mxu0
      %v1545 = vadd.f32 %v937, %v1544
      %v1546 = vpop.f32.mrb[0].mxu0
      %v1547 = vadd.f32 %v937, %v1546
      %1548 = vmatprep.mubr.bf16.mxu0 0
      %1549 = vmatmul.mubr.bf16.gmra.mrb[0].mxu0 %v1260
      %v1550 = vpop.f32.mrb[0].mxu0
      %v1551 = vadd.f32 %v942, %v1550
      %v1552 = vpop.f32.mrb[0].mxu0
      %v1553 = vadd.f32 %v942, %v1552
      %v1554 = vpop.f32.mrb[0].mxu0
      %v1555 = vadd.f32 %v947, %v1554
      %v1556 = vpop.f32.mrb[0].mxu0
      %v1557 = vadd.f32 %v947, %v1556
      %1558 = vmatprep.mubr.bf16.mxu0 0
      %1559 = vmatmul.mubr.bf16.gmra.mrb[0].mxu0 %v1263
      %v1560 = vpop.f32.mrb[0].mxu0
      %v1561 = vadd.f32 %v952, %v1560
      %v1562 = vpop.f32.mrb[0].mxu0
      %v1563 = vadd.f32 %v952, %v1562
      %v1564 = vpop.f32.mrb[0].mxu0
      %v1565 = vadd.f32 %v957, %v1564
      %v1566 = vpop.f32.mrb[0].mxu0
      %v1567 = vadd.f32 %v957, %v1566
      %1568 = vmatprep.mubr.bf16.mxu0 0
      %1569 = vmatmul.mubr.bf16.gmra.mrb[0].mxu0 %v1266
      %v1570 = vpop.f32.mrb[0].mxu0
      %v1571 = vadd.f32 %v962, %v1570
      %v1572 = vpop.f32.mrb[0].mxu0
      %v1573 = vadd.f32 %v962, %v1572
      %v1574 = vpop.f32.mrb[0].mxu0
      %v1575 = vadd.f32 %v967, %v1574
      %v1576 = vpop.f32.mrb[0].mxu0
      %v1577 = vadd.f32 %v967, %v1576
      %1578 = vmatprep.mubr.bf16.mxu0 0
      %1579 = vmatmul.mubr.bf16.gmra.mrb[0].mxu0 %v1269
      %v1580 = vpop.f32.mrb[0].mxu0
      %v1581 = vadd.f32 %v972, %v1580
      %v1582 = vpop.f32.mrb[0].mxu0
      %v1583 = vadd.f32 %v972, %v1582
      %v1584 = vpop.f32.mrb[0].mxu0
      %v1585 = vadd.f32 %v977, %v1584
      %v1586 = vpop.f32.mrb[0].mxu0
      %v1587 = vadd.f32 %v977, %v1586
      %1588 = vmatprep.mubr.bf16.mxu0 0
      %1589 = vmatmul.mubr.bf16.gmra.mrb[0].mxu0 %v1272
      %v1590 = vpop.f32.mrb[0].mxu0
      %v1591 = vadd.f32 %v982, %v1590
      %v1592 = vpop.f32.mrb[0].mxu0
      %v1593 = vadd.f32 %v982, %v1592
      %v1594 = vpop.f32.mrb[0].mxu0
      %v1595 = vadd.f32 %v987, %v1594
      %v1596 = vpop.f32.mrb[0].mxu0
      %v1597 = vadd.f32 %v987, %v1596
      %1598 = vmatprep.mubr.bf16.mxu0 0
      %1599 = vmatmul.mubr.bf16.gmra.mrb[0].mxu0 %v1275
      %v1600 = vpop.f32.mrb[0].mxu0
      %v1601 = vadd.f32 %v992, %v1600
      %v1602 = vpop.f32.mrb[0].mxu0
      %v1603 = vadd.f32 %v992, %v1602
      %v1604 = vpop.f32.mrb[0].mxu0
      %v1605 = vadd.f32 %v997, %v1604
      %v1606 = vpop.f32.mrb[0].mxu0
      %v1607 = vadd.f32 %v997, %v1606
      %1608 = vmatprep.mubr.bf16.mxu0 0
      %1609 = vmatmul.mubr.bf16.gmra.mrb[0].mxu0 %v1278
      %v1610 = vpop.f32.mrb[0].mxu0
      %v1611 = vadd.f32 %v1002, %v1610
      %v1612 = vpop.f32.mrb[0].mxu0
      %v1613 = vadd.f32 %v1002, %v1612
      %v1614 = vpop.f32.mrb[0].mxu0
      %v1615 = vadd.f32 %v1007, %v1614
      %v1616 = vpop.f32.mrb[0].mxu0
      %v1617 = vadd.f32 %v1007, %v1616
      %1618 = vmatprep.mubr.bf16.mxu0 0
      %1619 = vmatmul.mubr.bf16.gmra.mrb[0].mxu0 %v1281
      %v1620 = vpop.f32.mrb[0].mxu0
      %v1621 = vadd.f32 %v1012, %v1620
      %v1622 = vpop.f32.mrb[0].mxu0
      %v1623 = vadd.f32 %v1012, %v1622
      %v1624 = vpop.f32.mrb[0].mxu0
      %v1625 = vadd.f32 %v1017, %v1624
      %v1626 = vpop.f32.mrb[0].mxu0
      %v1627 = vadd.f32 %v1017, %v1626
      %1628 = vmatprep.mubr.bf16.mxu0 0
      %1629 = vmatmul.mubr.bf16.gmra.mrb[0].mxu0 %v1284
      %v1630 = vpop.f32.mrb[0].mxu0
      %v1631 = vadd.f32 %v1022, %v1630
      %v1632 = vpop.f32.mrb[0].mxu0
      %v1633 = vadd.f32 %v1022, %v1632
      %v1634 = vpop.f32.mrb[0].mxu0
      %v1635 = vadd.f32 %v1027, %v1634
      %v1636 = vpop.f32.mrb[0].mxu0
      %v1637 = vadd.f32 %v1027, %v1636
      %1638 = vdwg.mxu0
      %v1639 = vmax.f32 %v1321, 0.0
      %v1640 = vmax.f32 %v1323, 0.0
      %v1641 = vmax.f32 %v1325, 0.0
      %v1642 = vmax.f32 %v1327, 0.0
      %v1643 = vmax.f32 %v1331, 0.0
      %v1644 = vmax.f32 %v1333, 0.0
      %v1645 = vmax.f32 %v1335, 0.0
      %v1646 = vmax.f32 %v1337, 0.0
      %v1647 = vmax.f32 %v1341, 0.0
      %v1648 = vmax.f32 %v1343, 0.0
      %v1649 = vmax.f32 %v1345, 0.0
      %v1650 = vmax.f32 %v1347, 0.0
      %v1651 = vmax.f32 %v1351, 0.0
      %v1652 = vmax.f32 %v1353, 0.0
      %v1653 = vmax.f32 %v1355, 0.0
      %v1654 = vmax.f32 %v1357, 0.0
      %v1655 = vmax.f32 %v1361, 0.0
      %v1656 = vmax.f32 %v1363, 0.0
      %v1657 = vmax.f32 %v1365, 0.0
      %v1658 = vmax.f32 %v1367, 0.0
      %v1659 = vmax.f32 %v1371, 0.0
      %v1660 = vmax.f32 %v1373, 0.0
      %v1661 = vmax.f32 %v1375, 0.0
      %v1662 = vmax.f32 %v1377, 0.0
      %v1663 = vmax.f32 %v1381, 0.0
      %v1664 = vmax.f32 %v1383, 0.0
      %v1665 = vmax.f32 %v1385, 0.0
      %v1666 = vmax.f32 %v1387, 0.0
      %v1667 = vmax.f32 %v1391, 0.0
      %v1668 = vmax.f32 %v1393, 0.0
      %v1669 = vmax.f32 %v1395, 0.0
      %v1670 = vmax.f32 %v1397, 0.0
      %v1671 = vmax.f32 %v1401, 0.0
      %v1672 = vmax.f32 %v1403, 0.0
      %v1673 = vmax.f32 %v1405, 0.0
      %v1674 = vmax.f32 %v1407, 0.0
      %v1675 = vmax.f32 %v1411, 0.0
      %v1676 = vmax.f32 %v1413, 0.0
      %v1677 = vmax.f32 %v1415, 0.0
      %v1678 = vmax.f32 %v1417, 0.0
      %v1679 = vmax.f32 %v1421, 0.0
      %v1680 = vmax.f32 %v1423, 0.0
      %v1681 = vmax.f32 %v1425, 0.0
      %v1682 = vmax.f32 %v1427, 0.0
      %v1683 = vmax.f32 %v1431, 0.0
      %v1684 = vmax.f32 %v1433, 0.0
      %v1685 = vmax.f32 %v1435, 0.0
      %v1686 = vmax.f32 %v1437, 0.0
      %v1687 = vmax.f32 %v1441, 0.0
      %v1688 = vmax.f32 %v1443, 0.0
      %v1689 = vmax.f32 %v1445, 0.0
      %v1690 = vmax.f32 %v1447, 0.0
      %v1691 = vmax.f32 %v1451, 0.0
      %v1692 = vmax.f32 %v1453, 0.0
      %v1693 = vmax.f32 %v1455, 0.0
      %v1694 = vmax.f32 %v1457, 0.0
      %v1695 = vmax.f32 %v1461, 0.0
      %v1696 = vmax.f32 %v1463, 0.0
      %v1697 = vmax.f32 %v1465, 0.0
      %v1698 = vmax.f32 %v1467, 0.0
      %v1699 = vmax.f32 %v1471, 0.0
      %v1700 = vmax.f32 %v1473, 0.0
      %v1701 = vmax.f32 %v1475, 0.0
      %v1702 = vmax.f32 %v1477, 0.0
      %v1703 = vmax.f32 %v1481, 0.0
      %v1704 = vmax.f32 %v1483, 0.0
      %v1705 = vmax.f32 %v1485, 0.0
      %v1706 = vmax.f32 %v1487, 0.0
      %v1707 = vmax.f32 %v1491, 0.0
      %v1708 = vmax.f32 %v1493, 0.0
      %v1709 = vmax.f32 %v1495, 0.0
      %v1710 = vmax.f32 %v1497, 0.0
      %v1711 = vmax.f32 %v1501, 0.0
      %v1712 = vmax.f32 %v1503, 0.0
      %v1713 = vmax.f32 %v1505, 0.0
      %v1714 = vmax.f32 %v1507, 0.0
      %v1715 = vmax.f32 %v1511, 0.0
      %v1716 = vmax.f32 %v1513, 0.0
      %v1717 = vmax.f32 %v1515, 0.0
      %v1718 = vmax.f32 %v1517, 0.0
      %v1719 = vmax.f32 %v1521, 0.0
      %v1720 = vmax.f32 %v1523, 0.0
      %v1721 = vmax.f32 %v1525, 0.0
      %v1722 = vmax.f32 %v1527, 0.0
      %v1723 = vmax.f32 %v1531, 0.0
      %v1724 = vmax.f32 %v1533, 0.0
      %v1725 = vmax.f32 %v1535, 0.0
      %v1726 = vmax.f32 %v1537, 0.0
      %v1727 = vmax.f32 %v1541, 0.0
      %v1728 = vmax.f32 %v1543, 0.0
      %v1729 = vmax.f32 %v1545, 0.0
      %v1730 = vmax.f32 %v1547, 0.0
      %v1731 = vmax.f32 %v1551, 0.0
      %v1732 = vmax.f32 %v1553, 0.0
      %v1733 = vmax.f32 %v1555, 0.0
      %v1734 = vmax.f32 %v1557, 0.0
      %v1735 = vmax.f32 %v1561, 0.0
      %v1736 = vmax.f32 %v1563, 0.0
      %v1737 = vmax.f32 %v1565, 0.0
      %v1738 = vmax.f32 %v1567, 0.0
      %v1739 = vmax.f32 %v1571, 0.0
      %v1740 = vmax.f32 %v1573, 0.0
      %v1741 = vmax.f32 %v1575, 0.0
      %v1742 = vmax.f32 %v1577, 0.0
      %v1743 = vmax.f32 %v1581, 0.0
      %v1744 = vmax.f32 %v1583, 0.0
      %v1745 = vmax.f32 %v1585, 0.0
      %v1746 = vmax.f32 %v1587, 0.0
      %v1747 = vmax.f32 %v1591, 0.0
      %v1748 = vmax.f32 %v1593, 0.0
      %v1749 = vmax.f32 %v1595, 0.0
      %v1750 = vmax.f32 %v1597, 0.0
      %v1751 = vmax.f32 %v1601, 0.0
      %v1752 = vmax.f32 %v1603, 0.0
      %v1753 = vmax.f32 %v1605, 0.0
      %v1754 = vmax.f32 %v1607, 0.0
      %v1755 = vmax.f32 %v1611, 0.0
      %v1756 = vmax.f32 %v1613, 0.0
      %v1757 = vmax.f32 %v1615, 0.0
      %v1758 = vmax.f32 %v1617, 0.0
      %v1759 = vmax.f32 %v1621, 0.0
      %v1760 = vmax.f32 %v1623, 0.0
      %v1761 = vmax.f32 %v1625, 0.0
      %v1762 = vmax.f32 %v1627, 0.0
      %v1763 = vmax.f32 %v1631, 0.0
      %v1764 = vmax.f32 %v1633, 0.0
      %v1765 = vmax.f32 %v1635, 0.0
      %v1766 = vmax.f32 %v1637, 0.0
      %v1767 = vpack.c.bf16 %v1641, %v1639
      %v1768 = vpack.c.bf16 %v1642, %v1640
      %v1769 = vpack.c.bf16 %v1645, %v1643
      %v1770 = vpack.c.bf16 %v1646, %v1644
      %v1771 = vpack.c.bf16 %v1649, %v1647
      %v1772 = vpack.c.bf16 %v1650, %v1648
      %v1773 = vpack.c.bf16 %v1653, %v1651
      %v1774 = vpack.c.bf16 %v1654, %v1652
      %v1775 = vpack.c.bf16 %v1657, %v1655
      %v1776 = vpack.c.bf16 %v1658, %v1656
      %v1777 = vpack.c.bf16 %v1661, %v1659
      %v1778 = vpack.c.bf16 %v1662, %v1660
      %v1779 = vpack.c.bf16 %v1665, %v1663
      %v1780 = vpack.c.bf16 %v1666, %v1664
      %v1781 = vpack.c.bf16 %v1669, %v1667
      %v1782 = vpack.c.bf16 %v1670, %v1668
      %v1783 = vpack.c.bf16 %v1673, %v1671
      %v1784 = vpack.c.bf16 %v1674, %v1672
      %v1785 = vpack.c.bf16 %v1677, %v1675
      %v1786 = vpack.c.bf16 %v1678, %v1676
      %v1787 = vpack.c.bf16 %v1681, %v1679
      %v1788 = vpack.c.bf16 %v1682, %v1680
      %v1789 = vpack.c.bf16 %v1685, %v1683
      %v1790 = vpack.c.bf16 %v1686, %v1684
      %v1791 = vpack.c.bf16 %v1689, %v1687
      %v1792 = vpack.c.bf16 %v1690, %v1688
      %v1793 = vpack.c.bf16 %v1693, %v1691
      %v1794 = vpack.c.bf16 %v1694, %v1692
      %v1795 = vpack.c.bf16 %v1697, %v1695
      %v1796 = vpack.c.bf16 %v1698, %v1696
      %v1797 = vpack.c.bf16 %v1701, %v1699
      %v1798 = vpack.c.bf16 %v1702, %v1700
      %v1799 = vpack.c.bf16 %v1705, %v1703
      %v1800 = vpack.c.bf16 %v1706, %v1704
      %v1801 = vpack.c.bf16 %v1709, %v1707
      %v1802 = vpack.c.bf16 %v1710, %v1708
      %v1803 = vpack.c.bf16 %v1713, %v1711
      %v1804 = vpack.c.bf16 %v1714, %v1712
      %v1805 = vpack.c.bf16 %v1717, %v1715
      %v1806 = vpack.c.bf16 %v1718, %v1716
      %v1807 = vpack.c.bf16 %v1721, %v1719
      %v1808 = vpack.c.bf16 %v1722, %v1720
      %v1809 = vpack.c.bf16 %v1725, %v1723
      %v1810 = vpack.c.bf16 %v1726, %v1724
      %v1811 = vpack.c.bf16 %v1729, %v1727
      %v1812 = vpack.c.bf16 %v1730, %v1728
      %v1813 = vpack.c.bf16 %v1733, %v1731
      %v1814 = vpack.c.bf16 %v1734, %v1732
      %v1815 = vpack.c.bf16 %v1737, %v1735
      %v1816 = vpack.c.bf16 %v1738, %v1736
      %v1817 = vpack.c.bf16 %v1741, %v1739
      %v1818 = vpack.c.bf16 %v1742, %v1740
      %v1819 = vpack.c.bf16 %v1745, %v1743
      %v1820 = vpack.c.bf16 %v1746, %v1744
      %v1821 = vpack.c.bf16 %v1749, %v1747
      %v1822 = vpack.c.bf16 %v1750, %v1748
      %v1823 = vpack.c.bf16 %v1753, %v1751
      %v1824 = vpack.c.bf16 %v1754, %v1752
      %v1825 = vpack.c.bf16 %v1757, %v1755
      %v1826 = vpack.c.bf16 %v1758, %v1756
      %v1827 = vpack.c.bf16 %v1761, %v1759
      %v1828 = vpack.c.bf16 %v1762, %v1760
      %v1829 = vpack.c.bf16 %v1765, %v1763
      %v1830 = vpack.c.bf16 %v1766, %v1764
      %v1831 = vld [vmem:[%s3] sm:$0xff]
      %v1832 = vld [vmem:[%s3 + $0x8] sm:$0xff]
      %v1833 = vld [vmem:[%s3 + $0x10] sm:$0xff]
      %v1834 = vld [vmem:[%s3 + $0x18] sm:$0xff]
      %v1835 = vld [vmem:[%s3 + $0x20] sm:$0xff]
      %v1836 = vld [vmem:[%s3 + $0x28] sm:$0xff]
      %v1837 = vld [vmem:[%s3 + $0x30] sm:$0xff]
      %v1838 = vld [vmem:[%s3 + $0x38] sm:$0xff]
      %v1839 = vld [vmem:[%s3 + $0x40] sm:$0xff]
      %v1840 = vld [vmem:[%s3 + $0x48] sm:$0xff]
      %v1841 = vld [vmem:[%s3 + $0x50] sm:$0xff]
      %v1842 = vld [vmem:[%s3 + $0x58] sm:$0xff]
      %v1843 = vld [vmem:[%s3 + $0x60] sm:$0xff]
      %v1844 = vld [vmem:[%s3 + $0x68] sm:$0xff]
      %v1845 = vld [vmem:[%s3 + $0x70] sm:$0xff]
      %v1846 = vld [vmem:[%s3 + $0x78] sm:$0xff]
      %v1847 = vld [vmem:[%s3 + $0x80] sm:$0xff]
      %v1848 = vld [vmem:[%s3 + $0x88] sm:$0xff]
      %v1849 = vld [vmem:[%s3 + $0x90] sm:$0xff]
      %v1850 = vld [vmem:[%s3 + $0x98] sm:$0xff]
      %v1851 = vld [vmem:[%s3 + $0xa0] sm:$0xff]
      %v1852 = vld [vmem:[%s3 + $0xa8] sm:$0xff]
      %v1853 = vld [vmem:[%s3 + $0xb0] sm:$0xff]
      %v1854 = vld [vmem:[%s3 + $0xb8] sm:$0xff]
      %v1855 = vld [vmem:[%s3 + $0xc0] sm:$0xff]
      %v1856 = vld [vmem:[%s3 + $0xc8] sm:$0xff]
      %v1857 = vld [vmem:[%s3 + $0xd0] sm:$0xff]
      %v1858 = vld [vmem:[%s3 + $0xd8] sm:$0xff]
      %v1859 = vld [vmem:[%s3 + $0xe0] sm:$0xff]
      %v1860 = vld [vmem:[%s3 + $0xe8] sm:$0xff]
      %v1861 = vld [vmem:[%s3 + $0xf0] sm:$0xff]
      %v1862 = vld [vmem:[%s3 + $0xf8] sm:$0xff]
      %v1863 = vld [vmem:[%s3 + $0x100] sm:$0xff]
      %v1864 = vld [vmem:[%s3 + $0x108] sm:$0xff]
      %v1865 = vld [vmem:[%s3 + $0x110] sm:$0xff]
      %v1866 = vld [vmem:[%s3 + $0x118] sm:$0xff]
      %v1867 = vld [vmem:[%s3 + $0x120] sm:$0xff]
      %v1868 = vld [vmem:[%s3 + $0x128] sm:$0xff]
      %v1869 = vld [vmem:[%s3 + $0x130] sm:$0xff]
      %v1870 = vld [vmem:[%s3 + $0x138] sm:$0xff]
      %v1871 = vld [vmem:[%s3 + $0x140] sm:$0xff]
      %v1872 = vld [vmem:[%s3 + $0x148] sm:$0xff]
      %v1873 = vld [vmem:[%s3 + $0x150] sm:$0xff]
      %v1874 = vld [vmem:[%s3 + $0x158] sm:$0xff]
      %v1875 = vld [vmem:[%s3 + $0x160] sm:$0xff]
      %v1876 = vld [vmem:[%s3 + $0x168] sm:$0xff]
      %v1877 = vld [vmem:[%s3 + $0x170] sm:$0xff]
      %v1878 = vld [vmem:[%s3 + $0x178] sm:$0xff]
      %v1879 = vld [vmem:[%s3 + $0x180] sm:$0xff]
      %v1880 = vld [vmem:[%s3 + $0x188] sm:$0xff]
      %v1881 = vld [vmem:[%s3 + $0x190] sm:$0xff]
      %v1882 = vld [vmem:[%s3 + $0x198] sm:$0xff]
      %v1883 = vld [vmem:[%s3 + $0x1a0] sm:$0xff]
      %v1884 = vld [vmem:[%s3 + $0x1a8] sm:$0xff]
      %v1885 = vld [vmem:[%s3 + $0x1b0] sm:$0xff]
      %v1886 = vld [vmem:[%s3 + $0x1b8] sm:$0xff]
      %v1887 = vld [vmem:[%s3 + $0x1c0] sm:$0xff]
      %v1888 = vld [vmem:[%s3 + $0x1c8] sm:$0xff]
      %v1889 = vld [vmem:[%s3 + $0x1d0] sm:$0xff]
      %v1890 = vld [vmem:[%s3 + $0x1d8] sm:$0xff]
      %v1891 = vld [vmem:[%s3 + $0x1e0] sm:$0xff]
      %v1892 = vld [vmem:[%s3 + $0x1e8] sm:$0xff]
      %v1893 = vld [vmem:[%s3 + $0x1f0] sm:$0xff]
      %v1894 = vld [vmem:[%s3 + $0x1f8] sm:$0xff]
      %v1895 = vld [vmem:[%s4] sm:$0xff]
      %v1896 = vld [vmem:[%s4 + $0x8] sm:$0xff]
      %v1897 = vld [vmem:[%s4 + $0x10] sm:$0xff]
      %v1898 = vld [vmem:[%s4 + $0x18] sm:$0xff]
      %v1899 = vld [vmem:[%s4 + $0x20] sm:$0xff]
      %v1900 = vld [vmem:[%s4 + $0x28] sm:$0xff]
      %v1901 = vld [vmem:[%s4 + $0x30] sm:$0xff]
      %v1902 = vld [vmem:[%s4 + $0x38] sm:$0xff]
      %v1903 = vld [vmem:[%s4 + $0x40] sm:$0xff]
      %v1904 = vld [vmem:[%s4 + $0x48] sm:$0xff]
      %v1905 = vld [vmem:[%s4 + $0x50] sm:$0xff]
      %v1906 = vld [vmem:[%s4 + $0x58] sm:$0xff]
      %v1907 = vld [vmem:[%s4 + $0x60] sm:$0xff]
      %v1908 = vld [vmem:[%s4 + $0x68] sm:$0xff]
      %v1909 = vld [vmem:[%s4 + $0x70] sm:$0xff]
      %v1910 = vld [vmem:[%s4 + $0x78] sm:$0xff]
      %v1911 = vld [vmem:[%s4 + $0x80] sm:$0xff]
      %v1912 = vld [vmem:[%s4 + $0x88] sm:$0xff]
      %v1913 = vld [vmem:[%s4 + $0x90] sm:$0xff]
      %v1914 = vld [vmem:[%s4 + $0x98] sm:$0xff]
      %v1915 = vld [vmem:[%s4 + $0xa0] sm:$0xff]
      %v1916 = vld [vmem:[%s4 + $0xa8] sm:$0xff]
      %v1917 = vld [vmem:[%s4 + $0xb0] sm:$0xff]
      %v1918 = vld [vmem:[%s4 + $0xb8] sm:$0xff]
      %v1919 = vld [vmem:[%s4 + $0xc0] sm:$0xff]
      %v1920 = vld [vmem:[%s4 + $0xc8] sm:$0xff]
      %v1921 = vld [vmem:[%s4 + $0xd0] sm:$0xff]
      %v1922 = vld [vmem:[%s4 + $0xd8] sm:$0xff]
      %v1923 = vld [vmem:[%s4 + $0xe0] sm:$0xff]
      %v1924 = vld [vmem:[%s4 + $0xe8] sm:$0xff]
      %v1925 = vld [vmem:[%s4 + $0xf0] sm:$0xff]
      %v1926 = vld [vmem:[%s4 + $0xf8] sm:$0xff]
      %1928 = vset.pattern.permute.xlu0 0
      %1929 = vperm.xlu0 %1928, %v1895
      %v1930 = vpop.permute.xlu0 %1929
      %1933 = vset.pattern.permute.xlu0 0
      %1934 = vperm.xlu0 %1933, %v1896
      %v1935 = vpop.permute.xlu0 %1934
      %1938 = vset.pattern.permute.xlu0 0
      %1939 = vperm.xlu0 %1938, %v1897
      %v1940 = vpop.permute.xlu0 %1939
      %1943 = vset.pattern.permute.xlu0 0
      %1944 = vperm.xlu0 %1943, %v1898
      %v1945 = vpop.permute.xlu0 %1944
      %1948 = vset.pattern.permute.xlu0 0
      %1949 = vperm.xlu0 %1948, %v1899
      %v1950 = vpop.permute.xlu0 %1949
      %1953 = vset.pattern.permute.xlu0 0
      %1954 = vperm.xlu0 %1953, %v1900
      %v1955 = vpop.permute.xlu0 %1954
      %1958 = vset.pattern.permute.xlu0 0
      %1959 = vperm.xlu0 %1958, %v1901
      %v1960 = vpop.permute.xlu0 %1959
      %1963 = vset.pattern.permute.xlu0 0
      %1964 = vperm.xlu0 %1963, %v1902
      %v1965 = vpop.permute.xlu0 %1964
      %1968 = vset.pattern.permute.xlu0 0
      %1969 = vperm.xlu0 %1968, %v1903
      %v1970 = vpop.permute.xlu0 %1969
      %1973 = vset.pattern.permute.xlu0 0
      %1974 = vperm.xlu0 %1973, %v1904
      %v1975 = vpop.permute.xlu0 %1974
      %1978 = vset.pattern.permute.xlu0 0
      %1979 = vperm.xlu0 %1978, %v1905
      %v1980 = vpop.permute.xlu0 %1979
      %1983 = vset.pattern.permute.xlu0 0
      %1984 = vperm.xlu0 %1983, %v1906
      %v1985 = vpop.permute.xlu0 %1984
      %1988 = vset.pattern.permute.xlu0 0
      %1989 = vperm.xlu0 %1988, %v1907
      %v1990 = vpop.permute.xlu0 %1989
      %1993 = vset.pattern.permute.xlu0 0
      %1994 = vperm.xlu0 %1993, %v1908
      %v1995 = vpop.permute.xlu0 %1994
      %1998 = vset.pattern.permute.xlu0 0
      %1999 = vperm.xlu0 %1998, %v1909
      %v2000 = vpop.permute.xlu0 %1999
      %2003 = vset.pattern.permute.xlu0 0
      %2004 = vperm.xlu0 %2003, %v1910
      %v2005 = vpop.permute.xlu0 %2004
      %2008 = vset.pattern.permute.xlu0 0
      %2009 = vperm.xlu0 %2008, %v1911
      %v2010 = vpop.permute.xlu0 %2009
      %2013 = vset.pattern.permute.xlu0 0
      %2014 = vperm.xlu0 %2013, %v1912
      %v2015 = vpop.permute.xlu0 %2014
      %2018 = vset.pattern.permute.xlu0 0
      %2019 = vperm.xlu0 %2018, %v1913
      %v2020 = vpop.permute.xlu0 %2019
      %2023 = vset.pattern.permute.xlu0 0
      %2024 = vperm.xlu0 %2023, %v1914
      %v2025 = vpop.permute.xlu0 %2024
      %2028 = vset.pattern.permute.xlu0 0
      %2029 = vperm.xlu0 %2028, %v1915
      %v2030 = vpop.permute.xlu0 %2029
      %2033 = vset.pattern.permute.xlu0 0
      %2034 = vperm.xlu0 %2033, %v1916
      %v2035 = vpop.permute.xlu0 %2034
      %2038 = vset.pattern.permute.xlu0 0
      %2039 = vperm.xlu0 %2038, %v1917
      %v2040 = vpop.permute.xlu0 %2039
      %2043 = vset.pattern.permute.xlu0 0
      %2044 = vperm.xlu0 %2043, %v1918
      %v2045 = vpop.permute.xlu0 %2044
      %2048 = vset.pattern.permute.xlu0 0
      %2049 = vperm.xlu0 %2048, %v1919
      %v2050 = vpop.permute.xlu0 %2049
      %2053 = vset.pattern.permute.xlu0 0
      %2054 = vperm.xlu0 %2053, %v1920
      %v2055 = vpop.permute.xlu0 %2054
      %2058 = vset.pattern.permute.xlu0 0
      %2059 = vperm.xlu0 %2058, %v1921
      %v2060 = vpop.permute.xlu0 %2059
      %2063 = vset.pattern.permute.xlu0 0
      %2064 = vperm.xlu0 %2063, %v1922
      %v2065 = vpop.permute.xlu0 %2064
      %2068 = vset.pattern.permute.xlu0 0
      %2069 = vperm.xlu0 %2068, %v1923
      %v2070 = vpop.permute.xlu0 %2069
      %2073 = vset.pattern.permute.xlu0 0
      %2074 = vperm.xlu0 %2073, %v1924
      %v2075 = vpop.permute.xlu0 %2074
      %2078 = vset.pattern.permute.xlu0 0
      %2079 = vperm.xlu0 %2078, %v1925
      %v2080 = vpop.permute.xlu0 %2079
      %2083 = vset.pattern.permute.xlu0 0
      %2084 = vperm.xlu0 %2083, %v1926
      %v2085 = vpop.permute.xlu0 %2084
      %v2151 = vunpack.c.l.b16 %v1831
      %v2152 = vunpack.c.h.b16 %v1831
      %v2153 = vunpack.c.l.b16 %v1832
      %v2154 = vunpack.c.h.b16 %v1832
      %v2155 = vunpack.c.l.b16 %v1833
      %v2156 = vunpack.c.h.b16 %v1833
      %v2157 = vunpack.c.l.b16 %v1834
      %v2158 = vunpack.c.h.b16 %v1834
      %v2159 = vunpack.c.l.b16 %v1835
      %v2160 = vunpack.c.h.b16 %v1835
      %v2161 = vunpack.c.l.b16 %v1836
      %v2162 = vunpack.c.h.b16 %v1836
      %v2163 = vunpack.c.l.b16 %v1837
      %v2164 = vunpack.c.h.b16 %v1837
      %v2165 = vunpack.c.l.b16 %v1838
      %v2166 = vunpack.c.h.b16 %v1838
      %v2167 = vunpack.c.l.b16 %v1839
      %v2168 = vunpack.c.h.b16 %v1839
      %v2169 = vunpack.c.l.b16 %v1840
      %v2170 = vunpack.c.h.b16 %v1840
      %v2171 = vunpack.c.l.b16 %v1841
      %v2172 = vunpack.c.h.b16 %v1841
      %v2173 = vunpack.c.l.b16 %v1842
      %v2174 = vunpack.c.h.b16 %v1842
      %v2175 = vunpack.c.l.b16 %v1843
      %v2176 = vunpack.c.h.b16 %v1843
      %v2177 = vunpack.c.l.b16 %v1844
      %v2178 = vunpack.c.h.b16 %v1844
      %v2179 = vunpack.c.l.b16 %v1845
      %v2180 = vunpack.c.h.b16 %v1845
      %v2181 = vunpack.c.l.b16 %v1846
      %v2182 = vunpack.c.h.b16 %v1846
      %v2183 = vunpack.c.l.b16 %v1847
      %v2184 = vunpack.c.h.b16 %v1847
      %v2185 = vunpack.c.l.b16 %v1848
      %v2186 = vunpack.c.h.b16 %v1848
      %v2187 = vunpack.c.l.b16 %v1849
      %v2188 = vunpack.c.h.b16 %v1849
      %v2189 = vunpack.c.l.b16 %v1850
      %v2190 = vunpack.c.h.b16 %v1850
      %v2191 = vunpack.c.l.b16 %v1851
      %v2192 = vunpack.c.h.b16 %v1851
      %v2193 = vunpack.c.l.b16 %v1852
      %v2194 = vunpack.c.h.b16 %v1852
      %v2195 = vunpack.c.l.b16 %v1853
      %v2196 = vunpack.c.h.b16 %v1853
      %v2197 = vunpack.c.l.b16 %v1854
      %v2198 = vunpack.c.h.b16 %v1854
      %v2199 = vunpack.c.l.b16 %v1855
      %v2200 = vunpack.c.h.b16 %v1855
      %v2201 = vunpack.c.l.b16 %v1856
      %v2202 = vunpack.c.h.b16 %v1856
      %v2203 = vunpack.c.l.b16 %v1857
      %v2204 = vunpack.c.h.b16 %v1857
      %v2205 = vunpack.c.l.b16 %v1858
      %v2206 = vunpack.c.h.b16 %v1858
      %v2207 = vunpack.c.l.b16 %v1859
      %v2208 = vunpack.c.h.b16 %v1859
      %v2209 = vunpack.c.l.b16 %v1860
      %v2210 = vunpack.c.h.b16 %v1860
      %v2211 = vunpack.c.l.b16 %v1861
      %v2212 = vunpack.c.h.b16 %v1861
      %v2213 = vunpack.c.l.b16 %v1862
      %v2214 = vunpack.c.h.b16 %v1862
      %v2215 = vunpack.c.l.b16 %v1863
      %v2216 = vunpack.c.h.b16 %v1863
      %v2217 = vunpack.c.l.b16 %v1864
      %v2218 = vunpack.c.h.b16 %v1864
      %v2219 = vunpack.c.l.b16 %v1865
      %v2220 = vunpack.c.h.b16 %v1865
      %v2221 = vunpack.c.l.b16 %v1866
      %v2222 = vunpack.c.h.b16 %v1866
      %v2223 = vunpack.c.l.b16 %v1867
      %v2224 = vunpack.c.h.b16 %v1867
      %v2225 = vunpack.c.l.b16 %v1868
      %v2226 = vunpack.c.h.b16 %v1868
      %v2227 = vunpack.c.l.b16 %v1869
      %v2228 = vunpack.c.h.b16 %v1869
      %v2229 = vunpack.c.l.b16 %v1870
      %v2230 = vunpack.c.h.b16 %v1870
      %v2231 = vunpack.c.l.b16 %v1871
      %v2232 = vunpack.c.h.b16 %v1871
      %v2233 = vunpack.c.l.b16 %v1872
      %v2234 = vunpack.c.h.b16 %v1872
      %v2235 = vunpack.c.l.b16 %v1873
      %v2236 = vunpack.c.h.b16 %v1873
      %v2237 = vunpack.c.l.b16 %v1874
      %v2238 = vunpack.c.h.b16 %v1874
      %v2239 = vunpack.c.l.b16 %v1875
      %v2240 = vunpack.c.h.b16 %v1875
      %v2241 = vunpack.c.l.b16 %v1876
      %v2242 = vunpack.c.h.b16 %v1876
      %v2243 = vunpack.c.l.b16 %v1877
      %v2244 = vunpack.c.h.b16 %v1877
      %v2245 = vunpack.c.l.b16 %v1878
      %v2246 = vunpack.c.h.b16 %v1878
      %v2247 = vunpack.c.l.b16 %v1879
      %v2248 = vunpack.c.h.b16 %v1879
      %v2249 = vunpack.c.l.b16 %v1880
      %v2250 = vunpack.c.h.b16 %v1880
      %v2251 = vunpack.c.l.b16 %v1881
      %v2252 = vunpack.c.h.b16 %v1881
      %v2253 = vunpack.c.l.b16 %v1882
      %v2254 = vunpack.c.h.b16 %v1882
      %v2255 = vunpack.c.l.b16 %v1883
      %v2256 = vunpack.c.h.b16 %v1883
      %v2257 = vunpack.c.l.b16 %v1884
      %v2258 = vunpack.c.h.b16 %v1884
      %v2259 = vunpack.c.l.b16 %v1885
      %v2260 = vunpack.c.h.b16 %v1885
      %v2261 = vunpack.c.l.b16 %v1886
      %v2262 = vunpack.c.h.b16 %v1886
      %v2263 = vunpack.c.l.b16 %v1887
      %v2264 = vunpack.c.h.b16 %v1887
      %v2265 = vunpack.c.l.b16 %v1888
      %v2266 = vunpack.c.h.b16 %v1888
      %v2267 = vunpack.c.l.b16 %v1889
      %v2268 = vunpack.c.h.b16 %v1889
      %v2269 = vunpack.c.l.b16 %v1890
      %v2270 = vunpack.c.h.b16 %v1890
      %v2271 = vunpack.c.l.b16 %v1891
      %v2272 = vunpack.c.h.b16 %v1891
      %v2273 = vunpack.c.l.b16 %v1892
      %v2274 = vunpack.c.h.b16 %v1892
      %v2275 = vunpack.c.l.b16 %v1893
      %v2276 = vunpack.c.h.b16 %v1893
      %v2277 = vunpack.c.l.b16 %v1894
      %v2278 = vunpack.c.h.b16 %v1894
      %v2279 = vpack.c.b16 %v2155, %v2151
      %v2280 = vpack.c.b16 %v2156, %v2152
      %v2281 = vpack.c.b16 %v2157, %v2153
      %v2282 = vpack.c.b16 %v2158, %v2154
      %v2283 = vpack.c.b16 %v2163, %v2159
      %v2284 = vpack.c.b16 %v2164, %v2160
      %v2285 = vpack.c.b16 %v2165, %v2161
      %v2286 = vpack.c.b16 %v2166, %v2162
      %v2287 = vpack.c.b16 %v2171, %v2167
      %v2288 = vpack.c.b16 %v2172, %v2168
      %v2289 = vpack.c.b16 %v2173, %v2169
      %v2290 = vpack.c.b16 %v2174, %v2170
      %v2291 = vpack.c.b16 %v2179, %v2175
      %v2292 = vpack.c.b16 %v2180, %v2176
      %v2293 = vpack.c.b16 %v2181, %v2177
      %v2294 = vpack.c.b16 %v2182, %v2178
      %v2295 = vpack.c.b16 %v2187, %v2183
      %v2296 = vpack.c.b16 %v2188, %v2184
      %v2297 = vpack.c.b16 %v2189, %v2185
      %v2298 = vpack.c.b16 %v2190, %v2186
      %v2299 = vpack.c.b16 %v2195, %v2191
      %v2300 = vpack.c.b16 %v2196, %v2192
      %v2301 = vpack.c.b16 %v2197, %v2193
      %v2302 = vpack.c.b16 %v2198, %v2194
      %v2303 = vpack.c.b16 %v2203, %v2199
      %v2304 = vpack.c.b16 %v2204, %v2200
      %v2305 = vpack.c.b16 %v2205, %v2201
      %v2306 = vpack.c.b16 %v2206, %v2202
      %v2307 = vpack.c.b16 %v2211, %v2207
      %v2308 = vpack.c.b16 %v2212, %v2208
      %v2309 = vpack.c.b16 %v2213, %v2209
      %v2310 = vpack.c.b16 %v2214, %v2210
      %v2311 = vpack.c.b16 %v2219, %v2215
      %v2312 = vpack.c.b16 %v2220, %v2216
      %v2313 = vpack.c.b16 %v2221, %v2217
      %v2314 = vpack.c.b16 %v2222, %v2218
      %v2315 = vpack.c.b16 %v2227, %v2223
      %v2316 = vpack.c.b16 %v2228, %v2224
      %v2317 = vpack.c.b16 %v2229, %v2225
      %v2318 = vpack.c.b16 %v2230, %v2226
      %v2319 = vpack.c.b16 %v2235, %v2231
      %v2320 = vpack.c.b16 %v2236, %v2232
      %v2321 = vpack.c.b16 %v2237, %v2233
      %v2322 = vpack.c.b16 %v2238, %v2234
      %v2323 = vpack.c.b16 %v2243, %v2239
      %v2324 = vpack.c.b16 %v2244, %v2240
      %v2325 = vpack.c.b16 %v2245, %v2241
      %v2326 = vpack.c.b16 %v2246, %v2242
      %v2327 = vpack.c.b16 %v2251, %v2247
      %v2328 = vpack.c.b16 %v2252, %v2248
      %v2329 = vpack.c.b16 %v2253, %v2249
      %v2330 = vpack.c.b16 %v2254, %v2250
      %v2331 = vpack.c.b16 %v2259, %v2255
      %v2332 = vpack.c.b16 %v2260, %v2256
      %v2333 = vpack.c.b16 %v2261, %v2257
      %v2334 = vpack.c.b16 %v2262, %v2258
      %v2335 = vpack.c.b16 %v2267, %v2263
      %v2336 = vpack.c.b16 %v2268, %v2264
      %v2337 = vpack.c.b16 %v2269, %v2265
      %v2338 = vpack.c.b16 %v2270, %v2266
      %v2339 = vpack.c.b16 %v2275, %v2271
      %v2340 = vpack.c.b16 %v2276, %v2272
      %v2341 = vpack.c.b16 %v2277, %v2273
      %v2342 = vpack.c.b16 %v2278, %v2274
      %2407 = vmatprep.subr.bf16.mxu0 %v1768
      %2408 = vmatpush1.bf16.msra.mxu0 %v1767
      %2409 = vmatprep.subr.bf16.mxu0 %v1770
      %2410 = vmatpush1.bf16.msra.mxu0 %v1769
      %2411 = vmatprep.subr.bf16.mxu0 %v1772
      %2412 = vmatpush1.bf16.msra.mxu0 %v1771
      %2413 = vmatprep.subr.bf16.mxu0 %v1774
      %2414 = vmatpush1.bf16.msra.mxu0 %v1773
      %2415 = vmatprep.subr.bf16.mxu0 %v1776
      %2416 = vmatpush1.bf16.msra.mxu0 %v1775
      %2417 = vmatprep.subr.bf16.mxu0 %v1778
      %2418 = vmatpush1.bf16.msra.mxu0 %v1777
      %2419 = vmatprep.subr.bf16.mxu0 %v1780
      %2420 = vmatpush1.bf16.msra.mxu0 %v1779
      %2421 = vmatprep.subr.bf16.mxu0 %v1782
      %2422 = vmatpush1.bf16.msra.mxu0 %v1781
      %2423 = vmatprep.subr.bf16.mxu0 %v1784
      %2424 = vmatpush1.bf16.msra.mxu0 %v1783
      %2425 = vmatprep.subr.bf16.mxu0 %v1786
      %2426 = vmatpush1.bf16.msra.mxu0 %v1785
      %2427 = vmatprep.subr.bf16.mxu0 %v1788
      %2428 = vmatpush1.bf16.msra.mxu0 %v1787
      %2429 = vmatprep.subr.bf16.mxu0 %v1790
      %2430 = vmatpush1.bf16.msra.mxu0 %v1789
      %2431 = vmatprep.subr.bf16.mxu0 %v1792
      %2432 = vmatpush1.bf16.msra.mxu0 %v1791
      %2433 = vmatprep.subr.bf16.mxu0 %v1794
      %2434 = vmatpush1.bf16.msra.mxu0 %v1793
      %2435 = vmatprep.subr.bf16.mxu0 %v1796
      %2436 = vmatpush1.bf16.msra.mxu0 %v1795
      %2437 = vmatprep.subr.bf16.mxu0 %v1798
      %2438 = vmatpush1.bf16.msra.mxu0 %v1797
      %2439 = vmatprep.mubr.bf16.mxu0 %v2280
      %2440 = vmatmul.mubr.bf16.gmra.mrb[0].mxu0 %v2279
      %v2441 = vpop.f32.mrb[0].mxu0
      %v2442 = vadd.f32 %v1930, %v2441
      %v2443 = vpop.f32.mrb[0].mxu0
      %v2444 = vadd.f32 %v1930, %v2443
      %v2445 = vpop.f32.mrb[0].mxu0
      %v2446 = vadd.f32 %v1935, %v2445
      %v2447 = vpop.f32.mrb[0].mxu0
      %v2448 = vadd.f32 %v1935, %v2447
      %2449 = vmatprep.mubr.bf16.mxu0 %v2284
      %2450 = vmatmul.mubr.bf16.gmra.mrb[0].mxu0 %v2283
      %v2451 = vpop.f32.mrb[0].mxu0
      %v2452 = vadd.f32 %v1940, %v2451
      %v2453 = vpop.f32.mrb[0].mxu0
      %v2454 = vadd.f32 %v1940, %v2453
      %v2455 = vpop.f32.mrb[0].mxu0
      %v2456 = vadd.f32 %v1945, %v2455
      %v2457 = vpop.f32.mrb[0].mxu0
      %v2458 = vadd.f32 %v1945, %v2457
      %2459 = vmatprep.mubr.bf16.mxu0 %v2288
      %2460 = vmatmul.mubr.bf16.gmra.mrb[0].mxu0 %v2287
      %v2461 = vpop.f32.mrb[0].mxu0
      %v2462 = vadd.f32 %v1950, %v2461
      %v2463 = vpop.f32.mrb[0].mxu0
      %v2464 = vadd.f32 %v1950, %v2463
      %v2465 = vpop.f32.mrb[0].mxu0
      %v2466 = vadd.f32 %v1955, %v2465
      %v2467 = vpop.f32.mrb[0].mxu0
      %v2468 = vadd.f32 %v1955, %v2467
      %2469 = vmatprep.mubr.bf16.mxu0 %v2292
      %2470 = vmatmul.mubr.bf16.gmra.mrb[0].mxu0 %v2291
      %v2471 = vpop.f32.mrb[0].mxu0
      %v2472 = vadd.f32 %v1960, %v2471
      %v2473 = vpop.f32.mrb[0].mxu0
      %v2474 = vadd.f32 %v1960, %v2473
      %v2475 = vpop.f32.mrb[0].mxu0
      %v2476 = vadd.f32 %v1965, %v2475
      %v2477 = vpop.f32.mrb[0].mxu0
      %v2478 = vadd.f32 %v1965, %v2477
      %2479 = vmatprep.mubr.bf16.mxu0 %v2296
      %2480 = vmatmul.mubr.bf16.gmra.mrb[0].mxu0 %v2295
      %v2481 = vpop.f32.mrb[0].mxu0
      %v2482 = vadd.f32 %v1970, %v2481
      %v2483 = vpop.f32.mrb[0].mxu0
      %v2484 = vadd.f32 %v1970, %v2483
      %v2485 = vpop.f32.mrb[0].mxu0
      %v2486 = vadd.f32 %v1975, %v2485
      %v2487 = vpop.f32.mrb[0].mxu0
      %v2488 = vadd.f32 %v1975, %v2487
      %2489 = vmatprep.mubr.bf16.mxu0 %v2300
      %2490 = vmatmul.mubr.bf16.gmra.mrb[0].mxu0 %v2299
      %v2491 = vpop.f32.mrb[0].mxu0
      %v2492 = vadd.f32 %v1980, %v2491
      %v2493 = vpop.f32.mrb[0].mxu0
      %v2494 = vadd.f32 %v1980, %v2493
      %v2495 = vpop.f32.mrb[0].mxu0
      %v2496 = vadd.f32 %v1985, %v2495
      %v2497 = vpop.f32.mrb[0].mxu0
      %v2498 = vadd.f32 %v1985, %v2497
      %2499 = vmatprep.mubr.bf16.mxu0 %v2304
      %2500 = vmatmul.mubr.bf16.gmra.mrb[0].mxu0 %v2303
      %v2501 = vpop.f32.mrb[0].mxu0
      %v2502 = vadd.f32 %v1990, %v2501
      %v2503 = vpop.f32.mrb[0].mxu0
      %v2504 = vadd.f32 %v1990, %v2503
      %v2505 = vpop.f32.mrb[0].mxu0
      %v2506 = vadd.f32 %v1995, %v2505
      %v2507 = vpop.f32.mrb[0].mxu0
      %v2508 = vadd.f32 %v1995, %v2507
      %2509 = vmatprep.mubr.bf16.mxu0 %v2308
      %2510 = vmatmul.mubr.bf16.gmra.mrb[0].mxu0 %v2307
      %v2511 = vpop.f32.mrb[0].mxu0
      %v2512 = vadd.f32 %v2000, %v2511
      %v2513 = vpop.f32.mrb[0].mxu0
      %v2514 = vadd.f32 %v2000, %v2513
      %v2515 = vpop.f32.mrb[0].mxu0
      %v2516 = vadd.f32 %v2005, %v2515
      %v2517 = vpop.f32.mrb[0].mxu0
      %v2518 = vadd.f32 %v2005, %v2517
      %2519 = vmatprep.mubr.bf16.mxu0 %v2312
      %2520 = vmatmul.mubr.bf16.gmra.mrb[0].mxu0 %v2311
      %v2521 = vpop.f32.mrb[0].mxu0
      %v2522 = vadd.f32 %v2010, %v2521
      %v2523 = vpop.f32.mrb[0].mxu0
      %v2524 = vadd.f32 %v2010, %v2523
      %v2525 = vpop.f32.mrb[0].mxu0
      %v2526 = vadd.f32 %v2015, %v2525
      %v2527 = vpop.f32.mrb[0].mxu0
      %v2528 = vadd.f32 %v2015, %v2527
      %2529 = vmatprep.mubr.bf16.mxu0 %v2316
      %2530 = vmatmul.mubr.bf16.gmra.mrb[0].mxu0 %v2315
      %v2531 = vpop.f32.mrb[0].mxu0
      %v2532 = vadd.f32 %v2020, %v2531
      %v2533 = vpop.f32.mrb[0].mxu0
      %v2534 = vadd.f32 %v2020, %v2533
      %v2535 = vpop.f32.mrb[0].mxu0
      %v2536 = vadd.f32 %v2025, %v2535
      %v2537 = vpop.f32.mrb[0].mxu0
      %v2538 = vadd.f32 %v2025, %v2537
      %2539 = vmatprep.mubr.bf16.mxu0 %v2320
      %2540 = vmatmul.mubr.bf16.gmra.mrb[0].mxu0 %v2319
      %v2541 = vpop.f32.mrb[0].mxu0
      %v2542 = vadd.f32 %v2030, %v2541
      %v2543 = vpop.f32.mrb[0].mxu0
      %v2544 = vadd.f32 %v2030, %v2543
      %v2545 = vpop.f32.mrb[0].mxu0
      %v2546 = vadd.f32 %v2035, %v2545
      %v2547 = vpop.f32.mrb[0].mxu0
      %v2548 = vadd.f32 %v2035, %v2547
      %2549 = vmatprep.mubr.bf16.mxu0 %v2324
      %2550 = vmatmul.mubr.bf16.gmra.mrb[0].mxu0 %v2323
      %v2551 = vpop.f32.mrb[0].mxu0
      %v2552 = vadd.f32 %v2040, %v2551
      %v2553 = vpop.f32.mrb[0].mxu0
      %v2554 = vadd.f32 %v2040, %v2553
      %v2555 = vpop.f32.mrb[0].mxu0
      %v2556 = vadd.f32 %v2045, %v2555
      %v2557 = vpop.f32.mrb[0].mxu0
      %v2558 = vadd.f32 %v2045, %v2557
      %2559 = vmatprep.mubr.bf16.mxu0 %v2328
      %2560 = vmatmul.mubr.bf16.gmra.mrb[0].mxu0 %v2327
      %v2561 = vpop.f32.mrb[0].mxu0
      %v2562 = vadd.f32 %v2050, %v2561
      %v2563 = vpop.f32.mrb[0].mxu0
      %v2564 = vadd.f32 %v2050, %v2563
      %v2565 = vpop.f32.mrb[0].mxu0
      %v2566 = vadd.f32 %v2055, %v2565
      %v2567 = vpop.f32.mrb[0].mxu0
      %v2568 = vadd.f32 %v2055, %v2567
      %2569 = vmatprep.mubr.bf16.mxu0 %v2332
      %2570 = vmatmul.mubr.bf16.gmra.mrb[0].mxu0 %v2331
      %v2571 = vpop.f32.mrb[0].mxu0
      %v2572 = vadd.f32 %v2060, %v2571
      %v2573 = vpop.f32.mrb[0].mxu0
      %v2574 = vadd.f32 %v2060, %v2573
      %v2575 = vpop.f32.mrb[0].mxu0
      %v2576 = vadd.f32 %v2065, %v2575
      %v2577 = vpop.f32.mrb[0].mxu0
      %v2578 = vadd.f32 %v2065, %v2577
      %2579 = vmatprep.mubr.bf16.mxu0 %v2336
      %2580 = vmatmul.mubr.bf16.gmra.mrb[0].mxu0 %v2335
      %v2581 = vpop.f32.mrb[0].mxu0
      %v2582 = vadd.f32 %v2070, %v2581
      %v2583 = vpop.f32.mrb[0].mxu0
      %v2584 = vadd.f32 %v2070, %v2583
      %v2585 = vpop.f32.mrb[0].mxu0
      %v2586 = vadd.f32 %v2075, %v2585
      %v2587 = vpop.f32.mrb[0].mxu0
      %v2588 = vadd.f32 %v2075, %v2587
      %2589 = vmatprep.mubr.bf16.mxu0 %v2340
      %2590 = vmatmul.mubr.bf16.gmra.mrb[0].mxu0 %v2339
      %v2591 = vpop.f32.mrb[0].mxu0
      %v2592 = vadd.f32 %v2080, %v2591
      %v2593 = vpop.f32.mrb[0].mxu0
      %v2594 = vadd.f32 %v2080, %v2593
      %v2595 = vpop.f32.mrb[0].mxu0
      %v2596 = vadd.f32 %v2085, %v2595
      %v2597 = vpop.f32.mrb[0].mxu0
      %v2598 = vadd.f32 %v2085, %v2597
      %2599 = vdwg.mxu0
      %2600 = vmatprep.subr.bf16.mxu0 %v1800
      %2601 = vmatpush1.bf16.msra.mxu0 %v1799
      %2602 = vmatprep.subr.bf16.mxu0 %v1802
      %2603 = vmatpush1.bf16.msra.mxu0 %v1801
      %2604 = vmatprep.subr.bf16.mxu0 %v1804
      %2605 = vmatpush1.bf16.msra.mxu0 %v1803
      %2606 = vmatprep.subr.bf16.mxu0 %v1806
      %2607 = vmatpush1.bf16.msra.mxu0 %v1805
      %2608 = vmatprep.subr.bf16.mxu0 %v1808
      %2609 = vmatpush1.bf16.msra.mxu0 %v1807
      %2610 = vmatprep.subr.bf16.mxu0 %v1810
      %2611 = vmatpush1.bf16.msra.mxu0 %v1809
      %2612 = vmatprep.subr.bf16.mxu0 %v1812
      %2613 = vmatpush1.bf16.msra.mxu0 %v1811
      %2614 = vmatprep.subr.bf16.mxu0 %v1814
      %2615 = vmatpush1.bf16.msra.mxu0 %v1813
      %2616 = vmatprep.subr.bf16.mxu0 %v1816
      %2617 = vmatpush1.bf16.msra.mxu0 %v1815
      %2618 = vmatprep.subr.bf16.mxu0 %v1818
      %2619 = vmatpush1.bf16.msra.mxu0 %v1817
      %2620 = vmatprep.subr.bf16.mxu0 %v1820
      %2621 = vmatpush1.bf16.msra.mxu0 %v1819
      %2622 = vmatprep.subr.bf16.mxu0 %v1822
      %2623 = vmatpush1.bf16.msra.mxu0 %v1821
      %2624 = vmatprep.subr.bf16.mxu0 %v1824
      %2625 = vmatpush1.bf16.msra.mxu0 %v1823
      %2626 = vmatprep.subr.bf16.mxu0 %v1826
      %2627 = vmatpush1.bf16.msra.mxu0 %v1825
      %2628 = vmatprep.subr.bf16.mxu0 %v1828
      %2629 = vmatpush1.bf16.msra.mxu0 %v1827
      %2630 = vmatprep.subr.bf16.mxu0 %v1830
      %2631 = vmatpush1.bf16.msra.mxu0 %v1829
      %2632 = vmatprep.mubr.bf16.mxu0 %v2282
      %2633 = vmatmul.mubr.bf16.gmra.mrb[0].mxu0 %v2281
      %v2634 = vpop.f32.mrb[0].mxu0
      %v2635 = vadd.f32 %v2442, %v2634
      %v2636 = vpop.f32.mrb[0].mxu0
      %v2637 = vadd.f32 %v2444, %v2636
      %v2638 = vpop.f32.mrb[0].mxu0
      %v2639 = vadd.f32 %v2446, %v2638
      %v2640 = vpop.f32.mrb[0].mxu0
      %v2641 = vadd.f32 %v2448, %v2640
      %2642 = vmatprep.mubr.bf16.mxu0 %v2286
      %2643 = vmatmul.mubr.bf16.gmra.mrb[0].mxu0 %v2285
      %v2644 = vpop.f32.mrb[0].mxu0
      %v2645 = vadd.f32 %v2452, %v2644
      %v2646 = vpop.f32.mrb[0].mxu0
      %v2647 = vadd.f32 %v2454, %v2646
      %v2648 = vpop.f32.mrb[0].mxu0
      %v2649 = vadd.f32 %v2456, %v2648
      %v2650 = vpop.f32.mrb[0].mxu0
      %v2651 = vadd.f32 %v2458, %v2650
      %2652 = vmatprep.mubr.bf16.mxu0 %v2290
      %2653 = vmatmul.mubr.bf16.gmra.mrb[0].mxu0 %v2289
      %v2654 = vpop.f32.mrb[0].mxu0
      %v2655 = vadd.f32 %v2462, %v2654
      %v2656 = vpop.f32.mrb[0].mxu0
      %v2657 = vadd.f32 %v2464, %v2656
      %v2658 = vpop.f32.mrb[0].mxu0
      %v2659 = vadd.f32 %v2466, %v2658
      %v2660 = vpop.f32.mrb[0].mxu0
      %v2661 = vadd.f32 %v2468, %v2660
      %2662 = vmatprep.mubr.bf16.mxu0 %v2294
      %2663 = vmatmul.mubr.bf16.gmra.mrb[0].mxu0 %v2293
      %v2664 = vpop.f32.mrb[0].mxu0
      %v2665 = vadd.f32 %v2472, %v2664
      %v2666 = vpop.f32.mrb[0].mxu0
      %v2667 = vadd.f32 %v2474, %v2666
      %v2668 = vpop.f32.mrb[0].mxu0
      %v2669 = vadd.f32 %v2476, %v2668
      %v2670 = vpop.f32.mrb[0].mxu0
      %v2671 = vadd.f32 %v2478, %v2670
      %2672 = vmatprep.mubr.bf16.mxu0 %v2298
      %2673 = vmatmul.mubr.bf16.gmra.mrb[0].mxu0 %v2297
      %v2674 = vpop.f32.mrb[0].mxu0
      %v2675 = vadd.f32 %v2482, %v2674
      %v2676 = vpop.f32.mrb[0].mxu0
      %v2677 = vadd.f32 %v2484, %v2676
      %v2678 = vpop.f32.mrb[0].mxu0
      %v2679 = vadd.f32 %v2486, %v2678
      %v2680 = vpop.f32.mrb[0].mxu0
      %v2681 = vadd.f32 %v2488, %v2680
      %2682 = vmatprep.mubr.bf16.mxu0 %v2302
      %2683 = vmatmul.mubr.bf16.gmra.mrb[0].mxu0 %v2301
      %v2684 = vpop.f32.mrb[0].mxu0
      %v2685 = vadd.f32 %v2492, %v2684
      %v2686 = vpop.f32.mrb[0].mxu0
      %v2687 = vadd.f32 %v2494, %v2686
      %v2688 = vpop.f32.mrb[0].mxu0
      %v2689 = vadd.f32 %v2496, %v2688
      %v2690 = vpop.f32.mrb[0].mxu0
      %v2691 = vadd.f32 %v2498, %v2690
      %2692 = vmatprep.mubr.bf16.mxu0 %v2306
      %2693 = vmatmul.mubr.bf16.gmra.mrb[0].mxu0 %v2305
      %v2694 = vpop.f32.mrb[0].mxu0
      %v2695 = vadd.f32 %v2502, %v2694
      %v2696 = vpop.f32.mrb[0].mxu0
      %v2697 = vadd.f32 %v2504, %v2696
      %v2698 = vpop.f32.mrb[0].mxu0
      %v2699 = vadd.f32 %v2506, %v2698
      %v2700 = vpop.f32.mrb[0].mxu0
      %v2701 = vadd.f32 %v2508, %v2700
      %2702 = vmatprep.mubr.bf16.mxu0 %v2310
      %2703 = vmatmul.mubr.bf16.gmra.mrb[0].mxu0 %v2309
      %v2704 = vpop.f32.mrb[0].mxu0
      %v2705 = vadd.f32 %v2512, %v2704
      %v2706 = vpop.f32.mrb[0].mxu0
      %v2707 = vadd.f32 %v2514, %v2706
      %v2708 = vpop.f32.mrb[0].mxu0
      %v2709 = vadd.f32 %v2516, %v2708
      %v2710 = vpop.f32.mrb[0].mxu0
      %v2711 = vadd.f32 %v2518, %v2710
      %2712 = vmatprep.mubr.bf16.mxu0 %v2314
      %2713 = vmatmul.mubr.bf16.gmra.mrb[0].mxu0 %v2313
      %v2714 = vpop.f32.mrb[0].mxu0
      %v2715 = vadd.f32 %v2522, %v2714
      %v2716 = vpop.f32.mrb[0].mxu0
      %v2717 = vadd.f32 %v2524, %v2716
      %v2718 = vpop.f32.mrb[0].mxu0
      %v2719 = vadd.f32 %v2526, %v2718
      %v2720 = vpop.f32.mrb[0].mxu0
      %v2721 = vadd.f32 %v2528, %v2720
      %2722 = vmatprep.mubr.bf16.mxu0 %v2318
      %2723 = vmatmul.mubr.bf16.gmra.mrb[0].mxu0 %v2317
      %v2724 = vpop.f32.mrb[0].mxu0
      %v2725 = vadd.f32 %v2532, %v2724
      %v2726 = vpop.f32.mrb[0].mxu0
      %v2727 = vadd.f32 %v2534, %v2726
      %v2728 = vpop.f32.mrb[0].mxu0
      %v2729 = vadd.f32 %v2536, %v2728
      %v2730 = vpop.f32.mrb[0].mxu0
      %v2731 = vadd.f32 %v2538, %v2730
      %2732 = vmatprep.mubr.bf16.mxu0 %v2322
      %2733 = vmatmul.mubr.bf16.gmra.mrb[0].mxu0 %v2321
      %v2734 = vpop.f32.mrb[0].mxu0
      %v2735 = vadd.f32 %v2542, %v2734
      %v2736 = vpop.f32.mrb[0].mxu0
      %v2737 = vadd.f32 %v2544, %v2736
      %v2738 = vpop.f32.mrb[0].mxu0
      %v2739 = vadd.f32 %v2546, %v2738
      %v2740 = vpop.f32.mrb[0].mxu0
      %v2741 = vadd.f32 %v2548, %v2740
      %2742 = vmatprep.mubr.bf16.mxu0 %v2326
      %2743 = vmatmul.mubr.bf16.gmra.mrb[0].mxu0 %v2325
      %v2744 = vpop.f32.mrb[0].mxu0
      %v2745 = vadd.f32 %v2552, %v2744
      %v2746 = vpop.f32.mrb[0].mxu0
      %v2747 = vadd.f32 %v2554, %v2746
      %v2748 = vpop.f32.mrb[0].mxu0
      %v2749 = vadd.f32 %v2556, %v2748
      %v2750 = vpop.f32.mrb[0].mxu0
      %v2751 = vadd.f32 %v2558, %v2750
      %2752 = vmatprep.mubr.bf16.mxu0 %v2330
      %2753 = vmatmul.mubr.bf16.gmra.mrb[0].mxu0 %v2329
      %v2754 = vpop.f32.mrb[0].mxu0
      %v2755 = vadd.f32 %v2562, %v2754
      %v2756 = vpop.f32.mrb[0].mxu0
      %v2757 = vadd.f32 %v2564, %v2756
      %v2758 = vpop.f32.mrb[0].mxu0
      %v2759 = vadd.f32 %v2566, %v2758
      %v2760 = vpop.f32.mrb[0].mxu0
      %v2761 = vadd.f32 %v2568, %v2760
      %2762 = vmatprep.mubr.bf16.mxu0 %v2334
      %2763 = vmatmul.mubr.bf16.gmra.mrb[0].mxu0 %v2333
      %v2764 = vpop.f32.mrb[0].mxu0
      %v2765 = vadd.f32 %v2572, %v2764
      %v2766 = vpop.f32.mrb[0].mxu0
      %v2767 = vadd.f32 %v2574, %v2766
      %v2768 = vpop.f32.mrb[0].mxu0
      %v2769 = vadd.f32 %v2576, %v2768
      %v2770 = vpop.f32.mrb[0].mxu0
      %v2771 = vadd.f32 %v2578, %v2770
      %2772 = vmatprep.mubr.bf16.mxu0 %v2338
      %2773 = vmatmul.mubr.bf16.gmra.mrb[0].mxu0 %v2337
      %v2774 = vpop.f32.mrb[0].mxu0
      %v2775 = vadd.f32 %v2582, %v2774
      %v2776 = vpop.f32.mrb[0].mxu0
      %v2777 = vadd.f32 %v2584, %v2776
      %v2778 = vpop.f32.mrb[0].mxu0
      %v2779 = vadd.f32 %v2586, %v2778
      %v2780 = vpop.f32.mrb[0].mxu0
      %v2781 = vadd.f32 %v2588, %v2780
      %2782 = vmatprep.mubr.bf16.mxu0 %v2342
      %2783 = vmatmul.mubr.bf16.gmra.mrb[0].mxu0 %v2341
      %v2784 = vpop.f32.mrb[0].mxu0
      %v2785 = vadd.f32 %v2592, %v2784
      %v2786 = vpop.f32.mrb[0].mxu0
      %v2787 = vadd.f32 %v2594, %v2786
      %v2788 = vpop.f32.mrb[0].mxu0
      %v2789 = vadd.f32 %v2596, %v2788
      %v2790 = vpop.f32.mrb[0].mxu0
      %v2791 = vadd.f32 %v2598, %v2790
      %2792 = vdwg.mxu0
      %v2793 = vmax.f32 %v2635, 0.0
      %v2794 = vmax.f32 %v2637, 0.0
      %v2795 = vmax.f32 %v2639, 0.0
      %v2796 = vmax.f32 %v2641, 0.0
      %v2797 = vmax.f32 %v2645, 0.0
      %v2798 = vmax.f32 %v2647, 0.0
      %v2799 = vmax.f32 %v2649, 0.0
      %v2800 = vmax.f32 %v2651, 0.0
      %v2801 = vmax.f32 %v2655, 0.0
      %v2802 = vmax.f32 %v2657, 0.0
      %v2803 = vmax.f32 %v2659, 0.0
      %v2804 = vmax.f32 %v2661, 0.0
      %v2805 = vmax.f32 %v2665, 0.0
      %v2806 = vmax.f32 %v2667, 0.0
      %v2807 = vmax.f32 %v2669, 0.0
      %v2808 = vmax.f32 %v2671, 0.0
      %v2809 = vmax.f32 %v2675, 0.0
      %v2810 = vmax.f32 %v2677, 0.0
      %v2811 = vmax.f32 %v2679, 0.0
      %v2812 = vmax.f32 %v2681, 0.0
      %v2813 = vmax.f32 %v2685, 0.0
      %v2814 = vmax.f32 %v2687, 0.0
      %v2815 = vmax.f32 %v2689, 0.0
      %v2816 = vmax.f32 %v2691, 0.0
      %v2817 = vmax.f32 %v2695, 0.0
      %v2818 = vmax.f32 %v2697, 0.0
      %v2819 = vmax.f32 %v2699, 0.0
      %v2820 = vmax.f32 %v2701, 0.0
      %v2821 = vmax.f32 %v2705, 0.0
      %v2822 = vmax.f32 %v2707, 0.0
      %v2823 = vmax.f32 %v2709, 0.0
      %v2824 = vmax.f32 %v2711, 0.0
      %v2825 = vmax.f32 %v2715, 0.0
      %v2826 = vmax.f32 %v2717, 0.0
      %v2827 = vmax.f32 %v2719, 0.0
      %v2828 = vmax.f32 %v2721, 0.0
      %v2829 = vmax.f32 %v2725, 0.0
      %v2830 = vmax.f32 %v2727, 0.0
      %v2831 = vmax.f32 %v2729, 0.0
      %v2832 = vmax.f32 %v2731, 0.0
      %v2833 = vmax.f32 %v2735, 0.0
      %v2834 = vmax.f32 %v2737, 0.0
      %v2835 = vmax.f32 %v2739, 0.0
      %v2836 = vmax.f32 %v2741, 0.0
      %v2837 = vmax.f32 %v2745, 0.0
      %v2838 = vmax.f32 %v2747, 0.0
      %v2839 = vmax.f32 %v2749, 0.0
      %v2840 = vmax.f32 %v2751, 0.0
      %v2841 = vmax.f32 %v2755, 0.0
      %v2842 = vmax.f32 %v2757, 0.0
      %v2843 = vmax.f32 %v2759, 0.0
      %v2844 = vmax.f32 %v2761, 0.0
      %v2845 = vmax.f32 %v2765, 0.0
      %v2846 = vmax.f32 %v2767, 0.0
      %v2847 = vmax.f32 %v2769, 0.0
      %v2848 = vmax.f32 %v2771, 0.0
      %v2849 = vmax.f32 %v2775, 0.0
      %v2850 = vmax.f32 %v2777, 0.0
      %v2851 = vmax.f32 %v2779, 0.0
      %v2852 = vmax.f32 %v2781, 0.0
      %v2853 = vmax.f32 %v2785, 0.0
      %v2854 = vmax.f32 %v2787, 0.0
      %v2855 = vmax.f32 %v2789, 0.0
      %v2856 = vmax.f32 %v2791, 0.0
      %v2857 = vpack.c.bf16 %v2795, %v2793
      %v2858 = vpack.c.bf16 %v2796, %v2794
      %v2859 = vpack.c.bf16 %v2799, %v2797
      %v2860 = vpack.c.bf16 %v2800, %v2798
      %v2861 = vpack.c.bf16 %v2803, %v2801
      %v2862 = vpack.c.bf16 %v2804, %v2802
      %v2863 = vpack.c.bf16 %v2807, %v2805
      %v2864 = vpack.c.bf16 %v2808, %v2806
      %v2865 = vpack.c.bf16 %v2811, %v2809
      %v2866 = vpack.c.bf16 %v2812, %v2810
      %v2867 = vpack.c.bf16 %v2815, %v2813
      %v2868 = vpack.c.bf16 %v2816, %v2814
      %v2869 = vpack.c.bf16 %v2819, %v2817
      %v2870 = vpack.c.bf16 %v2820, %v2818
      %v2871 = vpack.c.bf16 %v2823, %v2821
      %v2872 = vpack.c.bf16 %v2824, %v2822
      %v2873 = vpack.c.bf16 %v2827, %v2825
      %v2874 = vpack.c.bf16 %v2828, %v2826
      %v2875 = vpack.c.bf16 %v2831, %v2829
      %v2876 = vpack.c.bf16 %v2832, %v2830
      %v2877 = vpack.c.bf16 %v2835, %v2833
      %v2878 = vpack.c.bf16 %v2836, %v2834
      %v2879 = vpack.c.bf16 %v2839, %v2837
      %v2880 = vpack.c.bf16 %v2840, %v2838
      %v2881 = vpack.c.bf16 %v2843, %v2841
      %v2882 = vpack.c.bf16 %v2844, %v2842
      %v2883 = vpack.c.bf16 %v2847, %v2845
      %v2884 = vpack.c.bf16 %v2848, %v2846
      %v2885 = vpack.c.bf16 %v2851, %v2849
      %v2886 = vpack.c.bf16 %v2852, %v2850
      %v2887 = vpack.c.bf16 %v2855, %v2853
      %v2888 = vpack.c.bf16 %v2856, %v2854
      %v2889 = vld [vmem:[%s5] sm:$0xff]
      %v2890 = vld [vmem:[%s5 + $0x8] sm:$0xff]
      %v2891 = vld [vmem:[%s5 + $0x10] sm:$0xff]
      %v2892 = vld [vmem:[%s5 + $0x18] sm:$0xff]
      %v2893 = vld [vmem:[%s5 + $0x20] sm:$0xff]
      %v2894 = vld [vmem:[%s5 + $0x28] sm:$0xff]
      %v2895 = vld [vmem:[%s5 + $0x30] sm:$0xff]
      %v2896 = vld [vmem:[%s5 + $0x38] sm:$0xff]
      %v2897 = vld [vmem:[%s5 + $0x40] sm:$0xff]
      %v2898 = vld [vmem:[%s5 + $0x48] sm:$0xff]
      %v2899 = vld [vmem:[%s5 + $0x50] sm:$0xff]
      %v2900 = vld [vmem:[%s5 + $0x58] sm:$0xff]
      %v2901 = vld [vmem:[%s5 + $0x60] sm:$0xff]
      %v2902 = vld [vmem:[%s5 + $0x68] sm:$0xff]
      %v2903 = vld [vmem:[%s5 + $0x70] sm:$0xff]
      %v2904 = vld [vmem:[%s5 + $0x78] sm:$0xff]
      %v2905 = vld [vmem:[%s6] sm:$0xff]
      %v2906 = vld [vmem:[%s6 + $0x8] sm:$0xff]
      %v2907 = vld [vmem:[%s6 + $0x10] sm:$0xff]
      %v2908 = vld [vmem:[%s6 + $0x18] sm:$0xff]
      %v2909 = vld [vmem:[%s6 + $0x20] sm:$0xff]
      %v2910 = vld [vmem:[%s6 + $0x28] sm:$0xff]
      %v2911 = vld [vmem:[%s6 + $0x30] sm:$0xff]
      %v2912 = vld [vmem:[%s6 + $0x38] sm:$0xff]
      %v2913 = vld [vmem:[%s6 + $0x40] sm:$0xff]
      %v2914 = vld [vmem:[%s6 + $0x48] sm:$0xff]
      %v2915 = vld [vmem:[%s6 + $0x50] sm:$0xff]
      %v2916 = vld [vmem:[%s6 + $0x58] sm:$0xff]
      %v2917 = vld [vmem:[%s6 + $0x60] sm:$0xff]
      %v2918 = vld [vmem:[%s6 + $0x68] sm:$0xff]
      %v2919 = vld [vmem:[%s6 + $0x70] sm:$0xff]
      %v2920 = vld [vmem:[%s6 + $0x78] sm:$0xff]
      %2922 = vset.pattern.permute.xlu0 0
      %2923 = vperm.xlu0 %2922, %v2905
      %v2924 = vpop.permute.xlu0 %2923
      %2927 = vset.pattern.permute.xlu0 0
      %2928 = vperm.xlu0 %2927, %v2906
      %v2929 = vpop.permute.xlu0 %2928
      %2932 = vset.pattern.permute.xlu0 0
      %2933 = vperm.xlu0 %2932, %v2907
      %v2934 = vpop.permute.xlu0 %2933
      %2937 = vset.pattern.permute.xlu0 0
      %2938 = vperm.xlu0 %2937, %v2908
      %v2939 = vpop.permute.xlu0 %2938
      %2942 = vset.pattern.permute.xlu0 0
      %2943 = vperm.xlu0 %2942, %v2909
      %v2944 = vpop.permute.xlu0 %2943
      %2947 = vset.pattern.permute.xlu0 0
      %2948 = vperm.xlu0 %2947, %v2910
      %v2949 = vpop.permute.xlu0 %2948
      %2952 = vset.pattern.permute.xlu0 0
      %2953 = vperm.xlu0 %2952, %v2911
      %v2954 = vpop.permute.xlu0 %2953
      %2957 = vset.pattern.permute.xlu0 0
      %2958 = vperm.xlu0 %2957, %v2912
      %v2959 = vpop.permute.xlu0 %2958
      %2962 = vset.pattern.permute.xlu0 0
      %2963 = vperm.xlu0 %2962, %v2913
      %v2964 = vpop.permute.xlu0 %2963
      %2967 = vset.pattern.permute.xlu0 0
      %2968 = vperm.xlu0 %2967, %v2914
      %v2969 = vpop.permute.xlu0 %2968
      %2972 = vset.pattern.permute.xlu0 0
      %2973 = vperm.xlu0 %2972, %v2915
      %v2974 = vpop.permute.xlu0 %2973
      %2977 = vset.pattern.permute.xlu0 0
      %2978 = vperm.xlu0 %2977, %v2916
      %v2979 = vpop.permute.xlu0 %2978
      %2982 = vset.pattern.permute.xlu0 0
      %2983 = vperm.xlu0 %2982, %v2917
      %v2984 = vpop.permute.xlu0 %2983
      %2987 = vset.pattern.permute.xlu0 0
      %2988 = vperm.xlu0 %2987, %v2918
      %v2989 = vpop.permute.xlu0 %2988
      %2992 = vset.pattern.permute.xlu0 0
      %2993 = vperm.xlu0 %2992, %v2919
      %v2994 = vpop.permute.xlu0 %2993
      %2997 = vset.pattern.permute.xlu0 0
      %2998 = vperm.xlu0 %2997, %v2920
      %v2999 = vpop.permute.xlu0 %2998
      %v3017 = vunpack.c.l.b16 %v2889
      %v3018 = vunpack.c.h.b16 %v2889
      %v3019 = vunpack.c.l.b16 %v2890
      %v3020 = vunpack.c.h.b16 %v2890
      %v3021 = vunpack.c.l.b16 %v2891
      %v3022 = vunpack.c.h.b16 %v2891
      %v3023 = vunpack.c.l.b16 %v2892
      %v3024 = vunpack.c.h.b16 %v2892
      %v3025 = vunpack.c.l.b16 %v2893
      %v3026 = vunpack.c.h.b16 %v2893
      %v3027 = vunpack.c.l.b16 %v2894
      %v3028 = vunpack.c.h.b16 %v2894
      %v3029 = vunpack.c.l.b16 %v2895
      %v3030 = vunpack.c.h.b16 %v2895
      %v3031 = vunpack.c.l.b16 %v2896
      %v3032 = vunpack.c.h.b16 %v2896
      %v3033 = vunpack.c.l.b16 %v2897
      %v3034 = vunpack.c.h.b16 %v2897
      %v3035 = vunpack.c.l.b16 %v2898
      %v3036 = vunpack.c.h.b16 %v2898
      %v3037 = vunpack.c.l.b16 %v2899
      %v3038 = vunpack.c.h.b16 %v2899
      %v3039 = vunpack.c.l.b16 %v2900
      %v3040 = vunpack.c.h.b16 %v2900
      %v3041 = vunpack.c.l.b16 %v2901
      %v3042 = vunpack.c.h.b16 %v2901
      %v3043 = vunpack.c.l.b16 %v2902
      %v3044 = vunpack.c.h.b16 %v2902
      %v3045 = vunpack.c.l.b16 %v2903
      %v3046 = vunpack.c.h.b16 %v2903
      %v3047 = vunpack.c.l.b16 %v2904
      %v3048 = vunpack.c.h.b16 %v2904
      %v3049 = vpack.c.b16 %v3019, %v3017
      %v3050 = vpack.c.b16 %v3020, %v3018
      %v3051 = vpack.c.b16 %v3023, %v3021
      %v3052 = vpack.c.b16 %v3024, %v3022
      %v3053 = vpack.c.b16 %v3027, %v3025
      %v3054 = vpack.c.b16 %v3028, %v3026
      %v3055 = vpack.c.b16 %v3031, %v3029
      %v3056 = vpack.c.b16 %v3032, %v3030
      %v3057 = vpack.c.b16 %v3035, %v3033
      %v3058 = vpack.c.b16 %v3036, %v3034
      %v3059 = vpack.c.b16 %v3039, %v3037
      %v3060 = vpack.c.b16 %v3040, %v3038
      %v3061 = vpack.c.b16 %v3043, %v3041
      %v3062 = vpack.c.b16 %v3044, %v3042
      %v3063 = vpack.c.b16 %v3047, %v3045
      %v3064 = vpack.c.b16 %v3048, %v3046
      %3081 = vmatprep.subr.bf16.mxu0 %v2858
      %3082 = vmatpush1.bf16.msra.mxu0 %v2857
      %3083 = vmatprep.subr.bf16.mxu0 %v2860
      %3084 = vmatpush1.bf16.msra.mxu0 %v2859
      %3085 = vmatprep.subr.bf16.mxu0 %v2862
      %3086 = vmatpush1.bf16.msra.mxu0 %v2861
      %3087 = vmatprep.subr.bf16.mxu0 %v2864
      %3088 = vmatpush1.bf16.msra.mxu0 %v2863
      %3089 = vmatprep.subr.bf16.mxu0 %v2866
      %3090 = vmatpush1.bf16.msra.mxu0 %v2865
      %3091 = vmatprep.subr.bf16.mxu0 %v2868
      %3092 = vmatpush1.bf16.msra.mxu0 %v2867
      %3093 = vmatprep.subr.bf16.mxu0 %v2870
      %3094 = vmatpush1.bf16.msra.mxu0 %v2869
      %3095 = vmatprep.subr.bf16.mxu0 %v2872
      %3096 = vmatpush1.bf16.msra.mxu0 %v2871
      %3097 = vmatprep.subr.bf16.mxu0 %v2874
      %3098 = vmatpush1.bf16.msra.mxu0 %v2873
      %3099 = vmatprep.subr.bf16.mxu0 %v2876
      %3100 = vmatpush1.bf16.msra.mxu0 %v2875
      %3101 = vmatprep.subr.bf16.mxu0 %v2878
      %3102 = vmatpush1.bf16.msra.mxu0 %v2877
      %3103 = vmatprep.subr.bf16.mxu0 %v2880
      %3104 = vmatpush1.bf16.msra.mxu0 %v2879
      %3105 = vmatprep.subr.bf16.mxu0 %v2882
      %3106 = vmatpush1.bf16.msra.mxu0 %v2881
      %3107 = vmatprep.subr.bf16.mxu0 %v2884
      %3108 = vmatpush1.bf16.msra.mxu0 %v2883
      %3109 = vmatprep.subr.bf16.mxu0 %v2886
      %3110 = vmatpush1.bf16.msra.mxu0 %v2885
      %3111 = vmatprep.subr.bf16.mxu0 %v2888
      %3112 = vmatpush1.bf16.msra.mxu0 %v2887
      %3113 = vmatprep.mubr.bf16.mxu0 %v3050
      %3114 = vmatmul.mubr.bf16.gmra.mrb[0].mxu0 %v3049
      %v3115 = vpop.f32.mrb[0].mxu0
      %v3116 = vadd.f32 %v2924, %v3115
      %v3117 = vpop.f32.mrb[0].mxu0
      %v3118 = vadd.f32 %v2924, %v3117
      %v3119 = vpop.f32.mrb[0].mxu0
      %v3120 = vadd.f32 %v2929, %v3119
      %v3121 = vpop.f32.mrb[0].mxu0
      %v3122 = vadd.f32 %v2929, %v3121
      %3123 = vmatprep.mubr.bf16.mxu0 %v3052
      %3124 = vmatmul.mubr.bf16.gmra.mrb[0].mxu0 %v3051
      %v3125 = vpop.f32.mrb[0].mxu0
      %v3126 = vadd.f32 %v2934, %v3125
      %v3127 = vpop.f32.mrb[0].mxu0
      %v3128 = vadd.f32 %v2934, %v3127
      %v3129 = vpop.f32.mrb[0].mxu0
      %v3130 = vadd.f32 %v2939, %v3129
      %v3131 = vpop.f32.mrb[0].mxu0
      %v3132 = vadd.f32 %v2939, %v3131
      %3133 = vmatprep.mubr.bf16.mxu0 %v3054
      %3134 = vmatmul.mubr.bf16.gmra.mrb[0].mxu0 %v3053
      %v3135 = vpop.f32.mrb[0].mxu0
      %v3136 = vadd.f32 %v2944, %v3135
      %v3137 = vpop.f32.mrb[0].mxu0
      %v3138 = vadd.f32 %v2944, %v3137
      %v3139 = vpop.f32.mrb[0].mxu0
      %v3140 = vadd.f32 %v2949, %v3139
      %v3141 = vpop.f32.mrb[0].mxu0
      %v3142 = vadd.f32 %v2949, %v3141
      %3143 = vmatprep.mubr.bf16.mxu0 %v3056
      %3144 = vmatmul.mubr.bf16.gmra.mrb[0].mxu0 %v3055
      %v3145 = vpop.f32.mrb[0].mxu0
      %v3146 = vadd.f32 %v2954, %v3145
      %v3147 = vpop.f32.mrb[0].mxu0
      %v3148 = vadd.f32 %v2954, %v3147
      %v3149 = vpop.f32.mrb[0].mxu0
      %v3150 = vadd.f32 %v2959, %v3149
      %v3151 = vpop.f32.mrb[0].mxu0
      %v3152 = vadd.f32 %v2959, %v3151
      %3153 = vmatprep.mubr.bf16.mxu0 %v3058
      %3154 = vmatmul.mubr.bf16.gmra.mrb[0].mxu0 %v3057
      %v3155 = vpop.f32.mrb[0].mxu0
      %v3156 = vadd.f32 %v2964, %v3155
      %v3157 = vpop.f32.mrb[0].mxu0
      %v3158 = vadd.f32 %v2964, %v3157
      %v3159 = vpop.f32.mrb[0].mxu0
      %v3160 = vadd.f32 %v2969, %v3159
      %v3161 = vpop.f32.mrb[0].mxu0
      %v3162 = vadd.f32 %v2969, %v3161
      %3163 = vmatprep.mubr.bf16.mxu0 %v3060
      %3164 = vmatmul.mubr.bf16.gmra.mrb[0].mxu0 %v3059
      %v3165 = vpop.f32.mrb[0].mxu0
      %v3166 = vadd.f32 %v2974, %v3165
      %v3167 = vpop.f32.mrb[0].mxu0
      %v3168 = vadd.f32 %v2974, %v3167
      %v3169 = vpop.f32.mrb[0].mxu0
      %v3170 = vadd.f32 %v2979, %v3169
      %v3171 = vpop.f32.mrb[0].mxu0
      %v3172 = vadd.f32 %v2979, %v3171
      %3173 = vmatprep.mubr.bf16.mxu0 %v3062
      %3174 = vmatmul.mubr.bf16.gmra.mrb[0].mxu0 %v3061
      %v3175 = vpop.f32.mrb[0].mxu0
      %v3176 = vadd.f32 %v2984, %v3175
      %v3177 = vpop.f32.mrb[0].mxu0
      %v3178 = vadd.f32 %v2984, %v3177
      %v3179 = vpop.f32.mrb[0].mxu0
      %v3180 = vadd.f32 %v2989, %v3179
      %v3181 = vpop.f32.mrb[0].mxu0
      %v3182 = vadd.f32 %v2989, %v3181
      %3183 = vmatprep.mubr.bf16.mxu0 %v3064
      %3184 = vmatmul.mubr.bf16.gmra.mrb[0].mxu0 %v3063
      %v3185 = vpop.f32.mrb[0].mxu0
      %v3186 = vadd.f32 %v2994, %v3185
      %v3187 = vpop.f32.mrb[0].mxu0
      %v3188 = vadd.f32 %v2994, %v3187
      %v3189 = vpop.f32.mrb[0].mxu0
      %v3190 = vadd.f32 %v2999, %v3189
      %v3191 = vpop.f32.mrb[0].mxu0
      %v3192 = vadd.f32 %v2999, %v3191
      %3193 = vdwg.mxu0
      %v3194 = vmax.f32 %v3116, 0.0
      %v3195 = vmax.f32 %v3118, 0.0
      %v3196 = vmax.f32 %v3120, 0.0
      %v3197 = vmax.f32 %v3122, 0.0
      %v3198 = vmax.f32 %v3126, 0.0
      %v3199 = vmax.f32 %v3128, 0.0
      %v3200 = vmax.f32 %v3130, 0.0
      %v3201 = vmax.f32 %v3132, 0.0
      %v3202 = vmax.f32 %v3136, 0.0
      %v3203 = vmax.f32 %v3138, 0.0
      %v3204 = vmax.f32 %v3140, 0.0
      %v3205 = vmax.f32 %v3142, 0.0
      %v3206 = vmax.f32 %v3146, 0.0
      %v3207 = vmax.f32 %v3148, 0.0
      %v3208 = vmax.f32 %v3150, 0.0
      %v3209 = vmax.f32 %v3152, 0.0
      %v3210 = vmax.f32 %v3156, 0.0
      %v3211 = vmax.f32 %v3158, 0.0
      %v3212 = vmax.f32 %v3160, 0.0
      %v3213 = vmax.f32 %v3162, 0.0
      %v3214 = vmax.f32 %v3166, 0.0
      %v3215 = vmax.f32 %v3168, 0.0
      %v3216 = vmax.f32 %v3170, 0.0
      %v3217 = vmax.f32 %v3172, 0.0
      %v3218 = vmax.f32 %v3176, 0.0
      %v3219 = vmax.f32 %v3178, 0.0
      %v3220 = vmax.f32 %v3180, 0.0
      %v3221 = vmax.f32 %v3182, 0.0
      %v3222 = vmax.f32 %v3186, 0.0
      %v3223 = vmax.f32 %v3188, 0.0
      %v3224 = vmax.f32 %v3190, 0.0
      %v3225 = vmax.f32 %v3192, 0.0
      %v3226 = vpack.c.bf16 %v3196, %v3194
      %v3227 = vpack.c.bf16 %v3197, %v3195
      %v3228 = vpack.c.bf16 %v3200, %v3198
      %v3229 = vpack.c.bf16 %v3201, %v3199
      %v3230 = vpack.c.bf16 %v3204, %v3202
      %v3231 = vpack.c.bf16 %v3205, %v3203
      %v3232 = vpack.c.bf16 %v3208, %v3206
      %v3233 = vpack.c.bf16 %v3209, %v3207
      %v3234 = vpack.c.bf16 %v3212, %v3210
      %v3235 = vpack.c.bf16 %v3213, %v3211
      %v3236 = vpack.c.bf16 %v3216, %v3214
      %v3237 = vpack.c.bf16 %v3217, %v3215
      %v3238 = vpack.c.bf16 %v3220, %v3218
      %v3239 = vpack.c.bf16 %v3221, %v3219
      %v3240 = vpack.c.bf16 %v3224, %v3222
      %v3241 = vpack.c.bf16 %v3225, %v3223
      %v3242 = vld [vmem:[%s7] sm:$0xf]
      %v3243 = vld [vmem:[%s7 + $0x4] sm:$0xf]
      %v3244 = vld [vmem:[%s7 + $0x8] sm:$0xf]
      %v3245 = vld [vmem:[%s7 + $0xc] sm:$0xf]
      %v3246 = vld [vmem:[%s7 + $0x10] sm:$0xf]
      %v3247 = vld [vmem:[%s7 + $0x14] sm:$0xf]
      %v3248 = vld [vmem:[%s7 + $0x18] sm:$0xf]
      %v3249 = vld [vmem:[%s7 + $0x1c] sm:$0xf]
      %v3250 = vld [vmem:[%s8] sm:$0xff]
      %v3251 = vld [vmem:[%s8 + $0x8] sm:$0xff]
      %v3252 = vld [vmem:[%s8 + $0x10] sm:$0xff]
      %v3253 = vld [vmem:[%s8 + $0x18] sm:$0xff]
      %v3254 = vld [vmem:[%s8 + $0x20] sm:$0xff]
      %v3255 = vld [vmem:[%s8 + $0x28] sm:$0xff]
      %v3256 = vld [vmem:[%s8 + $0x30] sm:$0xff]
      %v3257 = vld [vmem:[%s8 + $0x38] sm:$0xff]
      %3259 = vset.pattern.permute.xlu0 0
      %3260 = vperm.xlu0 %3259, %v3250
      %v3261 = vpop.permute.xlu0 %3260
      %3264 = vset.pattern.permute.xlu0 0
      %3265 = vperm.xlu0 %3264, %v3251
      %v3266 = vpop.permute.xlu0 %3265
      %3269 = vset.pattern.permute.xlu0 0
      %3270 = vperm.xlu0 %3269, %v3252
      %v3271 = vpop.permute.xlu0 %3270
      %3274 = vset.pattern.permute.xlu0 0
      %3275 = vperm.xlu0 %3274, %v3253
      %v3276 = vpop.permute.xlu0 %3275
      %3279 = vset.pattern.permute.xlu0 0
      %3280 = vperm.xlu0 %3279, %v3254
      %v3281 = vpop.permute.xlu0 %3280
      %3284 = vset.pattern.permute.xlu0 0
      %3285 = vperm.xlu0 %3284, %v3255
      %v3286 = vpop.permute.xlu0 %3285
      %3289 = vset.pattern.permute.xlu0 0
      %3290 = vperm.xlu0 %3289, %v3256
      %v3291 = vpop.permute.xlu0 %3290
      %3294 = vset.pattern.permute.xlu0 0
      %3295 = vperm.xlu0 %3294, %v3257
      %v3296 = vpop.permute.xlu0 %3295
      %v3306 = vunpack.c.l.b16 %v3242
      %v3307 = vunpack.c.l.b16 %v3243
      %v3308 = vunpack.c.l.b16 %v3244
      %v3309 = vunpack.c.l.b16 %v3245
      %v3310 = vunpack.c.l.b16 %v3246
      %v3311 = vunpack.c.l.b16 %v3247
      %v3312 = vunpack.c.l.b16 %v3248
      %v3313 = vunpack.c.l.b16 %v3249
      %v3314 = vpack.c.b16 %v3307, %v3306
      %v3315 = vpack.c.b16 %v3309, %v3308
      %v3316 = vpack.c.b16 %v3311, %v3310
      %v3317 = vpack.c.b16 %v3313, %v3312
      %3322 = vmatprep.subr.bf16.mxu0 %v3227
      %3323 = vmatpush1.bf16.msra.mxu0 %v3226
      %3324 = vmatprep.subr.bf16.mxu0 %v3229
      %3325 = vmatpush1.bf16.msra.mxu0 %v3228
      %3326 = vmatprep.subr.bf16.mxu0 %v3231
      %3327 = vmatpush1.bf16.msra.mxu0 %v3230
      %3328 = vmatprep.subr.bf16.mxu0 %v3233
      %3329 = vmatpush1.bf16.msra.mxu0 %v3232
      %3330 = vmatprep.subr.bf16.mxu0 %v3235
      %3331 = vmatpush1.bf16.msra.mxu0 %v3234
      %3332 = vmatprep.subr.bf16.mxu0 %v3237
      %3333 = vmatpush1.bf16.msra.mxu0 %v3236
      %3334 = vmatprep.subr.bf16.mxu0 %v3239
      %3335 = vmatpush1.bf16.msra.mxu0 %v3238
      %3336 = vmatprep.subr.bf16.mxu0 %v3241
      %3337 = vmatpush1.bf16.msra.mxu0 %v3240
      %3338 = vmatprep.subr.bf16.mxu0 0
      %3339 = vmatpush1.bf16.msra.mxu0 0
      %3340 = vmatprep.subr.bf16.mxu0 0
      %3341 = vmatpush1.bf16.msra.mxu0 0
      %3342 = vmatprep.subr.bf16.mxu0 0
      %3343 = vmatpush1.bf16.msra.mxu0 0
      %3344 = vmatprep.subr.bf16.mxu0 0
      %3345 = vmatpush1.bf16.msra.mxu0 0
      %3346 = vmatprep.subr.bf16.mxu0 0
      %3347 = vmatpush1.bf16.msra.mxu0 0
      %3348 = vmatprep.subr.bf16.mxu0 0
      %3349 = vmatpush1.bf16.msra.mxu0 0
      %3350 = vmatprep.subr.bf16.mxu0 0
      %3351 = vmatpush1.bf16.msra.mxu0 0
      %3352 = vmatprep.subr.bf16.mxu0 0
      %3353 = vmatpush1.bf16.msra.mxu0 0
      %3354 = vmatprep.mubr.bf16.mxu0 0
      %3355 = vmatmul.mubr.bf16.gmra.mrb[0].mxu0 %v3314
      %v3356 = vpop.f32.mrb[0].mxu0
      %v3357 = vadd.f32 %v3261, %v3356
      %v3358 = vpop.f32.mrb[0].mxu0
      %v3359 = vadd.f32 %v3261, %v3358
      %v3360 = vpop.f32.mrb[0].mxu0
      %v3361 = vadd.f32 %v3266, %v3360
      %v3362 = vpop.f32.mrb[0].mxu0
      %v3363 = vadd.f32 %v3266, %v3362
      %3364 = vmatprep.mubr.bf16.mxu0 0
      %3365 = vmatmul.mubr.bf16.gmra.mrb[0].mxu0 %v3315
      %v3366 = vpop.f32.mrb[0].mxu0
      %v3367 = vadd.f32 %v3271, %v3366
      %v3368 = vpop.f32.mrb[0].mxu0
      %v3369 = vadd.f32 %v3271, %v3368
      %v3370 = vpop.f32.mrb[0].mxu0
      %v3371 = vadd.f32 %v3276, %v3370
      %v3372 = vpop.f32.mrb[0].mxu0
      %v3373 = vadd.f32 %v3276, %v3372
      %3374 = vmatprep.mubr.bf16.mxu0 0
      %3375 = vmatmul.mubr.bf16.gmra.mrb[0].mxu0 %v3316
      %v3376 = vpop.f32.mrb[0].mxu0
      %v3377 = vadd.f32 %v3281, %v3376
      %v3378 = vpop.f32.mrb[0].mxu0
      %v3379 = vadd.f32 %v3281, %v3378
      %v3380 = vpop.f32.mrb[0].mxu0
      %v3381 = vadd.f32 %v3286, %v3380
      %v3382 = vpop.f32.mrb[0].mxu0
      %v3383 = vadd.f32 %v3286, %v3382
      %3384 = vmatprep.mubr.bf16.mxu0 0
      %3385 = vmatmul.mubr.bf16.gmra.mrb[0].mxu0 %v3317
      %v3386 = vpop.f32.mrb[0].mxu0
      %v3387 = vadd.f32 %v3291, %v3386
      %v3388 = vpop.f32.mrb[0].mxu0
      %v3389 = vadd.f32 %v3291, %v3388
      %v3390 = vpop.f32.mrb[0].mxu0
      %v3391 = vadd.f32 %v3296, %v3390
      %v3392 = vpop.f32.mrb[0].mxu0
      %v3393 = vadd.f32 %v3296, %v3392
      %3394 = vdwg.mxu0
      %v3395 = vmax.f32 %v3357, 0.0
      %v3396 = vmax.f32 %v3359, 0.0
      %v3397 = vmax.f32 %v3361, 0.0
      %v3398 = vmax.f32 %v3363, 0.0
      %v3399 = vmax.f32 %v3367, 0.0
      %v3400 = vmax.f32 %v3369, 0.0
      %v3401 = vmax.f32 %v3371, 0.0
      %v3402 = vmax.f32 %v3373, 0.0
      %v3403 = vmax.f32 %v3377, 0.0
      %v3404 = vmax.f32 %v3379, 0.0
      %v3405 = vmax.f32 %v3381, 0.0
      %v3406 = vmax.f32 %v3383, 0.0
      %v3407 = vmax.f32 %v3387, 0.0
      %v3408 = vmax.f32 %v3389, 0.0
      %v3409 = vmax.f32 %v3391, 0.0
      %v3410 = vmax.f32 %v3393, 0.0
      %v3411 = vpack.c.bf16 %v3397, %v3395
      %v3412 = vpack.c.bf16 %v3398, %v3396
      %v3413 = vpack.c.bf16 %v3401, %v3399
      %v3414 = vpack.c.bf16 %v3402, %v3400
      %v3415 = vpack.c.bf16 %v3405, %v3403
      %v3416 = vpack.c.bf16 %v3406, %v3404
      %v3417 = vpack.c.bf16 %v3409, %v3407
      %v3418 = vpack.c.bf16 %v3410, %v3408
      %v3419 = vld [vmem:[%s9] sm:$0xf]
      %v3420 = vld [vmem:[%s9 + $0x4] sm:$0xf]
      %v3421 = vld [vmem:[%s9 + $0x8] sm:$0xf]
      %v3422 = vld [vmem:[%s9 + $0xc] sm:$0xf]
      %v3423 = vld [vmem:[%s10] sm:$0xff]
      %v3424 = vld [vmem:[%s10 + $0x8] sm:$0xff]
      %v3425 = vld [vmem:[%s10 + $0x10] sm:$0xff]
      %v3426 = vld [vmem:[%s10 + $0x18] sm:$0xff]
      %3428 = vset.pattern.permute.xlu0 0
      %3429 = vperm.xlu0 %3428, %v3423
      %v3430 = vpop.permute.xlu0 %3429
      %3433 = vset.pattern.permute.xlu0 0
      %3434 = vperm.xlu0 %3433, %v3424
      %v3435 = vpop.permute.xlu0 %3434
      %3438 = vset.pattern.permute.xlu0 0
      %3439 = vperm.xlu0 %3438, %v3425
      %v3440 = vpop.permute.xlu0 %3439
      %3443 = vset.pattern.permute.xlu0 0
      %3444 = vperm.xlu0 %3443, %v3426
      %v3445 = vpop.permute.xlu0 %3444
      %v3451 = vunpack.c.l.b16 %v3419
      %v3452 = vunpack.c.l.b16 %v3420
      %v3453 = vunpack.c.l.b16 %v3421
      %v3454 = vunpack.c.l.b16 %v3422
      %v3455 = vpack.c.b16 %v3452, %v3451
      %v3456 = vpack.c.b16 %v3454, %v3453
      %v3458 = vsel %vm1189, %v3455, 0
      %v3461 = vsel %vm1189, %v3456, 0
      %3463 = vmatprep.subr.bf16.mxu0 %v3412
      %3464 = vmatpush1.bf16.msra.mxu0 %v3411
      %3465 = vmatprep.subr.bf16.mxu0 %v3414
      %3466 = vmatpush1.bf16.msra.mxu0 %v3413
      %3467 = vmatprep.subr.bf16.mxu0 %v3416
      %3468 = vmatpush1.bf16.msra.mxu0 %v3415
      %3469 = vmatprep.subr.bf16.mxu0 %v3418
      %3470 = vmatpush1.bf16.msra.mxu0 %v3417
      %3471 = vmatprep.subr.bf16.mxu0 0
      %3472 = vmatpush1.bf16.msra.mxu0 0
      %3473 = vmatprep.subr.bf16.mxu0 0
      %3474 = vmatpush1.bf16.msra.mxu0 0
      %3475 = vmatprep.subr.bf16.mxu0 0
      %3476 = vmatpush1.bf16.msra.mxu0 0
      %3477 = vmatprep.subr.bf16.mxu0 0
      %3478 = vmatpush1.bf16.msra.mxu0 0
      %3479 = vmatprep.subr.bf16.mxu0 0
      %3480 = vmatpush1.bf16.msra.mxu0 0
      %3481 = vmatprep.subr.bf16.mxu0 0
      %3482 = vmatpush1.bf16.msra.mxu0 0
      %3483 = vmatprep.subr.bf16.mxu0 0
      %3484 = vmatpush1.bf16.msra.mxu0 0
      %3485 = vmatprep.subr.bf16.mxu0 0
      %3486 = vmatpush1.bf16.msra.mxu0 0
      %3487 = vmatprep.subr.bf16.mxu0 0
      %3488 = vmatpush1.bf16.msra.mxu0 0
      %3489 = vmatprep.subr.bf16.mxu0 0
      %3490 = vmatpush1.bf16.msra.mxu0 0
      %3491 = vmatprep.subr.bf16.mxu0 0
      %3492 = vmatpush1.bf16.msra.mxu0 0
      %3493 = vmatprep.subr.bf16.mxu0 0
      %3494 = vmatpush1.bf16.msra.mxu0 0
      %3495 = vmatprep.mubr.bf16.mxu0 0
      %3496 = vmatmul.mubr.bf16.gmra.mrb[0].mxu0 %v3458
      %v3497 = vpop.f32.mrb[0].mxu0
      %v3498 = vadd.f32 %v3430, %v3497
      %v3499 = vpop.f32.mrb[0].mxu0
      %v3500 = vadd.f32 %v3430, %v3499
      %v3501 = vpop.f32.mrb[0].mxu0
      %v3502 = vadd.f32 %v3435, %v3501
      %v3503 = vpop.f32.mrb[0].mxu0
      %v3504 = vadd.f32 %v3435, %v3503
      %3505 = vmatprep.mubr.bf16.mxu0 0
      %3506 = vmatmul.mubr.bf16.gmra.mrb[0].mxu0 %v3461
      %v3507 = vpop.f32.mrb[0].mxu0
      %v3508 = vadd.f32 %v3440, %v3507
      %v3509 = vpop.f32.mrb[0].mxu0
      %v3510 = vadd.f32 %v3440, %v3509
      %v3511 = vpop.f32.mrb[0].mxu0
      %v3512 = vadd.f32 %v3445, %v3511
      %v3513 = vpop.f32.mrb[0].mxu0
      %v3514 = vadd.f32 %v3445, %v3513
      %3515 = vdwg.mxu0
      %v3516 = vmax.f32 %v3498, 0.0
      %v3517 = vmax.f32 %v3500, 0.0
      %v3518 = vmax.f32 %v3502, 0.0
      %v3519 = vmax.f32 %v3504, 0.0
      %v3520 = vmax.f32 %v3508, 0.0
      %v3521 = vmax.f32 %v3510, 0.0
      %v3522 = vmax.f32 %v3512, 0.0
      %v3523 = vmax.f32 %v3514, 0.0
      %v3524 = vpack.c.bf16 %v3518, %v3516
      %v3525 = vpack.c.bf16 %v3519, %v3517
      %v3526 = vpack.c.bf16 %v3522, %v3520
      %v3527 = vpack.c.bf16 %v3523, %v3521
      %v3528 = vld [vmem:[%s11] sm:$0x1]
      %v3529 = vld [vmem:[#allocation2] sm:$0x1]
      %3531 = vset.pattern.permute.xlu0 0
      %3532 = vperm.xlu0 %3531, %v3529
      %v3533 = vpop.permute.xlu0 %3532
      %v3535 = vlaneseq
      %v3536 = vshrl.u32 %v3535, 7
      %v3537 = vsub.s32 0, %v3536
      %v3538 = vrot.slane %v3533, %v3537
      %vm3539 = vcmask 261120
      %v3541 = vsel %vm3539, %v3528, 0
      %3543 = vmatprep.subr.bf16.mxu0 %v3525
      %3544 = vmatpush1.bf16.msra.mxu0 %v3524
      %3545 = vmatprep.subr.bf16.mxu0 %v3527
      %3546 = vmatpush1.bf16.msra.mxu0 %v3526
      %3547 = vmatprep.subr.bf16.mxu0 0
      %3548 = vmatpush1.bf16.msra.mxu0 0
      %3549 = vmatprep.subr.bf16.mxu0 0
      %3550 = vmatpush1.bf16.msra.mxu0 0
      %3551 = vmatprep.subr.bf16.mxu0 0
      %3552 = vmatpush1.bf16.msra.mxu0 0
      %3553 = vmatprep.subr.bf16.mxu0 0
      %3554 = vmatpush1.bf16.msra.mxu0 0
      %3555 = vmatprep.subr.bf16.mxu0 0
      %3556 = vmatpush1.bf16.msra.mxu0 0
      %3557 = vmatprep.subr.bf16.mxu0 0
      %3558 = vmatpush1.bf16.msra.mxu0 0
      %3559 = vmatprep.subr.bf16.mxu0 0
      %3560 = vmatpush1.bf16.msra.mxu0 0
      %3561 = vmatprep.subr.bf16.mxu0 0
      %3562 = vmatpush1.bf16.msra.mxu0 0
      %3563 = vmatprep.subr.bf16.mxu0 0
      %3564 = vmatpush1.bf16.msra.mxu0 0
      %3565 = vmatprep.subr.bf16.mxu0 0
      %3566 = vmatpush1.bf16.msra.mxu0 0
      %3567 = vmatprep.subr.bf16.mxu0 0
      %3568 = vmatpush1.bf16.msra.mxu0 0
      %3569 = vmatprep.subr.bf16.mxu0 0
      %3570 = vmatpush1.bf16.msra.mxu0 0
      %3571 = vmatprep.subr.bf16.mxu0 0
      %3572 = vmatpush1.bf16.msra.mxu0 0
      %3573 = vmatprep.subr.bf16.mxu0 0
      %3574 = vmatpush1.bf16.msra.mxu0 0
      %3575 = vmatprep.mubr.bf16.mxu0 0
      %3576 = vmatmul.mubr.bf16.gmra.mrb[0].mxu0 %v3541
      %v3577 = vpop.f32.mrb[0].mxu0
      %v3578 = vadd.f32 %v3538, %v3577
      %v3579 = vpop.f32.mrb[0].mxu0
      %v3580 = vadd.f32 %v3538, %v3579
      %v3581 = vpop.f32.mrb[0].mxu0
      %v3582 = vpop.f32.mrb[0].mxu0
      %3583 = vdwg.mxu0
      %v3584 = vsub.f32 0.0, %v3578
      %v3585 = vsub.f32 0.0, %v3580
      %v3586 = vmul.f32 %v3584, 1.442695
      %v3587 = vpow.pop %v3586
      %v3588 = vmul.f32 %v3585, 1.442695
      %v3589 = vpow.pop %v3588
      %v3590 = vadd.f32 %v3587, 1.0
      %v3591 = vadd.f32 %v3589, 1.0
      %v3592 = vrcp.pop %v3590
      %v3593 = vmul.f32 1.0, %v3592
      %v3594 = vrcp.pop %v3591
      %v3595 = vmul.f32 1.0, %v3594
      %v3598 = vcombine.low %v3593, %v3595
      %v3600 = vunpack.c.l.s4 1966171168
      %v3601 = vunpack.c.0.s8 %v3600
      %v3602 = vlaneseq
      %v3603 = vshrl.u32 %v3602, 7
      %v3604 = vsub.s32 %v3601, %v3603
      %v3605 = vrot.slane %v3598, %v3604
      %v3607 = vunpack.c.l.s4 1966171168
      %v3608 = vunpack.c.0.s8 %v3607
      %v3609 = vlaneseq
      %v3610 = vshrl.u32 %v3609, 7
      %v3611 = vsub.s32 %v3608, %v3610
      %v3612 = vrot.slane %v3605, %v3611
      %v3614 = vlaneseq
      %vm3615 = vcmp.ge.s32.totalorder %v3614, 0
      %vm3616 = vcmp.lt.s32.totalorder %v3614, 256
      %vm3617 = vmand %vm3615, %vm3616
      %3618 = vst.msk [vmem:[%s442] sm:$0x3] %vm3617, %v3612
      %s3619 = smul.u32 2, %s26
      %p3620 = scmp.lt.s32.totalorder %s3619, 3
      %s3621 = scalar_select %p3620, %s3619, 3
      %s3622 = scalar_lea.vmem %s13, %s3621
      // Predicated region
      $region73: #{_forward_impl.1} parent=71 // pred_check
        %p3623 = pneg %p322
      $region74: #{_forward_impl.1} parent=71 // pred_check_branch
        %3625 = sbr.rel (%p3623) target = $region76
      $region75: #{_forward_impl.1} parent=71 // pred_region
        %s3626 = smul.u32 2, %s26
      $region76: #{_forward_impl.1} parent=71 // pred_fallthru
        _
    $region72: #{_forward_impl.1} parent=5 // pred_fallthru
      _
    %p3627 = scmp.le.s32.totalorder 2, %s21
    // Predicated region
    $region77: #{_forward_impl.1} parent=5 // pred_check
      %p3628 = pneg %p3627
    $region78: #{_forward_impl.1} parent=5 // pred_check_branch
      %3630 = sbr.rel (%p3628) target = $region80
    $region79: #{_forward_impl.1} parent=5 // pred_region
      %s3631 = ssub.s32 %s21, 2
      // Predicated region
      $region81: #{_forward_impl.1} parent=79 // pred_check
        %p3632 = pneg %p328
      $region82: #{_forward_impl.1} parent=79 // pred_check_branch
        %3634 = sbr.rel (%p3632) target = $region84
      $region83: #{_forward_impl.1} parent=79 // pred_region
        %s3635 = smul.u32 2, %s27
        %p3636 = scmp.lt.s32.totalorder %s3635, 3
        %s3637 = scalar_select %p3636, %s3635, 3
        %s3638 = scalar_lea.vmem %s13, %s3637
      $region84: #{_forward_impl.1} parent=79 // pred_fallthru
        _
    $region80: #{_forward_impl.1} parent=5 // pred_fallthru
      _
  $region6: #{_forward_impl.1} parent=0 // loop_footer
    %s25 = sadd.s32 1, %s21
  $region7: #{_forward_impl.1} parent=0 // loop_footer_branch
    %20 = sbr.rel target = $region3
  $region8: #{_forward_impl.1} parent=0 // loop_exit
    _

</llo_original>
